<compile_context>
chip_gen: v6e
topology: v6e:2x2x1
jax: 0.10.0
libtpu: 0.0.40
codegen_flags: <defaults>
</compile_context>

<pallas_src>
import functools

import jax
import jax.numpy as jnp
from jax.experimental import pallas as pl
from jax.experimental.pallas import tpu as pltpu

# Small, module-consistent config (head_size = n_embd // n_head, T <= block_size).
B = 2          # batch
T = 64         # sequence length
N_EMBD = 128   # embedding dim
N_HEAD = 4     # number of heads
HEAD = N_EMBD // N_HEAD   # 32, same head-size ratio as the original (384 // 12)
HIDDEN = 4 * N_EMBD
EPS = 1e-5


def _layernorm(x, gamma, beta):
    mu = jnp.mean(x, axis=-1, keepdims=True)
    xc = x - mu
    var = jnp.mean(xc * xc, axis=-1, keepdims=True)
    return xc * jax.lax.rsqrt(var + EPS) * gamma + beta


def block_kernel(x_ref,
                 ln1_g_ref, ln1_b_ref,
                 wqkv_ref, wproj_ref, bproj_ref,
                 ln2_g_ref, ln2_b_ref,
                 w1_ref, b1_ref, w2_ref, b2_ref,
                 out_ref, *, batch, seq, n_head):
    c = x_ref.shape[-1]
    head = c // n_head
    bt = batch * seq

    # Fold batch into the matmul M dimension: (B, T, C) -> (B*T, C).
    x = x_ref[...].reshape(bt, c)                       # float32

    # ---- ln1 + fused QKV projection (1/sqrt(head) pre-folded into Q cols) ----
    y = _layernorm(x, ln1_g_ref[0], ln1_b_ref[0])
    qkv = jnp.dot(y.astype(jnp.bfloat16), wqkv_ref[...],
                  preferred_element_type=jnp.float32)   # (B*T, 3C)
    qkv_bf = qkv.astype(jnp.bfloat16)                   # single bulk cast
    q_all = qkv_bf[:, :c]                               # 128-lane-aligned slices
    k_all = qkv_bf[:, c:2 * c]
    v_all = qkv_bf[:, 2 * c:]

    # Additive causal bias, computed once for all (batch, head) pairs.
    row = jax.lax.broadcasted_iota(jnp.int32, (seq, seq), 0)
    col = jax.lax.broadcasted_iota(jnp.int32, (seq, seq), 1)
    causal_bias = jnp.where(row >= col, jnp.float32(0.0), jnp.float32(-1e30))

    # ---- per-(batch, head) scores / softmax / PV ----
    contract = (((1,), (1,)), ((), ()))   # contract last dims, no .T (no XLU)
    o_rows = []
    for b in range(batch):                # static unroll, B*H = 8 tiny tiles
        r = slice(b * seq, (b + 1) * seq)
        head_outs = []
        for h in range(n_head):
            cs = slice(h * head, (h + 1) * head)
            q = q_all[r, cs]
            k = k_all[r, cs]
            v = v_all[r, cs]
            s = jax.lax.dot_general(q, k, contract,
                                    preferred_element_type=jnp.float32)
            s = s + causal_bias
            m = jnp.max(s, axis=-1, keepdims=True)
            p = jnp.exp(s - m)
            p = p * pl.reciprocal(jnp.sum(p, axis=-1, keepdims=True),
                                  approx=True)
            head_outs.append(
                jnp.dot(p.astype(jnp.bfloat16), v,
                        preferred_element_type=jnp.float32))
        o_rows.append(jnp.concatenate(head_outs, axis=-1))   # (T, C)
    o_cat = jnp.concatenate(o_rows, axis=0)                  # (B*T, C)

    # ---- fused output projection + residual (dropout = identity, eval) ----
    sa = jnp.dot(o_cat.astype(jnp.bfloat16), wproj_ref[...],
                 preferred_element_type=jnp.float32) + bproj_ref[0]
    x1 = x + sa

    # ---- ln2 + feed-forward (C -> 4C -> C, ReLU) ----
    y2 = _layernorm(x1, ln2_g_ref[0], ln2_b_ref[0])
    hcur = jnp.dot(y2.astype(jnp.bfloat16), w1_ref[...],
                   preferred_element_type=jnp.float32) + b1_ref[0]
    hcur = jnp.maximum(hcur, 0.0)
    f = jnp.dot(hcur.astype(jnp.bfloat16), w2_ref[...],
                preferred_element_type=jnp.float32) + b2_ref[0]

    out_ref[...] = (x1 + f).reshape(batch, seq, c)


def prepack_params(params):
    """One-time host-side weight repack (hoisted out of the jitted forward)."""
    h, c, dh = params["wq"].shape
    scale = float(dh) ** -0.5
    # Fold the attention scale into the Q columns; stack Q|K|V lane-dense.
    wq = jnp.transpose(params["wq"], (1, 0, 2)).reshape(c, h * dh) * scale
    wk = jnp.transpose(params["wk"], (1, 0, 2)).reshape(c, h * dh)
    wv = jnp.transpose(params["wv"], (1, 0, 2)).reshape(c, h * dh)
    return {
        "ln1_g": params["ln1_g"], "ln1_b": params["ln1_b"],
        "wqkv": jnp.concatenate([wq, wk, wv], axis=1).astype(jnp.bfloat16),
        "wproj": params["wproj"].reshape(h * dh, c).astype(jnp.bfloat16),
        "bproj": params["bproj"],
        "ln2_g": params["ln2_g"], "ln2_b": params["ln2_b"],
        "w1": params["w1"].astype(jnp.bfloat16), "b1": params["b1"],
        "w2": params["w2"].astype(jnp.bfloat16), "b2": params["b2"],
    }


def transformer_block(x, p, *, n_head=N_HEAD):
    b, t, c = x.shape
    hid = p["w1"].shape[1]

    def rep(shape):  # replicated (non-tiled) parameter spec
        n = len(shape)
        return pl.BlockSpec(shape, lambda i, _n=n: (0,) * _n)

    in_specs = [
        pl.BlockSpec((b, t, c), lambda i: (0, 0, 0)),    # x (whole batch)
        rep((1, c)), rep((1, c)),                        # ln1 gamma / beta
        rep((c, 3 * c)),                                 # Wqkv (bf16, fused)
        rep((c, c)), rep((1, c)),                        # Wproj (bf16), bproj
        rep((1, c)), rep((1, c)),                        # ln2 gamma / beta
        rep((c, hid)), rep((1, hid)),                    # W1 (bf16), b1
        rep((hid, c)), rep((1, c)),                      # W2 (bf16), b2
    ]

    return pl.pallas_call(
        functools.partial(block_kernel, batch=b, seq=t, n_head=n_head),
        out_shape=jax.ShapeDtypeStruct((b, t, c), jnp.float32),
        grid=(1,),                                       # single step: batch folded
        in_specs=in_specs,
        out_specs=pl.BlockSpec((b, t, c), lambda i: (0, 0, 0)),
        compiler_params=pltpu.CompilerParams(
            dimension_semantics=("arbitrary",),
        ),
    )(
        x,
        p["ln1_g"], p["ln1_b"],
        p["wqkv"], p["wproj"], p["bproj"],
        p["ln2_g"], p["ln2_b"],
        p["w1"], p["b1"], p["w2"], p["b2"],
    )


def reference_block(x, p):
    """Pure-JAX f32 reference mirroring the PyTorch forward (eval mode)."""
    t = x.shape[1]
    y = _layernorm(x, p["ln1_g"][0], p["ln1_b"][0])
    causal = jnp.tril(jnp.ones((t, t), bool))
    sa = jnp.zeros_like(x)
    for h in range(p["wq"].shape[0]):
        q = y @ p["wq"][h]
        k = y @ p["wk"][h]
        v = y @ p["wv"][h]
        s = jnp.einsum("btd,bsd->bts", q, k) * (p["wq"].shape[2] ** -0.5)
        s = jnp.where(causal[None], s, -1e30)
        w = jax.nn.softmax(s, axis=-1)
        sa = sa + jnp.einsum("bts,bsd->btd", w, v) @ p["wproj"][h]
    x1 = x + sa + p["bproj"][0]
    y2 = _layernorm(x1, p["ln2_g"][0], p["ln2_b"][0])
    f = jnp.maximum(y2 @ p["w1"] + p["b1"][0], 0.0) @ p["w2"] + p["b2"][0]
    return x1 + f


def init_params(key):
    ks = jax.random.split(key, 8)
    s = 0.02
    return {
        "ln1_g": jnp.ones((1, N_EMBD), jnp.float32),
        "ln1_b": jnp.zeros((1, N_EMBD), jnp.float32),
        "wq": s * jax.random.normal(ks[0], (N_HEAD, N_EMBD, HEAD), jnp.float32),
        "wk": s * jax.random.normal(ks[1], (N_HEAD, N_EMBD, HEAD), jnp.float32),
        "wv": s * jax.random.normal(ks[2], (N_HEAD, N_EMBD, HEAD), jnp.float32),
        "wproj": s * jax.random.normal(ks[3], (N_HEAD, HEAD, N_EMBD), jnp.float32),
        "bproj": s * jax.random.normal(ks[4], (1, N_EMBD), jnp.float32),
        "ln2_g": jnp.ones((1, N_EMBD), jnp.float32),
        "ln2_b": jnp.zeros((1, N_EMBD), jnp.float32),
        "w1": s * jax.random.normal(ks[5], (N_EMBD, HIDDEN), jnp.float32),
        "b1": jnp.zeros((1, HIDDEN), jnp.float32),
        "w2": s * jax.random.normal(ks[6], (HIDDEN, N_EMBD), jnp.float32),
        "b2": jnp.zeros((1, N_EMBD), jnp.float32),
    }


if __name__ == "__main__":
    key = jax.random.PRNGKey(0)
    kx, kp = jax.random.split(key)
    x = jax.random.normal(kx, (B, T, N_EMBD), jnp.float32)
    params = init_params(kp)

    # One-time prepack (NOT part of the per-call forward path).
    prepacked = prepack_params(params)
    prepacked = jax.tree_util.tree_map(jax.block_until_ready, prepacked)

    fwd = jax.jit(transformer_block)
    out = jax.block_until_ready(fwd(x, prepacked))

    ref = reference_block(x, params)
    assert out.shape == (B, T, N_EMBD)
    assert jnp.allclose(out, ref, rtol=2e-2, atol=2e-2), (
        float(jnp.max(jnp.abs(out - ref))))

    print("KERNEL_OK")
</pallas_src>

<mosaic_0001>
module attributes {stable_mosaic.version = 11 : i64} {
  func.func @block_kernel(%arg0: i32, %arg1: memref<2x64x128xf32, #tpu.memory_space<vmem>>, %arg2: memref<1x128xf32, #tpu.memory_space<vmem>>, %arg3: memref<1x128xf32, #tpu.memory_space<vmem>>, %arg4: memref<128x384xbf16, #tpu.memory_space<vmem>>, %arg5: memref<128x128xbf16, #tpu.memory_space<vmem>>, %arg6: memref<1x128xf32, #tpu.memory_space<vmem>>, %arg7: memref<1x128xf32, #tpu.memory_space<vmem>>, %arg8: memref<1x128xf32, #tpu.memory_space<vmem>>, %arg9: memref<128x512xbf16, #tpu.memory_space<vmem>>, %arg10: memref<1x512xf32, #tpu.memory_space<vmem>>, %arg11: memref<512x128xbf16, #tpu.memory_space<vmem>>, %arg12: memref<1x128xf32, #tpu.memory_space<vmem>>, %arg13: memref<2x64x128xf32, #tpu.memory_space<vmem>>) attributes {dimension_semantics = [#tpu.dimension_semantics<arbitrary>], iteration_bounds = array<i64: 1>, scalar_prefetch = 0 : i64, scratch_operands = 0 : i64, tpu.core_type = #tpu.core_type<tc>, window_params = [{pipeline_mode = #tpu.pipeline_mode<synchronous>, transform_indices = @transform_0, window_bounds = array<i64: 2, 64, 128>}, {pipeline_mode = #tpu.pipeline_mode<synchronous>, transform_indices = @transform_1, window_bounds = array<i64: 1, 128>}, {pipeline_mode = #tpu.pipeline_mode<synchronous>, transform_indices = @transform_2, window_bounds = array<i64: 1, 128>}, {pipeline_mode = #tpu.pipeline_mode<synchronous>, transform_indices = @transform_3, window_bounds = array<i64: 128, 384>}, {pipeline_mode = #tpu.pipeline_mode<synchronous>, transform_indices = @transform_4, window_bounds = array<i64: 128, 128>}, {pipeline_mode = #tpu.pipeline_mode<synchronous>, transform_indices = @transform_5, window_bounds = array<i64: 1, 128>}, {pipeline_mode = #tpu.pipeline_mode<synchronous>, transform_indices = @transform_6, window_bounds = array<i64: 1, 128>}, {pipeline_mode = #tpu.pipeline_mode<synchronous>, transform_indices = @transform_7, window_bounds = array<i64: 1, 128>}, {pipeline_mode = #tpu.pipeline_mode<synchronous>, transform_indices = @transform_8, window_bounds = array<i64: 128, 512>}, {pipeline_mode = #tpu.pipeline_mode<synchronous>, transform_indices = @transform_9, window_bounds = array<i64: 1, 512>}, {pipeline_mode = #tpu.pipeline_mode<synchronous>, transform_indices = @transform_10, window_bounds = array<i64: 512, 128>}, {pipeline_mode = #tpu.pipeline_mode<synchronous>, transform_indices = @transform_11, window_bounds = array<i64: 1, 128>}, {pipeline_mode = #tpu.pipeline_mode<synchronous>, transform_indices = @transform_12, window_bounds = array<i64: 2, 64, 128>}]} {
    %c0 = arith.constant 0 : index
    %c0_0 = arith.constant 0 : index
    %c0_1 = arith.constant 0 : index
    %0 = vector.load %arg1[%c0, %c0_0, %c0_1] : memref<2x64x128xf32, #tpu.memory_space<vmem>>, vector<2x64x128xf32>
    %1 = vector.shape_cast %0 : vector<2x64x128xf32> to vector<128x128xf32>
    %c0_2 = arith.constant 0 : index
    %c0_3 = arith.constant 0 : index
    %2 = vector.load %arg2[%c0_2, %c0_3] : memref<1x128xf32, #tpu.memory_space<vmem>>, vector<1x128xf32>
    %3 = vector.shape_cast %2 : vector<1x128xf32> to vector<128xf32>
    %c0_4 = arith.constant 0 : index
    %c0_5 = arith.constant 0 : index
    %4 = vector.load %arg3[%c0_4, %c0_5] : memref<1x128xf32, #tpu.memory_space<vmem>>, vector<1x128xf32>
    %5 = vector.shape_cast %4 : vector<1x128xf32> to vector<128xf32>
    %cst = arith.constant dense<0.000000e+00> : vector<128xf32>
    %6 = vector.multi_reduction <add>, %1, %cst [1] : vector<128x128xf32> to vector<128xf32>
    %7 = vector.shape_cast %6 : vector<128xf32> to vector<128x1xf32>
    %cst_6 = arith.constant 1.280000e+02 : f32
    %8 = vector.broadcast %cst_6 : f32 to vector<128x1xf32>
    %9 = arith.divf %7, %8 : vector<128x1xf32>
    %10 = vector.broadcast %9 : vector<128x1xf32> to vector<128x128xf32>
    %11 = arith.subf %1, %10 : vector<128x128xf32>
    %12 = arith.mulf %11, %11 : vector<128x128xf32>
    %cst_7 = arith.constant dense<0.000000e+00> : vector<128xf32>
    %13 = vector.multi_reduction <add>, %12, %cst_7 [1] : vector<128x128xf32> to vector<128xf32>
    %14 = vector.shape_cast %13 : vector<128xf32> to vector<128x1xf32>
    %cst_8 = arith.constant 1.280000e+02 : f32
    %15 = vector.broadcast %cst_8 : f32 to vector<128x1xf32>
    %16 = arith.divf %14, %15 : vector<128x1xf32>
    %cst_9 = arith.constant 9.99999974E-6 : f32
    %17 = vector.broadcast %cst_9 : f32 to vector<128x1xf32>
    %18 = arith.addf %16, %17 : vector<128x1xf32>
    %19 = math.rsqrt %18 : vector<128x1xf32>
    %20 = vector.broadcast %19 : vector<128x1xf32> to vector<128x128xf32>
    %21 = arith.mulf %11, %20 : vector<128x128xf32>
    %22 = vector.shape_cast %3 : vector<128xf32> to vector<1x128xf32>
    %23 = vector.broadcast %22 : vector<1x128xf32> to vector<128x128xf32>
    %24 = arith.mulf %21, %23 : vector<128x128xf32>
    %25 = vector.shape_cast %5 : vector<128xf32> to vector<1x128xf32>
    %26 = vector.broadcast %25 : vector<1x128xf32> to vector<128x128xf32>
    %27 = arith.addf %24, %26 : vector<128x128xf32>
    %28 = arith.truncf %27 : vector<128x128xf32> to vector<128x128xbf16>
    %c0_10 = arith.constant 0 : index
    %c0_11 = arith.constant 0 : index
    %29 = vector.load %arg4[%c0_10, %c0_11] : memref<128x384xbf16, #tpu.memory_space<vmem>>, vector<128x384xbf16>
    %cst_12 = arith.constant dense<0.000000e+00> : vector<128x384xf32>
    %30 = tpu.matmul %28, %29, %cst_12 {dimension_numbers = #tpu.dot_dimension_numbers<[1], [0], [0], [1], [0, 0, 1, 1], [], []>} : vector<128x128xbf16>, vector<128x384xbf16>, vector<128x384xf32> -> vector<128x384xf32>
    %31 = arith.truncf %30 : vector<128x384xf32> to vector<128x384xbf16>
    %32 = vector.extract_strided_slice %31 {offsets = [0, 0], sizes = [128, 128], strides = [1, 1]} : vector<128x384xbf16> to vector<128x128xbf16>
    %33 = vector.extract_strided_slice %31 {offsets = [0, 128], sizes = [128, 128], strides = [1, 1]} : vector<128x384xbf16> to vector<128x128xbf16>
    %34 = vector.extract_strided_slice %31 {offsets = [0, 256], sizes = [128, 128], strides = [1, 1]} : vector<128x384xbf16> to vector<128x128xbf16>
    %35 = tpu.iota {dimensions = array<i32: 0>} : vector<64x64xi32>
    %36 = tpu.iota {dimensions = array<i32: 1>} : vector<64x64xi32>
    %37 = arith.cmpi sge, %35, %36 : vector<64x64xi32>
    %cst_13 = arith.constant 0.000000e+00 : f32
    %cst_14 = arith.constant -1.000000e+30 : f32
    %38 = vector.broadcast %cst_13 : f32 to vector<64x64xf32>
    %39 = vector.broadcast %cst_14 : f32 to vector<64x64xf32>
    %40 = arith.select %37, %38, %39 : vector<64x64xi1>, vector<64x64xf32>
    %41 = vector.extract_strided_slice %32 {offsets = [0, 0], sizes = [64, 32], strides = [1, 1]} : vector<128x128xbf16> to vector<64x32xbf16>
    %42 = vector.extract_strided_slice %33 {offsets = [0, 0], sizes = [64, 32], strides = [1, 1]} : vector<128x128xbf16> to vector<64x32xbf16>
    %43 = vector.extract_strided_slice %34 {offsets = [0, 0], sizes = [64, 32], strides = [1, 1]} : vector<128x128xbf16> to vector<64x32xbf16>
    %cst_15 = arith.constant dense<0.000000e+00> : vector<64x64xf32>
    %44 = tpu.matmul %41, %42, %cst_15 {dimension_numbers = #tpu.dot_dimension_numbers<[1], [1], [0], [0], [0, 0, 1, 0], [], []>} : vector<64x32xbf16>, vector<64x32xbf16>, vector<64x64xf32> -> vector<64x64xf32>
    %45 = arith.addf %44, %40 : vector<64x64xf32>
    %cst_16 = arith.constant dense<0xFF800000> : vector<64xf32>
    %46 = vector.multi_reduction <maximumf>, %45, %cst_16 [1] : vector<64x64xf32> to vector<64xf32>
    %47 = vector.shape_cast %46 : vector<64xf32> to vector<64x1xf32>
    %48 = vector.broadcast %47 : vector<64x1xf32> to vector<64x64xf32>
    %49 = arith.subf %45, %48 : vector<64x64xf32>
    %50 = math.exp %49 : vector<64x64xf32>
    %cst_17 = arith.constant dense<0.000000e+00> : vector<64xf32>
    %51 = vector.multi_reduction <add>, %50, %cst_17 [1] : vector<64x64xf32> to vector<64xf32>
    %52 = vector.shape_cast %51 : vector<64xf32> to vector<64x1xf32>
    %53 = tpu.reciprocal %52 {approx = true} : vector<64x1xf32> -> vector<64x1xf32>
    %54 = vector.broadcast %53 : vector<64x1xf32> to vector<64x64xf32>
    %55 = arith.mulf %50, %54 : vector<64x64xf32>
    %56 = arith.truncf %55 : vector<64x64xf32> to vector<64x64xbf16>
    %cst_18 = arith.constant dense<0.000000e+00> : vector<64x32xf32>
    %57 = tpu.matmul %56, %43, %cst_18 {dimension_numbers = #tpu.dot_dimension_numbers<[1], [0], [0], [1], [0, 0, 1, 1], [], []>} : vector<64x64xbf16>, vector<64x32xbf16>, vector<64x32xf32> -> vector<64x32xf32>
    %58 = vector.extract_strided_slice %32 {offsets = [0, 32], sizes = [64, 32], strides = [1, 1]} : vector<128x128xbf16> to vector<64x32xbf16>
    %59 = vector.extract_strided_slice %33 {offsets = [0, 32], sizes = [64, 32], strides = [1, 1]} : vector<128x128xbf16> to vector<64x32xbf16>
    %60 = vector.extract_strided_slice %34 {offsets = [0, 32], sizes = [64, 32], strides = [1, 1]} : vector<128x128xbf16> to vector<64x32xbf16>
    %cst_19 = arith.constant dense<0.000000e+00> : vector<64x64xf32>
    %61 = tpu.matmul %58, %59, %cst_19 {dimension_numbers = #tpu.dot_dimension_numbers<[1], [1], [0], [0], [0, 0, 1, 0], [], []>} : vector<64x32xbf16>, vector<64x32xbf16>, vector<64x64xf32> -> vector<64x64xf32>
    %62 = arith.addf %61, %40 : vector<64x64xf32>
    %cst_20 = arith.constant dense<0xFF800000> : vector<64xf32>
    %63 = vector.multi_reduction <maximumf>, %62, %cst_20 [1] : vector<64x64xf32> to vector<64xf32>
    %64 = vector.shape_cast %63 : vector<64xf32> to vector<64x1xf32>
    %65 = vector.broadcast %64 : vector<64x1xf32> to vector<64x64xf32>
    %66 = arith.subf %62, %65 : vector<64x64xf32>
    %67 = math.exp %66 : vector<64x64xf32>
    %cst_21 = arith.constant dense<0.000000e+00> : vector<64xf32>
    %68 = vector.multi_reduction <add>, %67, %cst_21 [1] : vector<64x64xf32> to vector<64xf32>
    %69 = vector.shape_cast %68 : vector<64xf32> to vector<64x1xf32>
    %70 = tpu.reciprocal %69 {approx = true} : vector<64x1xf32> -> vector<64x1xf32>
    %71 = vector.broadcast %70 : vector<64x1xf32> to vector<64x64xf32>
    %72 = arith.mulf %67, %71 : vector<64x64xf32>
    %73 = arith.truncf %72 : vector<64x64xf32> to vector<64x64xbf16>
    %cst_22 = arith.constant dense<0.000000e+00> : vector<64x32xf32>
    %74 = tpu.matmul %73, %60, %cst_22 {dimension_numbers = #tpu.dot_dimension_numbers<[1], [0], [0], [1], [0, 0, 1, 1], [], []>} : vector<64x64xbf16>, vector<64x32xbf16>, vector<64x32xf32> -> vector<64x32xf32>
    %75 = vector.extract_strided_slice %32 {offsets = [0, 64], sizes = [64, 32], strides = [1, 1]} : vector<128x128xbf16> to vector<64x32xbf16>
    %76 = vector.extract_strided_slice %33 {offsets = [0, 64], sizes = [64, 32], strides = [1, 1]} : vector<128x128xbf16> to vector<64x32xbf16>
    %77 = vector.extract_strided_slice %34 {offsets = [0, 64], sizes = [64, 32], strides = [1, 1]} : vector<128x128xbf16> to vector<64x32xbf16>
    %cst_23 = arith.constant dense<0.000000e+00> : vector<64x64xf32>
    %78 = tpu.matmul %75, %76, %cst_23 {dimension_numbers = #tpu.dot_dimension_numbers<[1], [1], [0], [0], [0, 0, 1, 0], [], []>} : vector<64x32xbf16>, vector<64x32xbf16>, vector<64x64xf32> -> vector<64x64xf32>
    %79 = arith.addf %78, %40 : vector<64x64xf32>
    %cst_24 = arith.constant dense<0xFF800000> : vector<64xf32>
    %80 = vector.multi_reduction <maximumf>, %79, %cst_24 [1] : vector<64x64xf32> to vector<64xf32>
    %81 = vector.shape_cast %80 : vector<64xf32> to vector<64x1xf32>
    %82 = vector.broadcast %81 : vector<64x1xf32> to vector<64x64xf32>
    %83 = arith.subf %79, %82 : vector<64x64xf32>
    %84 = math.exp %83 : vector<64x64xf32>
    %cst_25 = arith.constant dense<0.000000e+00> : vector<64xf32>
    %85 = vector.multi_reduction <add>, %84, %cst_25 [1] : vector<64x64xf32> to vector<64xf32>
    %86 = vector.shape_cast %85 : vector<64xf32> to vector<64x1xf32>
    %87 = tpu.reciprocal %86 {approx = true} : vector<64x1xf32> -> vector<64x1xf32>
    %88 = vector.broadcast %87 : vector<64x1xf32> to vector<64x64xf32>
    %89 = arith.mulf %84, %88 : vector<64x64xf32>
    %90 = arith.truncf %89 : vector<64x64xf32> to vector<64x64xbf16>
    %cst_26 = arith.constant dense<0.000000e+00> : vector<64x32xf32>
    %91 = tpu.matmul %90, %77, %cst_26 {dimension_numbers = #tpu.dot_dimension_numbers<[1], [0], [0], [1], [0, 0, 1, 1], [], []>} : vector<64x64xbf16>, vector<64x32xbf16>, vector<64x32xf32> -> vector<64x32xf32>
    %92 = vector.extract_strided_slice %32 {offsets = [0, 96], sizes = [64, 32], strides = [1, 1]} : vector<128x128xbf16> to vector<64x32xbf16>
    %93 = vector.extract_strided_slice %33 {offsets = [0, 96], sizes = [64, 32], strides = [1, 1]} : vector<128x128xbf16> to vector<64x32xbf16>
    %94 = vector.extract_strided_slice %34 {offsets = [0, 96], sizes = [64, 32], strides = [1, 1]} : vector<128x128xbf16> to vector<64x32xbf16>
    %cst_27 = arith.constant dense<0.000000e+00> : vector<64x64xf32>
    %95 = tpu.matmul %92, %93, %cst_27 {dimension_numbers = #tpu.dot_dimension_numbers<[1], [1], [0], [0], [0, 0, 1, 0], [], []>} : vector<64x32xbf16>, vector<64x32xbf16>, vector<64x64xf32> -> vector<64x64xf32>
    %96 = arith.addf %95, %40 : vector<64x64xf32>
    %cst_28 = arith.constant dense<0xFF800000> : vector<64xf32>
    %97 = vector.multi_reduction <maximumf>, %96, %cst_28 [1] : vector<64x64xf32> to vector<64xf32>
    %98 = vector.shape_cast %97 : vector<64xf32> to vector<64x1xf32>
    %99 = vector.broadcast %98 : vector<64x1xf32> to vector<64x64xf32>
    %100 = arith.subf %96, %99 : vector<64x64xf32>
    %101 = math.exp %100 : vector<64x64xf32>
    %cst_29 = arith.constant dense<0.000000e+00> : vector<64xf32>
    %102 = vector.multi_reduction <add>, %101, %cst_29 [1] : vector<64x64xf32> to vector<64xf32>
    %103 = vector.shape_cast %102 : vector<64xf32> to vector<64x1xf32>
    %104 = tpu.reciprocal %103 {approx = true} : vector<64x1xf32> -> vector<64x1xf32>
    %105 = vector.broadcast %104 : vector<64x1xf32> to vector<64x64xf32>
    %106 = arith.mulf %101, %105 : vector<64x64xf32>
    %107 = arith.truncf %106 : vector<64x64xf32> to vector<64x64xbf16>
    %cst_30 = arith.constant dense<0.000000e+00> : vector<64x32xf32>
    %108 = tpu.matmul %107, %94, %cst_30 {dimension_numbers = #tpu.dot_dimension_numbers<[1], [0], [0], [1], [0, 0, 1, 1], [], []>} : vector<64x64xbf16>, vector<64x32xbf16>, vector<64x32xf32> -> vector<64x32xf32>
    %109 = tpu.concatenate %57, %74, %91, %108 in 1 : vector<64x32xf32>, vector<64x32xf32>, vector<64x32xf32>, vector<64x32xf32> -> vector<64x128xf32>
    %110 = vector.extract_strided_slice %32 {offsets = [64, 0], sizes = [64, 32], strides = [1, 1]} : vector<128x128xbf16> to vector<64x32xbf16>
    %111 = vector.extract_strided_slice %33 {offsets = [64, 0], sizes = [64, 32], strides = [1, 1]} : vector<128x128xbf16> to vector<64x32xbf16>
    %112 = vector.extract_strided_slice %34 {offsets = [64, 0], sizes = [64, 32], strides = [1, 1]} : vector<128x128xbf16> to vector<64x32xbf16>
    %cst_31 = arith.constant dense<0.000000e+00> : vector<64x64xf32>
    %113 = tpu.matmul %110, %111, %cst_31 {dimension_numbers = #tpu.dot_dimension_numbers<[1], [1], [0], [0], [0, 0, 1, 0], [], []>} : vector<64x32xbf16>, vector<64x32xbf16>, vector<64x64xf32> -> vector<64x64xf32>
    %114 = arith.addf %113, %40 : vector<64x64xf32>
    %cst_32 = arith.constant dense<0xFF800000> : vector<64xf32>
    %115 = vector.multi_reduction <maximumf>, %114, %cst_32 [1] : vector<64x64xf32> to vector<64xf32>
    %116 = vector.shape_cast %115 : vector<64xf32> to vector<64x1xf32>
    %117 = vector.broadcast %116 : vector<64x1xf32> to vector<64x64xf32>
    %118 = arith.subf %114, %117 : vector<64x64xf32>
    %119 = math.exp %118 : vector<64x64xf32>
    %cst_33 = arith.constant dense<0.000000e+00> : vector<64xf32>
    %120 = vector.multi_reduction <add>, %119, %cst_33 [1] : vector<64x64xf32> to vector<64xf32>
    %121 = vector.shape_cast %120 : vector<64xf32> to vector<64x1xf32>
    %122 = tpu.reciprocal %121 {approx = true} : vector<64x1xf32> -> vector<64x1xf32>
    %123 = vector.broadcast %122 : vector<64x1xf32> to vector<64x64xf32>
    %124 = arith.mulf %119, %123 : vector<64x64xf32>
    %125 = arith.truncf %124 : vector<64x64xf32> to vector<64x64xbf16>
    %cst_34 = arith.constant dense<0.000000e+00> : vector<64x32xf32>
    %126 = tpu.matmul %125, %112, %cst_34 {dimension_numbers = #tpu.dot_dimension_numbers<[1], [0], [0], [1], [0, 0, 1, 1], [], []>} : vector<64x64xbf16>, vector<64x32xbf16>, vector<64x32xf32> -> vector<64x32xf32>
    %127 = vector.extract_strided_slice %32 {offsets = [64, 32], sizes = [64, 32], strides = [1, 1]} : vector<128x128xbf16> to vector<64x32xbf16>
    %128 = vector.extract_strided_slice %33 {offsets = [64, 32], sizes = [64, 32], strides = [1, 1]} : vector<128x128xbf16> to vector<64x32xbf16>
    %129 = vector.extract_strided_slice %34 {offsets = [64, 32], sizes = [64, 32], strides = [1, 1]} : vector<128x128xbf16> to vector<64x32xbf16>
    %cst_35 = arith.constant dense<0.000000e+00> : vector<64x64xf32>
    %130 = tpu.matmul %127, %128, %cst_35 {dimension_numbers = #tpu.dot_dimension_numbers<[1], [1], [0], [0], [0, 0, 1, 0], [], []>} : vector<64x32xbf16>, vector<64x32xbf16>, vector<64x64xf32> -> vector<64x64xf32>
    %131 = arith.addf %130, %40 : vector<64x64xf32>
    %cst_36 = arith.constant dense<0xFF800000> : vector<64xf32>
    %132 = vector.multi_reduction <maximumf>, %131, %cst_36 [1] : vector<64x64xf32> to vector<64xf32>
    %133 = vector.shape_cast %132 : vector<64xf32> to vector<64x1xf32>
    %134 = vector.broadcast %133 : vector<64x1xf32> to vector<64x64xf32>
    %135 = arith.subf %131, %134 : vector<64x64xf32>
    %136 = math.exp %135 : vector<64x64xf32>
    %cst_37 = arith.constant dense<0.000000e+00> : vector<64xf32>
    %137 = vector.multi_reduction <add>, %136, %cst_37 [1] : vector<64x64xf32> to vector<64xf32>
    %138 = vector.shape_cast %137 : vector<64xf32> to vector<64x1xf32>
    %139 = tpu.reciprocal %138 {approx = true} : vector<64x1xf32> -> vector<64x1xf32>
    %140 = vector.broadcast %139 : vector<64x1xf32> to vector<64x64xf32>
    %141 = arith.mulf %136, %140 : vector<64x64xf32>
    %142 = arith.truncf %141 : vector<64x64xf32> to vector<64x64xbf16>
    %cst_38 = arith.constant dense<0.000000e+00> : vector<64x32xf32>
    %143 = tpu.matmul %142, %129, %cst_38 {dimension_numbers = #tpu.dot_dimension_numbers<[1], [0], [0], [1], [0, 0, 1, 1], [], []>} : vector<64x64xbf16>, vector<64x32xbf16>, vector<64x32xf32> -> vector<64x32xf32>
    %144 = vector.extract_strided_slice %32 {offsets = [64, 64], sizes = [64, 32], strides = [1, 1]} : vector<128x128xbf16> to vector<64x32xbf16>
    %145 = vector.extract_strided_slice %33 {offsets = [64, 64], sizes = [64, 32], strides = [1, 1]} : vector<128x128xbf16> to vector<64x32xbf16>
    %146 = vector.extract_strided_slice %34 {offsets = [64, 64], sizes = [64, 32], strides = [1, 1]} : vector<128x128xbf16> to vector<64x32xbf16>
    %cst_39 = arith.constant dense<0.000000e+00> : vector<64x64xf32>
    %147 = tpu.matmul %144, %145, %cst_39 {dimension_numbers = #tpu.dot_dimension_numbers<[1], [1], [0], [0], [0, 0, 1, 0], [], []>} : vector<64x32xbf16>, vector<64x32xbf16>, vector<64x64xf32> -> vector<64x64xf32>
    %148 = arith.addf %147, %40 : vector<64x64xf32>
    %cst_40 = arith.constant dense<0xFF800000> : vector<64xf32>
    %149 = vector.multi_reduction <maximumf>, %148, %cst_40 [1] : vector<64x64xf32> to vector<64xf32>
    %150 = vector.shape_cast %149 : vector<64xf32> to vector<64x1xf32>
    %151 = vector.broadcast %150 : vector<64x1xf32> to vector<64x64xf32>
    %152 = arith.subf %148, %151 : vector<64x64xf32>
    %153 = math.exp %152 : vector<64x64xf32>
    %cst_41 = arith.constant dense<0.000000e+00> : vector<64xf32>
    %154 = vector.multi_reduction <add>, %153, %cst_41 [1] : vector<64x64xf32> to vector<64xf32>
    %155 = vector.shape_cast %154 : vector<64xf32> to vector<64x1xf32>
    %156 = tpu.reciprocal %155 {approx = true} : vector<64x1xf32> -> vector<64x1xf32>
    %157 = vector.broadcast %156 : vector<64x1xf32> to vector<64x64xf32>
    %158 = arith.mulf %153, %157 : vector<64x64xf32>
    %159 = arith.truncf %158 : vector<64x64xf32> to vector<64x64xbf16>
    %cst_42 = arith.constant dense<0.000000e+00> : vector<64x32xf32>
    %160 = tpu.matmul %159, %146, %cst_42 {dimension_numbers = #tpu.dot_dimension_numbers<[1], [0], [0], [1], [0, 0, 1, 1], [], []>} : vector<64x64xbf16>, vector<64x32xbf16>, vector<64x32xf32> -> vector<64x32xf32>
    %161 = vector.extract_strided_slice %32 {offsets = [64, 96], sizes = [64, 32], strides = [1, 1]} : vector<128x128xbf16> to vector<64x32xbf16>
    %162 = vector.extract_strided_slice %33 {offsets = [64, 96], sizes = [64, 32], strides = [1, 1]} : vector<128x128xbf16> to vector<64x32xbf16>
    %163 = vector.extract_strided_slice %34 {offsets = [64, 96], sizes = [64, 32], strides = [1, 1]} : vector<128x128xbf16> to vector<64x32xbf16>
    %cst_43 = arith.constant dense<0.000000e+00> : vector<64x64xf32>
    %164 = tpu.matmul %161, %162, %cst_43 {dimension_numbers = #tpu.dot_dimension_numbers<[1], [1], [0], [0], [0, 0, 1, 0], [], []>} : vector<64x32xbf16>, vector<64x32xbf16>, vector<64x64xf32> -> vector<64x64xf32>
    %165 = arith.addf %164, %40 : vector<64x64xf32>
    %cst_44 = arith.constant dense<0xFF800000> : vector<64xf32>
    %166 = vector.multi_reduction <maximumf>, %165, %cst_44 [1] : vector<64x64xf32> to vector<64xf32>
    %167 = vector.shape_cast %166 : vector<64xf32> to vector<64x1xf32>
    %168 = vector.broadcast %167 : vector<64x1xf32> to vector<64x64xf32>
    %169 = arith.subf %165, %168 : vector<64x64xf32>
    %170 = math.exp %169 : vector<64x64xf32>
    %cst_45 = arith.constant dense<0.000000e+00> : vector<64xf32>
    %171 = vector.multi_reduction <add>, %170, %cst_45 [1] : vector<64x64xf32> to vector<64xf32>
    %172 = vector.shape_cast %171 : vector<64xf32> to vector<64x1xf32>
    %173 = tpu.reciprocal %172 {approx = true} : vector<64x1xf32> -> vector<64x1xf32>
    %174 = vector.broadcast %173 : vector<64x1xf32> to vector<64x64xf32>
    %175 = arith.mulf %170, %174 : vector<64x64xf32>
    %176 = arith.truncf %175 : vector<64x64xf32> to vector<64x64xbf16>
    %cst_46 = arith.constant dense<0.000000e+00> : vector<64x32xf32>
    %177 = tpu.matmul %176, %163, %cst_46 {dimension_numbers = #tpu.dot_dimension_numbers<[1], [0], [0], [1], [0, 0, 1, 1], [], []>} : vector<64x64xbf16>, vector<64x32xbf16>, vector<64x32xf32> -> vector<64x32xf32>
    %178 = tpu.concatenate %126, %143, %160, %177 in 1 : vector<64x32xf32>, vector<64x32xf32>, vector<64x32xf32>, vector<64x32xf32> -> vector<64x128xf32>
    %179 = tpu.concatenate %109, %178 in 0 : vector<64x128xf32>, vector<64x128xf32> -> vector<128x128xf32>
    %180 = arith.truncf %179 : vector<128x128xf32> to vector<128x128xbf16>
    %c0_47 = arith.constant 0 : index
    %c0_48 = arith.constant 0 : index
    %181 = vector.load %arg5[%c0_47, %c0_48] : memref<128x128xbf16, #tpu.memory_space<vmem>>, vector<128x128xbf16>
    %cst_49 = arith.constant dense<0.000000e+00> : vector<128x128xf32>
    %182 = tpu.matmul %180, %181, %cst_49 {dimension_numbers = #tpu.dot_dimension_numbers<[1], [0], [0], [1], [0, 0, 1, 1], [], []>} : vector<128x128xbf16>, vector<128x128xbf16>, vector<128x128xf32> -> vector<128x128xf32>
    %c0_50 = arith.constant 0 : index
    %c0_51 = arith.constant 0 : index
    %183 = vector.load %arg6[%c0_50, %c0_51] : memref<1x128xf32, #tpu.memory_space<vmem>>, vector<1x128xf32>
    %184 = vector.shape_cast %183 : vector<1x128xf32> to vector<128xf32>
    %185 = vector.shape_cast %184 : vector<128xf32> to vector<1x128xf32>
    %186 = vector.broadcast %185 : vector<1x128xf32> to vector<128x128xf32>
    %187 = arith.addf %182, %186 : vector<128x128xf32>
    %188 = arith.addf %1, %187 : vector<128x128xf32>
    %c0_52 = arith.constant 0 : index
    %c0_53 = arith.constant 0 : index
    %189 = vector.load %arg7[%c0_52, %c0_53] : memref<1x128xf32, #tpu.memory_space<vmem>>, vector<1x128xf32>
    %190 = vector.shape_cast %189 : vector<1x128xf32> to vector<128xf32>
    %c0_54 = arith.constant 0 : index
    %c0_55 = arith.constant 0 : index
    %191 = vector.load %arg8[%c0_54, %c0_55] : memref<1x128xf32, #tpu.memory_space<vmem>>, vector<1x128xf32>
    %192 = vector.shape_cast %191 : vector<1x128xf32> to vector<128xf32>
    %cst_56 = arith.constant dense<0.000000e+00> : vector<128xf32>
    %193 = vector.multi_reduction <add>, %188, %cst_56 [1] : vector<128x128xf32> to vector<128xf32>
    %194 = vector.shape_cast %193 : vector<128xf32> to vector<128x1xf32>
    %cst_57 = arith.constant 1.280000e+02 : f32
    %195 = vector.broadcast %cst_57 : f32 to vector<128x1xf32>
    %196 = arith.divf %194, %195 : vector<128x1xf32>
    %197 = vector.broadcast %196 : vector<128x1xf32> to vector<128x128xf32>
    %198 = arith.subf %188, %197 : vector<128x128xf32>
    %199 = arith.mulf %198, %198 : vector<128x128xf32>
    %cst_58 = arith.constant dense<0.000000e+00> : vector<128xf32>
    %200 = vector.multi_reduction <add>, %199, %cst_58 [1] : vector<128x128xf32> to vector<128xf32>
    %201 = vector.shape_cast %200 : vector<128xf32> to vector<128x1xf32>
    %cst_59 = arith.constant 1.280000e+02 : f32
    %202 = vector.broadcast %cst_59 : f32 to vector<128x1xf32>
    %203 = arith.divf %201, %202 : vector<128x1xf32>
    %cst_60 = arith.constant 9.99999974E-6 : f32
    %204 = vector.broadcast %cst_60 : f32 to vector<128x1xf32>
    %205 = arith.addf %203, %204 : vector<128x1xf32>
    %206 = math.rsqrt %205 : vector<128x1xf32>
    %207 = vector.broadcast %206 : vector<128x1xf32> to vector<128x128xf32>
    %208 = arith.mulf %198, %207 : vector<128x128xf32>
    %209 = vector.shape_cast %190 : vector<128xf32> to vector<1x128xf32>
    %210 = vector.broadcast %209 : vector<1x128xf32> to vector<128x128xf32>
    %211 = arith.mulf %208, %210 : vector<128x128xf32>
    %212 = vector.shape_cast %192 : vector<128xf32> to vector<1x128xf32>
    %213 = vector.broadcast %212 : vector<1x128xf32> to vector<128x128xf32>
    %214 = arith.addf %211, %213 : vector<128x128xf32>
    %215 = arith.truncf %214 : vector<128x128xf32> to vector<128x128xbf16>
    %c0_61 = arith.constant 0 : index
    %c0_62 = arith.constant 0 : index
    %216 = vector.load %arg9[%c0_61, %c0_62] : memref<128x512xbf16, #tpu.memory_space<vmem>>, vector<128x512xbf16>
    %cst_63 = arith.constant dense<0.000000e+00> : vector<128x512xf32>
    %217 = tpu.matmul %215, %216, %cst_63 {dimension_numbers = #tpu.dot_dimension_numbers<[1], [0], [0], [1], [0, 0, 1, 1], [], []>} : vector<128x128xbf16>, vector<128x512xbf16>, vector<128x512xf32> -> vector<128x512xf32>
    %c0_64 = arith.constant 0 : index
    %c0_65 = arith.constant 0 : index
    %218 = vector.load %arg10[%c0_64, %c0_65] : memref<1x512xf32, #tpu.memory_space<vmem>>, vector<1x512xf32>
    %219 = vector.shape_cast %218 : vector<1x512xf32> to vector<512xf32>
    %220 = vector.shape_cast %219 : vector<512xf32> to vector<1x512xf32>
    %221 = vector.broadcast %220 : vector<1x512xf32> to vector<128x512xf32>
    %222 = arith.addf %217, %221 : vector<128x512xf32>
    %cst_66 = arith.constant 0.000000e+00 : f32
    %223 = vector.broadcast %cst_66 : f32 to vector<128x512xf32>
    %224 = arith.maximumf %222, %223 : vector<128x512xf32>
    %225 = arith.truncf %224 : vector<128x512xf32> to vector<128x512xbf16>
    %c0_67 = arith.constant 0 : index
    %c0_68 = arith.constant 0 : index
    %226 = vector.load %arg11[%c0_67, %c0_68] : memref<512x128xbf16, #tpu.memory_space<vmem>>, vector<512x128xbf16>
    %cst_69 = arith.constant dense<0.000000e+00> : vector<128x128xf32>
    %227 = tpu.matmul %225, %226, %cst_69 {dimension_numbers = #tpu.dot_dimension_numbers<[1], [0], [0], [1], [0, 0, 1, 1], [], []>} : vector<128x512xbf16>, vector<512x128xbf16>, vector<128x128xf32> -> vector<128x128xf32>
    %c0_70 = arith.constant 0 : index
    %c0_71 = arith.constant 0 : index
    %228 = vector.load %arg12[%c0_70, %c0_71] : memref<1x128xf32, #tpu.memory_space<vmem>>, vector<1x128xf32>
    %229 = vector.shape_cast %228 : vector<1x128xf32> to vector<128xf32>
    %230 = vector.shape_cast %229 : vector<128xf32> to vector<1x128xf32>
    %231 = vector.broadcast %230 : vector<1x128xf32> to vector<128x128xf32>
    %232 = arith.addf %227, %231 : vector<128x128xf32>
    %233 = arith.addf %188, %232 : vector<128x128xf32>
    %234 = vector.shape_cast %233 : vector<128x128xf32> to vector<2x64x128xf32>
    %c0_72 = arith.constant 0 : index
    %c0_73 = arith.constant 0 : index
    %c0_74 = arith.constant 0 : index
    %235 = vector.load %arg13[%c0_72, %c0_73, %c0_74] : memref<2x64x128xf32, #tpu.memory_space<vmem>>, vector<2x64x128xf32>
    tpu.vector_store %arg13[%c0_72, %c0_73, %c0_74], %234 {strides = array<i32>} : memref<2x64x128xf32, #tpu.memory_space<vmem>>, vector<2x64x128xf32>,
    return
  }
  func.func @transform_0(%arg0: i32) -> (i32, i32, i32) {
    %c0_i32 = arith.constant 0 : i32
    %c0_i32_0 = arith.constant 0 : i32
    %c0_i32_1 = arith.constant 0 : i32
    %c0_i32_2 = arith.constant 0 : i32
    return %c0_i32, %c0_i32_0, %c0_i32_1 : i32, i32, i32
  }
  func.func @transform_1(%arg0: i32) -> (i32, i32) {
    %c0_i32 = arith.constant 0 : i32
    %c0_i32_0 = arith.constant 0 : i32
    %c0_i32_1 = arith.constant 0 : i32
    return %c0_i32, %c0_i32_0 : i32, i32
  }
  func.func @transform_2(%arg0: i32) -> (i32, i32) {
    %c0_i32 = arith.constant 0 : i32
    %c0_i32_0 = arith.constant 0 : i32
    %c0_i32_1 = arith.constant 0 : i32
    return %c0_i32, %c0_i32_0 : i32, i32
  }
  func.func @transform_3(%arg0: i32) -> (i32, i32) {
    %c0_i32 = arith.constant 0 : i32
    %c0_i32_0 = arith.constant 0 : i32
    %c0_i32_1 = arith.constant 0 : i32
    return %c0_i32, %c0_i32_0 : i32, i32
  }
  func.func @transform_4(%arg0: i32) -> (i32, i32) {
    %c0_i32 = arith.constant 0 : i32
    %c0_i32_0 = arith.constant 0 : i32
    %c0_i32_1 = arith.constant 0 : i32
    return %c0_i32, %c0_i32_0 : i32, i32
  }
  func.func @transform_5(%arg0: i32) -> (i32, i32) {
    %c0_i32 = arith.constant 0 : i32
    %c0_i32_0 = arith.constant 0 : i32
    %c0_i32_1 = arith.constant 0 : i32
    return %c0_i32, %c0_i32_0 : i32, i32
  }
  func.func @transform_6(%arg0: i32) -> (i32, i32) {
    %c0_i32 = arith.constant 0 : i32
    %c0_i32_0 = arith.constant 0 : i32
    %c0_i32_1 = arith.constant 0 : i32
    return %c0_i32, %c0_i32_0 : i32, i32
  }
  func.func @transform_7(%arg0: i32) -> (i32, i32) {
    %c0_i32 = arith.constant 0 : i32
    %c0_i32_0 = arith.constant 0 : i32
    %c0_i32_1 = arith.constant 0 : i32
    return %c0_i32, %c0_i32_0 : i32, i32
  }
  func.func @transform_8(%arg0: i32) -> (i32, i32) {
    %c0_i32 = arith.constant 0 : i32
    %c0_i32_0 = arith.constant 0 : i32
    %c0_i32_1 = arith.constant 0 : i32
    return %c0_i32, %c0_i32_0 : i32, i32
  }
  func.func @transform_9(%arg0: i32) -> (i32, i32) {
    %c0_i32 = arith.constant 0 : i32
    %c0_i32_0 = arith.constant 0 : i32
    %c0_i32_1 = arith.constant 0 : i32
    return %c0_i32, %c0_i32_0 : i32, i32
  }
  func.func @transform_10(%arg0: i32) -> (i32, i32) {
    %c0_i32 = arith.constant 0 : i32
    %c0_i32_0 = arith.constant 0 : i32
    %c0_i32_1 = arith.constant 0 : i32
    return %c0_i32, %c0_i32_0 : i32, i32
  }
  func.func @transform_11(%arg0: i32) -> (i32, i32) {
    %c0_i32 = arith.constant 0 : i32
    %c0_i32_0 = arith.constant 0 : i32
    %c0_i32_1 = arith.constant 0 : i32
    return %c0_i32, %c0_i32_0 : i32, i32
  }
  func.func @transform_12(%arg0: i32) -> (i32, i32, i32) {
    %c0_i32 = arith.constant 0 : i32
    %c0_i32_0 = arith.constant 0 : i32
    %c0_i32_1 = arith.constant 0 : i32
    %c0_i32_2 = arith.constant 0 : i32
    return %c0_i32, %c0_i32_0, %c0_i32_1 : i32, i32, i32
  }
}

</mosaic_0001>

<llo_original>
// kernel: transformer_block.1
$region0: #{transformer_block.1}
  #allocation0 [shape = 'u32[]', space=smem, size = 0x4, offset = 0x4, fixed_abs, tag = 'smem constant byte address 0x4 - core index']
  #allocation1 [shape = 'u32[144,128]{1,0:T(1,128)}', space=vmem, size = 0x12000, scoped, tag = 'internal scratch']
  %s0 = inlined_call_operand.hbm [shape: f32[2,64,128], index: 0, kind: input, shape index: {}]
  %s1 = inlined_call_operand.vmem [shape: f32[1,128], index: 1, kind: input, shape index: {}]
  %s2 = inlined_call_operand.vmem [shape: f32[1,128], index: 2, kind: input, shape index: {}]
  %s3 = inlined_call_operand.hbm [shape: bf16[128,384], index: 3, kind: input, shape index: {}]
  %s4 = inlined_call_operand.hbm [shape: bf16[128,128], index: 4, kind: input, shape index: {}]
  %s5 = inlined_call_operand.vmem [shape: f32[1,128], index: 5, kind: input, shape index: {}]
  %s6 = inlined_call_operand.vmem [shape: f32[1,128], index: 6, kind: input, shape index: {}]
  %s7 = inlined_call_operand.vmem [shape: f32[1,128], index: 7, kind: input, shape index: {}]
  %s8 = inlined_call_operand.hbm [shape: bf16[128,512], index: 8, kind: input, shape index: {}]
  %s9 = inlined_call_operand.hbm [shape: f32[1,512], index: 9, kind: input, shape index: {}]
  %s10 = inlined_call_operand.hbm [shape: bf16[512,128], index: 10, kind: input, shape index: {}]
  %s11 = inlined_call_operand.hbm [shape: f32[1,128], index: 11, kind: input, shape index: {}]
  %s12 = inlined_call_operand.hbm [shape: f32[2,64,128], index: 12, kind: output, shape index: {}]
  %s13 = sld [smem:[#allocation0]]
  $region86: #{transformer_block.1} parent=0
    _
  %s15 = ssub.s32 1, %s13
  %s16 = scalar_select 0, %s15, %s13
  $region1: #{transformer_block.1} parent=0
    #allocation2 [shape = 'u8[65536]{0}', space=vmem, size = 0x10000, scoped, tag = 'input window, operand 0, single buffered']
    #allocation3 [shape = 's32[1]{0}', space=sflag, size = 0x4, scoped, tag = 'scoped memory for transformer_block.1']
    #allocation4 [shape = 's32[1]{0}', space=sflag, size = 0x4, scoped, tag = 'scoped memory for transformer_block.1']
    #allocation5 [shape = 'u8[98304]{0}', space=vmem, size = 0x18000, scoped, tag = 'input window, operand 3, single buffered']
    #allocation6 [shape = 's32[1]{0}', space=sflag, size = 0x4, scoped, tag = 'scoped memory for transformer_block.1']
    #allocation7 [shape = 'u8[32768]{0}', space=vmem, size = 0x8000, scoped, tag = 'input window, operand 4, single buffered']
    #allocation8 [shape = 'u8[131072]{0}', space=vmem, size = 0x20000, scoped, tag = 'input window, operand 8, single buffered']
    #allocation9 [shape = 's32[1]{0}', space=sflag, size = 0x4, scoped, tag = 'scoped memory for transformer_block.1']
    #allocation10 [shape = 'u8[2048]{0}', space=vmem, size = 0x800, scoped, tag = 'input window, operand 9, single buffered']
    #allocation11 [shape = 'u8[131072]{0}', space=vmem, size = 0x20000, scoped, tag = 'input window, operand 10, single buffered']
    #allocation12 [shape = 's32[1]{0}', space=sflag, size = 0x4, scoped, tag = 'scoped memory for transformer_block.1']
    #allocation13 [shape = 'u8[512]{0}', space=vmem, size = 0x400, scoped, tag = 'input window, operand 11, single buffered']
    #allocation14 [shape = 'u8[65536]{0}', space=vmem, size = 0x10000, scoped, tag = 'output window, operand 0, single buffered']
    %17 = vsyncpa [#allocation3], 0
    %18 = vsyncpa [#allocation6], 0
    %19 = vsyncpa [#allocation9], 0
    %20 = vsyncpa [#allocation12], 0
    %21 = vsyncpa [#allocation4], 0
    // Predicated region
    $region2: #{transformer_block.1} parent=1 // pred_check
      _
    $region3: #{transformer_block.1} parent=1 // pred_check_branch
      %23 = sbr.rel (0) target = $region5
    $region4: #{transformer_block.1} parent=1 // pred_region
      %s25 = ssub.s32 2048, 2048
      %26 = vsyncadd [#allocation3], %s25
      %s27 = sshll.u32 [#allocation2], 4
      %s28 = int_to_ptr.vmem [resolvable:$true] %s27
      %33 = dma.hbm_to_vmem [thread:$0]  %s0, 2048, %s28, [#allocation3], 128, 128, 8
    $region5: #{transformer_block.1} parent=1 // pred_fallthru
      _
    // Predicated region
    $region6: #{transformer_block.1} parent=1 // pred_check
      _
    $region7: #{transformer_block.1} parent=1 // pred_check_branch
      %35 = sbr.rel (0) target = $region9
    $region8: #{transformer_block.1} parent=1 // pred_region
      _
    $region9: #{transformer_block.1} parent=1 // pred_fallthru
      _
    // Predicated region
    $region10: #{transformer_block.1} parent=1 // pred_check
      _
    $region11: #{transformer_block.1} parent=1 // pred_check_branch
      %37 = sbr.rel (0) target = $region13
    $region12: #{transformer_block.1} parent=1 // pred_region
      _
    $region13: #{transformer_block.1} parent=1 // pred_fallthru
      _
    // Predicated region
    $region14: #{transformer_block.1} parent=1 // pred_check
      _
    $region15: #{transformer_block.1} parent=1 // pred_check_branch
      %39 = sbr.rel (0) target = $region17
    $region16: #{transformer_block.1} parent=1 // pred_region
      %s41 = ssub.s32 3072, 3072
      %42 = vsyncadd [#allocation6], %s41
      %s43 = sshll.u32 [#allocation5], 4
      %s44 = int_to_ptr.vmem [resolvable:$true] %s43
      %49 = dma.hbm_to_vmem [thread:$0]  %s3, 3072, %s44, [#allocation6], 192, 192, 12
    $region17: #{transformer_block.1} parent=1 // pred_fallthru
      _
    // Predicated region
    $region18: #{transformer_block.1} parent=1 // pred_check
      _
    $region19: #{transformer_block.1} parent=1 // pred_check_branch
      %51 = sbr.rel (0) target = $region21
    $region20: #{transformer_block.1} parent=1 // pred_region
      %s53 = ssub.s32 1024, 1024
      %54 = vsyncadd [#allocation6], %s53
      %s55 = sshll.u32 [#allocation7], 4
      %s56 = int_to_ptr.vmem [resolvable:$true] %s55
      %61 = dma.hbm_to_vmem [thread:$0]  %s4, 1024, %s56, [#allocation6], 64, 64, 4
    $region21: #{transformer_block.1} parent=1 // pred_fallthru
      _
    // Predicated region
    $region22: #{transformer_block.1} parent=1 // pred_check
      _
    $region23: #{transformer_block.1} parent=1 // pred_check_branch
      %63 = sbr.rel (0) target = $region25
    $region24: #{transformer_block.1} parent=1 // pred_region
      _
    $region25: #{transformer_block.1} parent=1 // pred_fallthru
      _
    // Predicated region
    $region26: #{transformer_block.1} parent=1 // pred_check
      _
    $region27: #{transformer_block.1} parent=1 // pred_check_branch
      %65 = sbr.rel (0) target = $region29
    $region28: #{transformer_block.1} parent=1 // pred_region
      _
    $region29: #{transformer_block.1} parent=1 // pred_fallthru
      _
    // Predicated region
    $region30: #{transformer_block.1} parent=1 // pred_check
      _
    $region31: #{transformer_block.1} parent=1 // pred_check_branch
      %67 = sbr.rel (0) target = $region33
    $region32: #{transformer_block.1} parent=1 // pred_region
      _
    $region33: #{transformer_block.1} parent=1 // pred_fallthru
      _
    // Predicated region
    $region34: #{transformer_block.1} parent=1 // pred_check
      _
    $region35: #{transformer_block.1} parent=1 // pred_check_branch
      %69 = sbr.rel (0) target = $region37
    $region36: #{transformer_block.1} parent=1 // pred_region
      %s71 = ssub.s32 4096, 4096
      %72 = vsyncadd [#allocation9], %s71
      %s73 = sshll.u32 [#allocation8], 4
      %s74 = int_to_ptr.vmem [resolvable:$true] %s73
      %79 = dma.hbm_to_vmem [thread:$0]  %s8, 4096, %s74, [#allocation9], 256, 256, 16
    $region37: #{transformer_block.1} parent=1 // pred_fallthru
      _
    // Predicated region
    $region38: #{transformer_block.1} parent=1 // pred_check
      _
    $region39: #{transformer_block.1} parent=1 // pred_check_branch
      %81 = sbr.rel (0) target = $region41
    $region40: #{transformer_block.1} parent=1 // pred_region
      %s83 = ssub.s32 64, 64
      %84 = vsyncadd [#allocation9], %s83
      %s86 = sshll.u32 [#allocation10], 4
      %s87 = int_to_ptr.vmem [resolvable:$true] %s86
      %89 = dma.hbm_to_vmem [thread:$0]  %s9, 64, %s87, [#allocation9]
    $region41: #{transformer_block.1} parent=1 // pred_fallthru
      _
    // Predicated region
    $region42: #{transformer_block.1} parent=1 // pred_check
      _
    $region43: #{transformer_block.1} parent=1 // pred_check_branch
      %91 = sbr.rel (0) target = $region45
    $region44: #{transformer_block.1} parent=1 // pred_region
      %s93 = ssub.s32 4096, 4096
      %94 = vsyncadd [#allocation12], %s93
      %s95 = sshll.u32 [#allocation11], 4
      %s96 = int_to_ptr.vmem [resolvable:$true] %s95
      %101 = dma.hbm_to_vmem [thread:$0]  %s10, 4096, %s96, [#allocation12], 64, 64, 4
    $region45: #{transformer_block.1} parent=1 // pred_fallthru
      _
    // Predicated region
    $region46: #{transformer_block.1} parent=1 // pred_check
      _
    $region47: #{transformer_block.1} parent=1 // pred_check_branch
      %103 = sbr.rel (0) target = $region49
    $region48: #{transformer_block.1} parent=1 // pred_region
      %s105 = ssub.s32 16, 16
      %106 = vsyncadd [#allocation12], %s105
      %s108 = sshll.u32 [#allocation13], 4
      %s109 = int_to_ptr.vmem [resolvable:$true] %s108
      %111 = dma.hbm_to_vmem [thread:$0]  %s11, 16, %s109, [#allocation12]
    $region49: #{transformer_block.1} parent=1 // pred_fallthru
      _
    // Predicated region
    $region50: #{transformer_block.1} parent=1 // pred_check
      _
    $region51: #{transformer_block.1} parent=1 // pred_check_branch
      %113 = sbr.rel (0) target = $region53
    $region52: #{transformer_block.1} parent=1 // pred_region
      %114 = dma.done [#allocation3], 2048
    $region53: #{transformer_block.1} parent=1 // pred_fallthru
      _
    // Predicated region
    $region54: #{transformer_block.1} parent=1 // pred_check
      _
    $region55: #{transformer_block.1} parent=1 // pred_check_branch
      %116 = sbr.rel (0) target = $region57
    $region56: #{transformer_block.1} parent=1 // pred_region
      %117 = dma.done [#allocation6], 3072
    $region57: #{transformer_block.1} parent=1 // pred_fallthru
      _
    // Predicated region
    $region58: #{transformer_block.1} parent=1 // pred_check
      _
    $region59: #{transformer_block.1} parent=1 // pred_check_branch
      %119 = sbr.rel (0) target = $region61
    $region60: #{transformer_block.1} parent=1 // pred_region
      %120 = dma.done [#allocation6], 1024
    $region61: #{transformer_block.1} parent=1 // pred_fallthru
      _
    // Predicated region
    $region62: #{transformer_block.1} parent=1 // pred_check
      _
    $region63: #{transformer_block.1} parent=1 // pred_check_branch
      %122 = sbr.rel (0) target = $region65
    $region64: #{transformer_block.1} parent=1 // pred_region
      %123 = dma.done [#allocation9], 4096
    $region65: #{transformer_block.1} parent=1 // pred_fallthru
      _
    // Predicated region
    $region66: #{transformer_block.1} parent=1 // pred_check
      _
    $region67: #{transformer_block.1} parent=1 // pred_check_branch
      %125 = sbr.rel (0) target = $region69
    $region68: #{transformer_block.1} parent=1 // pred_region
      %126 = dma.done [#allocation9], 64
    $region69: #{transformer_block.1} parent=1 // pred_fallthru
      _
    // Predicated region
    $region70: #{transformer_block.1} parent=1 // pred_check
      _
    $region71: #{transformer_block.1} parent=1 // pred_check_branch
      %128 = sbr.rel (0) target = $region73
    $region72: #{transformer_block.1} parent=1 // pred_region
      %129 = dma.done [#allocation12], 4096
    $region73: #{transformer_block.1} parent=1 // pred_fallthru
      _
    // Predicated region
    $region74: #{transformer_block.1} parent=1 // pred_check
      _
    $region75: #{transformer_block.1} parent=1 // pred_check_branch
      %131 = sbr.rel (0) target = $region77
    $region76: #{transformer_block.1} parent=1 // pred_region
      %132 = dma.done [#allocation12], 16
    $region77: #{transformer_block.1} parent=1 // pred_fallthru
      _
    %v134 = vld [vmem:[#allocation2] sm:$0xff]
    %v135 = vld [vmem:[#allocation2 + $0x8] sm:$0xff]
    %v136 = vld [vmem:[#allocation2 + $0x10] sm:$0xff]
    %v137 = vld [vmem:[#allocation2 + $0x18] sm:$0xff]
    %v138 = vld [vmem:[#allocation2 + $0x20] sm:$0xff]
    %v139 = vld [vmem:[#allocation2 + $0x28] sm:$0xff]
    %v140 = vld [vmem:[#allocation2 + $0x30] sm:$0xff]
    %v141 = vld [vmem:[#allocation2 + $0x38] sm:$0xff]
    %v142 = vld [vmem:[#allocation2 + $0x40] sm:$0xff]
    %v143 = vld [vmem:[#allocation2 + $0x48] sm:$0xff]
    %v144 = vld [vmem:[#allocation2 + $0x50] sm:$0xff]
    %v145 = vld [vmem:[#allocation2 + $0x58] sm:$0xff]
    %v146 = vld [vmem:[#allocation2 + $0x60] sm:$0xff]
    %v147 = vld [vmem:[#allocation2 + $0x68] sm:$0xff]
    %v148 = vld [vmem:[#allocation2 + $0x70] sm:$0xff]
    %v149 = vld [vmem:[#allocation2 + $0x78] sm:$0xff]
    %v150 = vld [vmem:[%s1] sm:$0x1]
    %v151 = vld [vmem:[%s2] sm:$0x1]
    %152 = vadd.xlane.f32.xlu0 %v134
    %v153 = vpop.xlane.xlu0 %152
    %154 = vadd.xlane.f32.xlu0 %v135
    %v155 = vpop.xlane.xlu0 %154
    %156 = vadd.xlane.f32.xlu0 %v136
    %v157 = vpop.xlane.xlu0 %156
    %158 = vadd.xlane.f32.xlu0 %v137
    %v159 = vpop.xlane.xlu0 %158
    %160 = vadd.xlane.f32.xlu0 %v138
    %v161 = vpop.xlane.xlu0 %160
    %162 = vadd.xlane.f32.xlu0 %v139
    %v163 = vpop.xlane.xlu0 %162
    %164 = vadd.xlane.f32.xlu0 %v140
    %v165 = vpop.xlane.xlu0 %164
    %166 = vadd.xlane.f32.xlu0 %v141
    %v167 = vpop.xlane.xlu0 %166
    %168 = vadd.xlane.f32.xlu0 %v142
    %v169 = vpop.xlane.xlu0 %168
    %170 = vadd.xlane.f32.xlu0 %v143
    %v171 = vpop.xlane.xlu0 %170
    %172 = vadd.xlane.f32.xlu0 %v144
    %v173 = vpop.xlane.xlu0 %172
    %174 = vadd.xlane.f32.xlu0 %v145
    %v175 = vpop.xlane.xlu0 %174
    %176 = vadd.xlane.f32.xlu0 %v146
    %v177 = vpop.xlane.xlu0 %176
    %178 = vadd.xlane.f32.xlu0 %v147
    %v179 = vpop.xlane.xlu0 %178
    %180 = vadd.xlane.f32.xlu0 %v148
    %v181 = vpop.xlane.xlu0 %180
    %182 = vadd.xlane.f32.xlu0 %v149
    %v183 = vpop.xlane.xlu0 %182
    %v184 = vrcp.pop 128.0
    %v185 = vmul.f32 %v153, %v184
    %v186 = vmul.f32 %v155, %v184
    %v187 = vmul.f32 %v157, %v184
    %v188 = vmul.f32 %v159, %v184
    %v189 = vmul.f32 %v161, %v184
    %v190 = vmul.f32 %v163, %v184
    %v191 = vmul.f32 %v165, %v184
    %v192 = vmul.f32 %v167, %v184
    %v193 = vmul.f32 %v169, %v184
    %v194 = vmul.f32 %v171, %v184
    %v195 = vmul.f32 %v173, %v184
    %v196 = vmul.f32 %v175, %v184
    %v197 = vmul.f32 %v177, %v184
    %v198 = vmul.f32 %v179, %v184
    %v199 = vmul.f32 %v181, %v184
    %v200 = vmul.f32 %v183, %v184
    %v201 = vsub.f32 %v134, %v185
    %v202 = vsub.f32 %v135, %v186
    %v203 = vsub.f32 %v136, %v187
    %v204 = vsub.f32 %v137, %v188
    %v205 = vsub.f32 %v138, %v189
    %v206 = vsub.f32 %v139, %v190
    %v207 = vsub.f32 %v140, %v191
    %v208 = vsub.f32 %v141, %v192
    %v209 = vsub.f32 %v142, %v193
    %v210 = vsub.f32 %v143, %v194
    %v211 = vsub.f32 %v144, %v195
    %v212 = vsub.f32 %v145, %v196
    %v213 = vsub.f32 %v146, %v197
    %v214 = vsub.f32 %v147, %v198
    %v215 = vsub.f32 %v148, %v199
    %v216 = vsub.f32 %v149, %v200
    %v217 = vmul.f32 %v201, %v201
    %v218 = vmul.f32 %v202, %v202
    %v219 = vmul.f32 %v203, %v203
    %v220 = vmul.f32 %v204, %v204
    %v221 = vmul.f32 %v205, %v205
    %v222 = vmul.f32 %v206, %v206
    %v223 = vmul.f32 %v207, %v207
    %v224 = vmul.f32 %v208, %v208
    %v225 = vmul.f32 %v209, %v209
    %v226 = vmul.f32 %v210, %v210
    %v227 = vmul.f32 %v211, %v211
    %v228 = vmul.f32 %v212, %v212
    %v229 = vmul.f32 %v213, %v213
    %v230 = vmul.f32 %v214, %v214
    %v231 = vmul.f32 %v215, %v215
    %v232 = vmul.f32 %v216, %v216
    %233 = vadd.xlane.f32.xlu0 %v217
    %v234 = vpop.xlane.xlu0 %233
    %235 = vadd.xlane.f32.xlu0 %v218
    %v236 = vpop.xlane.xlu0 %235
    %237 = vadd.xlane.f32.xlu0 %v219
    %v238 = vpop.xlane.xlu0 %237
    %239 = vadd.xlane.f32.xlu0 %v220
    %v240 = vpop.xlane.xlu0 %239
    %241 = vadd.xlane.f32.xlu0 %v221
    %v242 = vpop.xlane.xlu0 %241
    %243 = vadd.xlane.f32.xlu0 %v222
    %v244 = vpop.xlane.xlu0 %243
    %245 = vadd.xlane.f32.xlu0 %v223
    %v246 = vpop.xlane.xlu0 %245
    %247 = vadd.xlane.f32.xlu0 %v224
    %v248 = vpop.xlane.xlu0 %247
    %249 = vadd.xlane.f32.xlu0 %v225
    %v250 = vpop.xlane.xlu0 %249
    %251 = vadd.xlane.f32.xlu0 %v226
    %v252 = vpop.xlane.xlu0 %251
    %253 = vadd.xlane.f32.xlu0 %v227
    %v254 = vpop.xlane.xlu0 %253
    %255 = vadd.xlane.f32.xlu0 %v228
    %v256 = vpop.xlane.xlu0 %255
    %257 = vadd.xlane.f32.xlu0 %v229
    %v258 = vpop.xlane.xlu0 %257
    %259 = vadd.xlane.f32.xlu0 %v230
    %v260 = vpop.xlane.xlu0 %259
    %261 = vadd.xlane.f32.xlu0 %v231
    %v262 = vpop.xlane.xlu0 %261
    %263 = vadd.xlane.f32.xlu0 %v232
    %v264 = vpop.xlane.xlu0 %263
    %v265 = vmul.f32 %v234, %v184
    %v266 = vmul.f32 %v236, %v184
    %v267 = vmul.f32 %v238, %v184
    %v268 = vmul.f32 %v240, %v184
    %v269 = vmul.f32 %v242, %v184
    %v270 = vmul.f32 %v244, %v184
    %v271 = vmul.f32 %v246, %v184
    %v272 = vmul.f32 %v248, %v184
    %v273 = vmul.f32 %v250, %v184
    %v274 = vmul.f32 %v252, %v184
    %v275 = vmul.f32 %v254, %v184
    %v276 = vmul.f32 %v256, %v184
    %v277 = vmul.f32 %v258, %v184
    %v278 = vmul.f32 %v260, %v184
    %v279 = vmul.f32 %v262, %v184
    %v280 = vmul.f32 %v264, %v184
    %v281 = vadd.f32 %v265, 1e-05
    %v282 = vadd.f32 %v266, 1e-05
    %v283 = vadd.f32 %v267, 1e-05
    %v284 = vadd.f32 %v268, 1e-05
    %v285 = vadd.f32 %v269, 1e-05
    %v286 = vadd.f32 %v270, 1e-05
    %v287 = vadd.f32 %v271, 1e-05
    %v288 = vadd.f32 %v272, 1e-05
    %v289 = vadd.f32 %v273, 1e-05
    %v290 = vadd.f32 %v274, 1e-05
    %v291 = vadd.f32 %v275, 1e-05
    %v292 = vadd.f32 %v276, 1e-05
    %v293 = vadd.f32 %v277, 1e-05
    %v294 = vadd.f32 %v278, 1e-05
    %v295 = vadd.f32 %v279, 1e-05
    %v296 = vadd.f32 %v280, 1e-05
    %v297 = vrsqrt.pop %v281
    %v298 = vrsqrt.pop %v282
    %v299 = vrsqrt.pop %v283
    %v300 = vrsqrt.pop %v284
    %v301 = vrsqrt.pop %v285
    %v302 = vrsqrt.pop %v286
    %v303 = vrsqrt.pop %v287
    %v304 = vrsqrt.pop %v288
    %v305 = vrsqrt.pop %v289
    %v306 = vrsqrt.pop %v290
    %v307 = vrsqrt.pop %v291
    %v308 = vrsqrt.pop %v292
    %v309 = vrsqrt.pop %v293
    %v310 = vrsqrt.pop %v294
    %v311 = vrsqrt.pop %v295
    %v312 = vrsqrt.pop %v296
    %v313 = vmul.f32 %v201, %v297
    %v314 = vmul.f32 %v202, %v298
    %v315 = vmul.f32 %v203, %v299
    %v316 = vmul.f32 %v204, %v300
    %v317 = vmul.f32 %v205, %v301
    %v318 = vmul.f32 %v206, %v302
    %v319 = vmul.f32 %v207, %v303
    %v320 = vmul.f32 %v208, %v304
    %v321 = vmul.f32 %v209, %v305
    %v322 = vmul.f32 %v210, %v306
    %v323 = vmul.f32 %v211, %v307
    %v324 = vmul.f32 %v212, %v308
    %v325 = vmul.f32 %v213, %v309
    %v326 = vmul.f32 %v214, %v310
    %v327 = vmul.f32 %v215, %v311
    %v328 = vmul.f32 %v216, %v312
    %v330 = vlaneseq
    %v331 = vshrl.u32 %v330, 7
    %v332 = vsub.s32 0, %v331
    %v333 = vrot.slane %v150, %v332
    %v335 = vmul.f32 %v313, %v333
    %v336 = vmul.f32 %v314, %v333
    %v337 = vmul.f32 %v315, %v333
    %v338 = vmul.f32 %v316, %v333
    %v339 = vmul.f32 %v317, %v333
    %v340 = vmul.f32 %v318, %v333
    %v341 = vmul.f32 %v319, %v333
    %v342 = vmul.f32 %v320, %v333
    %v343 = vmul.f32 %v321, %v333
    %v344 = vmul.f32 %v322, %v333
    %v345 = vmul.f32 %v323, %v333
    %v346 = vmul.f32 %v324, %v333
    %v347 = vmul.f32 %v325, %v333
    %v348 = vmul.f32 %v326, %v333
    %v349 = vmul.f32 %v327, %v333
    %v350 = vmul.f32 %v328, %v333
    %v352 = vlaneseq
    %v353 = vshrl.u32 %v352, 7
    %v354 = vsub.s32 0, %v353
    %v355 = vrot.slane %v151, %v354
    %v357 = vadd.f32 %v335, %v355
    %v358 = vadd.f32 %v336, %v355
    %v359 = vadd.f32 %v337, %v355
    %v360 = vadd.f32 %v338, %v355
    %v361 = vadd.f32 %v339, %v355
    %v362 = vadd.f32 %v340, %v355
    %v363 = vadd.f32 %v341, %v355
    %v364 = vadd.f32 %v342, %v355
    %v365 = vadd.f32 %v343, %v355
    %v366 = vadd.f32 %v344, %v355
    %v367 = vadd.f32 %v345, %v355
    %v368 = vadd.f32 %v346, %v355
    %v369 = vadd.f32 %v347, %v355
    %v370 = vadd.f32 %v348, %v355
    %v371 = vadd.f32 %v349, %v355
    %v372 = vadd.f32 %v350, %v355
    %v373 = vpack.c.bf16 %v358, %v357
    %v374 = vpack.c.bf16 %v360, %v359
    %v375 = vpack.c.bf16 %v362, %v361
    %v376 = vpack.c.bf16 %v364, %v363
    %v377 = vpack.c.bf16 %v366, %v365
    %v378 = vpack.c.bf16 %v368, %v367
    %v379 = vpack.c.bf16 %v370, %v369
    %v380 = vpack.c.bf16 %v372, %v371
    %v381 = vld [vmem:[#allocation5] sm:$0xff]
    %v382 = vld [vmem:[#allocation5 + $0x8] sm:$0xf]
    %v383 = vld [vmem:[#allocation5 + $0xc] sm:$0xff]
    %v384 = vld [vmem:[#allocation5 + $0x14] sm:$0xf]
    %v385 = vld [vmem:[#allocation5 + $0x18] sm:$0xff]
    %v386 = vld [vmem:[#allocation5 + $0x20] sm:$0xf]
    %v387 = vld [vmem:[#allocation5 + $0x24] sm:$0xff]
    %v388 = vld [vmem:[#allocation5 + $0x2c] sm:$0xf]
    %v389 = vld [vmem:[#allocation5 + $0x30] sm:$0xff]
    %v390 = vld [vmem:[#allocation5 + $0x38] sm:$0xf]
    %v391 = vld [vmem:[#allocation5 + $0x3c] sm:$0xff]
    %v392 = vld [vmem:[#allocation5 + $0x44] sm:$0xf]
    %v393 = vld [vmem:[#allocation5 + $0x48] sm:$0xff]
    %v394 = vld [vmem:[#allocation5 + $0x50] sm:$0xf]
    %v395 = vld [vmem:[#allocation5 + $0x54] sm:$0xff]
    %v396 = vld [vmem:[#allocation5 + $0x5c] sm:$0xf]
    %v397 = vld [vmem:[#allocation5 + $0x60] sm:$0xff]
    %v398 = vld [vmem:[#allocation5 + $0x68] sm:$0xf]
    %v399 = vld [vmem:[#allocation5 + $0x6c] sm:$0xff]
    %v400 = vld [vmem:[#allocation5 + $0x74] sm:$0xf]
    %v401 = vld [vmem:[#allocation5 + $0x78] sm:$0xff]
    %v402 = vld [vmem:[#allocation5 + $0x80] sm:$0xf]
    %v403 = vld [vmem:[#allocation5 + $0x84] sm:$0xff]
    %v404 = vld [vmem:[#allocation5 + $0x8c] sm:$0xf]
    %v405 = vld [vmem:[#allocation5 + $0x90] sm:$0xff]
    %v406 = vld [vmem:[#allocation5 + $0x98] sm:$0xf]
    %v407 = vld [vmem:[#allocation5 + $0x9c] sm:$0xff]
    %v408 = vld [vmem:[#allocation5 + $0xa4] sm:$0xf]
    %v409 = vld [vmem:[#allocation5 + $0xa8] sm:$0xff]
    %v410 = vld [vmem:[#allocation5 + $0xb0] sm:$0xf]
    %v411 = vld [vmem:[#allocation5 + $0xb4] sm:$0xff]
    %v412 = vld [vmem:[#allocation5 + $0xbc] sm:$0xf]
    %v445 = vunpack.c.l.b16 %v381
    %v446 = vunpack.c.h.b16 %v381
    %v447 = vunpack.c.l.b16 %v382
    %v448 = vunpack.c.l.b16 %v383
    %v449 = vunpack.c.h.b16 %v383
    %v450 = vunpack.c.l.b16 %v384
    %v451 = vunpack.c.l.b16 %v385
    %v452 = vunpack.c.h.b16 %v385
    %v453 = vunpack.c.l.b16 %v386
    %v454 = vunpack.c.l.b16 %v387
    %v455 = vunpack.c.h.b16 %v387
    %v456 = vunpack.c.l.b16 %v388
    %v457 = vunpack.c.l.b16 %v389
    %v458 = vunpack.c.h.b16 %v389
    %v459 = vunpack.c.l.b16 %v390
    %v460 = vunpack.c.l.b16 %v391
    %v461 = vunpack.c.h.b16 %v391
    %v462 = vunpack.c.l.b16 %v392
    %v463 = vunpack.c.l.b16 %v393
    %v464 = vunpack.c.h.b16 %v393
    %v465 = vunpack.c.l.b16 %v394
    %v466 = vunpack.c.l.b16 %v395
    %v467 = vunpack.c.h.b16 %v395
    %v468 = vunpack.c.l.b16 %v396
    %v469 = vunpack.c.l.b16 %v397
    %v470 = vunpack.c.h.b16 %v397
    %v471 = vunpack.c.l.b16 %v398
    %v472 = vunpack.c.l.b16 %v399
    %v473 = vunpack.c.h.b16 %v399
    %v474 = vunpack.c.l.b16 %v400
    %v475 = vunpack.c.l.b16 %v401
    %v476 = vunpack.c.h.b16 %v401
    %v477 = vunpack.c.l.b16 %v402
    %v478 = vunpack.c.l.b16 %v403
    %v479 = vunpack.c.h.b16 %v403
    %v480 = vunpack.c.l.b16 %v404
    %v481 = vunpack.c.l.b16 %v405
    %v482 = vunpack.c.h.b16 %v405
    %v483 = vunpack.c.l.b16 %v406
    %v484 = vunpack.c.l.b16 %v407
    %v485 = vunpack.c.h.b16 %v407
    %v486 = vunpack.c.l.b16 %v408
    %v487 = vunpack.c.l.b16 %v409
    %v488 = vunpack.c.h.b16 %v409
    %v489 = vunpack.c.l.b16 %v410
    %v490 = vunpack.c.l.b16 %v411
    %v491 = vunpack.c.h.b16 %v411
    %v492 = vunpack.c.l.b16 %v412
    %v493 = vpack.c.b16 %v448, %v445
    %v494 = vpack.c.b16 %v449, %v446
    %v495 = vpack.c.b16 %v450, %v447
    %v496 = vpack.c.b16 %v454, %v451
    %v497 = vpack.c.b16 %v455, %v452
    %v498 = vpack.c.b16 %v456, %v453
    %v499 = vpack.c.b16 %v460, %v457
    %v500 = vpack.c.b16 %v461, %v458
    %v501 = vpack.c.b16 %v462, %v459
    %v502 = vpack.c.b16 %v466, %v463
    %v503 = vpack.c.b16 %v467, %v464
    %v504 = vpack.c.b16 %v468, %v465
    %v505 = vpack.c.b16 %v472, %v469
    %v506 = vpack.c.b16 %v473, %v470
    %v507 = vpack.c.b16 %v474, %v471
    %v508 = vpack.c.b16 %v478, %v475
    %v509 = vpack.c.b16 %v479, %v476
    %v510 = vpack.c.b16 %v480, %v477
    %v511 = vpack.c.b16 %v484, %v481
    %v512 = vpack.c.b16 %v485, %v482
    %v513 = vpack.c.b16 %v486, %v483
    %v514 = vpack.c.b16 %v490, %v487
    %v515 = vpack.c.b16 %v491, %v488
    %v516 = vpack.c.b16 %v492, %v489
    %541 = vmatprep.subr.bf16.mxu0 %v515
    %542 = vmatpush1.bf16.msra.mxu0 %v514
    %543 = vmatprep.subr.bf16.mxu0 %v512
    %544 = vmatpush1.bf16.msra.mxu0 %v511
    %545 = vmatprep.subr.bf16.mxu0 %v509
    %546 = vmatpush1.bf16.msra.mxu0 %v508
    %547 = vmatprep.subr.bf16.mxu0 %v506
    %548 = vmatpush1.bf16.msra.mxu0 %v505
    %549 = vmatprep.subr.bf16.mxu0 %v503
    %550 = vmatpush1.bf16.msra.mxu0 %v502
    %551 = vmatprep.subr.bf16.mxu0 %v500
    %552 = vmatpush1.bf16.msra.mxu0 %v499
    %553 = vmatprep.subr.bf16.mxu0 %v497
    %554 = vmatpush1.bf16.msra.mxu0 %v496
    %555 = vmatprep.subr.bf16.mxu0 %v494
    %556 = vmatpush1.bf16.msra.mxu0 %v493
    %557 = vmatprep.subr.bf16.mxu0 0
    %558 = vmatpush2.bf16.msra.mxu0 0
    %559 = vmatprep.subr.bf16.mxu0 0
    %560 = vmatpush2.bf16.msra.mxu0 0
    %561 = vmatprep.subr.bf16.mxu0 0
    %562 = vmatpush2.bf16.msra.mxu0 0
    %563 = vmatprep.subr.bf16.mxu0 0
    %564 = vmatpush2.bf16.msra.mxu0 0
    %565 = vmatprep.subr.bf16.mxu0 0
    %566 = vmatpush2.bf16.msra.mxu0 0
    %567 = vmatprep.subr.bf16.mxu0 0
    %568 = vmatpush2.bf16.msra.mxu0 0
    %569 = vmatprep.subr.bf16.mxu0 0
    %570 = vmatpush2.bf16.msra.mxu0 0
    %571 = vmatprep.subr.bf16.mxu0 0
    %572 = vmatpush2.bf16.msra.mxu0 0
    %573 = vmatprep.mubr.bf16.mxu0 0
    %574 = vmatmul.mubr.bf16.gmra.mxu0 %v373
    %v575 = vpop.f32.mrf.mxu0
    %v576 = vadd.f32 0.0, %v575
    %v577 = vpop.f32.mrf.mxu0
    %v578 = vadd.f32 0.0, %v577
    %v579 = vpop.f32.mrf.mxu0
    %v580 = vadd.f32 0.0, %v579
    %v581 = vpop.f32.mrf.mxu0
    %v582 = vadd.f32 0.0, %v581
    %583 = vmatprep.mubr.bf16.mxu0 0
    %584 = vmatmul.mubr.bf16.gmra.mxu0 %v374
    %v585 = vpop.f32.mrf.mxu0
    %v586 = vadd.f32 0.0, %v585
    %v587 = vpop.f32.mrf.mxu0
    %v588 = vadd.f32 0.0, %v587
    %v589 = vpop.f32.mrf.mxu0
    %v590 = vadd.f32 0.0, %v589
    %v591 = vpop.f32.mrf.mxu0
    %v592 = vadd.f32 0.0, %v591
    %593 = vmatprep.mubr.bf16.mxu0 0
    %594 = vmatmul.mubr.bf16.gmra.mxu0 %v375
    %v595 = vpop.f32.mrf.mxu0
    %v596 = vadd.f32 0.0, %v595
    %v597 = vpop.f32.mrf.mxu0
    %v598 = vadd.f32 0.0, %v597
    %v599 = vpop.f32.mrf.mxu0
    %v600 = vadd.f32 0.0, %v599
    %v601 = vpop.f32.mrf.mxu0
    %v602 = vadd.f32 0.0, %v601
    %603 = vmatprep.mubr.bf16.mxu0 0
    %604 = vmatmul.mubr.bf16.gmra.mxu0 %v376
    %v605 = vpop.f32.mrf.mxu0
    %v606 = vadd.f32 0.0, %v605
    %v607 = vpop.f32.mrf.mxu0
    %v608 = vadd.f32 0.0, %v607
    %v609 = vpop.f32.mrf.mxu0
    %v610 = vadd.f32 0.0, %v609
    %v611 = vpop.f32.mrf.mxu0
    %v612 = vadd.f32 0.0, %v611
    %613 = vmatprep.mubr.bf16.mxu0 0
    %614 = vmatmul.mubr.bf16.gmra.mxu0 %v377
    %v615 = vpop.f32.mrf.mxu0
    %v616 = vadd.f32 0.0, %v615
    %v617 = vpop.f32.mrf.mxu0
    %v618 = vadd.f32 0.0, %v617
    %v619 = vpop.f32.mrf.mxu0
    %v620 = vadd.f32 0.0, %v619
    %v621 = vpop.f32.mrf.mxu0
    %v622 = vadd.f32 0.0, %v621
    %623 = vmatprep.mubr.bf16.mxu0 0
    %624 = vmatmul.mubr.bf16.gmra.mxu0 %v378
    %v625 = vpop.f32.mrf.mxu0
    %v626 = vadd.f32 0.0, %v625
    %v627 = vpop.f32.mrf.mxu0
    %v628 = vadd.f32 0.0, %v627
    %v629 = vpop.f32.mrf.mxu0
    %v630 = vadd.f32 0.0, %v629
    %v631 = vpop.f32.mrf.mxu0
    %v632 = vadd.f32 0.0, %v631
    %633 = vmatprep.mubr.bf16.mxu0 0
    %634 = vmatmul.mubr.bf16.gmra.mxu0 %v379
    %v635 = vpop.f32.mrf.mxu0
    %v636 = vadd.f32 0.0, %v635
    %v637 = vpop.f32.mrf.mxu0
    %v638 = vadd.f32 0.0, %v637
    %v639 = vpop.f32.mrf.mxu0
    %v640 = vadd.f32 0.0, %v639
    %v641 = vpop.f32.mrf.mxu0
    %v642 = vadd.f32 0.0, %v641
    %643 = vmatprep.mubr.bf16.mxu0 0
    %644 = vmatmul.mubr.bf16.gmra.mxu0 %v380
    %v645 = vpop.f32.mrf.mxu0
    %v646 = vadd.f32 0.0, %v645
    %v647 = vpop.f32.mrf.mxu0
    %v648 = vadd.f32 0.0, %v647
    %v649 = vpop.f32.mrf.mxu0
    %v650 = vadd.f32 0.0, %v649
    %v651 = vpop.f32.mrf.mxu0
    %v652 = vadd.f32 0.0, %v651
    %653 = vdwg.mxu0
    %654 = vmatprep.subr.bf16.mxu0 0
    %655 = vmatpush1.bf16.msra.mxu0 %v516
    %656 = vmatprep.subr.bf16.mxu0 0
    %657 = vmatpush1.bf16.msra.mxu0 %v513
    %658 = vmatprep.subr.bf16.mxu0 0
    %659 = vmatpush1.bf16.msra.mxu0 %v510
    %660 = vmatprep.subr.bf16.mxu0 0
    %661 = vmatpush1.bf16.msra.mxu0 %v507
    %662 = vmatprep.subr.bf16.mxu0 0
    %663 = vmatpush1.bf16.msra.mxu0 %v504
    %664 = vmatprep.subr.bf16.mxu0 0
    %665 = vmatpush1.bf16.msra.mxu0 %v501
    %666 = vmatprep.subr.bf16.mxu0 0
    %667 = vmatpush1.bf16.msra.mxu0 %v498
    %668 = vmatprep.subr.bf16.mxu0 0
    %669 = vmatpush1.bf16.msra.mxu0 %v495
    %670 = vmatprep.subr.bf16.mxu0 0
    %671 = vmatpush2.bf16.msra.mxu0 0
    %672 = vmatprep.subr.bf16.mxu0 0
    %673 = vmatpush2.bf16.msra.mxu0 0
    %674 = vmatprep.subr.bf16.mxu0 0
    %675 = vmatpush2.bf16.msra.mxu0 0
    %676 = vmatprep.subr.bf16.mxu0 0
    %677 = vmatpush2.bf16.msra.mxu0 0
    %678 = vmatprep.subr.bf16.mxu0 0
    %679 = vmatpush2.bf16.msra.mxu0 0
    %680 = vmatprep.subr.bf16.mxu0 0
    %681 = vmatpush2.bf16.msra.mxu0 0
    %682 = vmatprep.subr.bf16.mxu0 0
    %683 = vmatpush2.bf16.msra.mxu0 0
    %684 = vmatprep.subr.bf16.mxu0 0
    %685 = vmatpush2.bf16.msra.mxu0 0
    %686 = vmatprep.mubr.bf16.mxu0 0
    %687 = vmatmul.mubr.bf16.gmra.mxu0 %v373
    %v688 = vpop.f32.mrf.mxu0
    %v689 = vadd.f32 0.0, %v688
    %v690 = vpop.f32.mrf.mxu0
    %v691 = vpop.f32.mrf.mxu0
    %v692 = vadd.f32 0.0, %v691
    %v693 = vpop.f32.mrf.mxu0
    %694 = vmatprep.mubr.bf16.mxu0 0
    %695 = vmatmul.mubr.bf16.gmra.mxu0 %v374
    %v696 = vpop.f32.mrf.mxu0
    %v697 = vadd.f32 0.0, %v696
    %v698 = vpop.f32.mrf.mxu0
    %v699 = vpop.f32.mrf.mxu0
    %v700 = vadd.f32 0.0, %v699
    %v701 = vpop.f32.mrf.mxu0
    %702 = vmatprep.mubr.bf16.mxu0 0
    %703 = vmatmul.mubr.bf16.gmra.mxu0 %v375
    %v704 = vpop.f32.mrf.mxu0
    %v705 = vadd.f32 0.0, %v704
    %v706 = vpop.f32.mrf.mxu0
    %v707 = vpop.f32.mrf.mxu0
    %v708 = vadd.f32 0.0, %v707
    %v709 = vpop.f32.mrf.mxu0
    %710 = vmatprep.mubr.bf16.mxu0 0
    %711 = vmatmul.mubr.bf16.gmra.mxu0 %v376
    %v712 = vpop.f32.mrf.mxu0
    %v713 = vadd.f32 0.0, %v712
    %v714 = vpop.f32.mrf.mxu0
    %v715 = vpop.f32.mrf.mxu0
    %v716 = vadd.f32 0.0, %v715
    %v717 = vpop.f32.mrf.mxu0
    %718 = vmatprep.mubr.bf16.mxu0 0
    %719 = vmatmul.mubr.bf16.gmra.mxu0 %v377
    %v720 = vpop.f32.mrf.mxu0
    %v721 = vadd.f32 0.0, %v720
    %v722 = vpop.f32.mrf.mxu0
    %v723 = vpop.f32.mrf.mxu0
    %v724 = vadd.f32 0.0, %v723
    %v725 = vpop.f32.mrf.mxu0
    %726 = vmatprep.mubr.bf16.mxu0 0
    %727 = vmatmul.mubr.bf16.gmra.mxu0 %v378
    %v728 = vpop.f32.mrf.mxu0
    %v729 = vadd.f32 0.0, %v728
    %v730 = vpop.f32.mrf.mxu0
    %v731 = vpop.f32.mrf.mxu0
    %v732 = vadd.f32 0.0, %v731
    %v733 = vpop.f32.mrf.mxu0
    %734 = vmatprep.mubr.bf16.mxu0 0
    %735 = vmatmul.mubr.bf16.gmra.mxu0 %v379
    %v736 = vpop.f32.mrf.mxu0
    %v737 = vadd.f32 0.0, %v736
    %v738 = vpop.f32.mrf.mxu0
    %v739 = vpop.f32.mrf.mxu0
    %v740 = vadd.f32 0.0, %v739
    %v741 = vpop.f32.mrf.mxu0
    %742 = vmatprep.mubr.bf16.mxu0 0
    %743 = vmatmul.mubr.bf16.gmra.mxu0 %v380
    %v744 = vpop.f32.mrf.mxu0
    %v745 = vadd.f32 0.0, %v744
    %v746 = vpop.f32.mrf.mxu0
    %v747 = vpop.f32.mrf.mxu0
    %v748 = vadd.f32 0.0, %v747
    %v749 = vpop.f32.mrf.mxu0
    %750 = vdwg.mxu0
    %v751 = vpack.c.bf16 %v580, %v576
    %v752 = vpack.c.bf16 %v582, %v578
    %v753 = vpack.c.bf16 %v692, %v689
    %v754 = vpack.c.bf16 %v590, %v586
    %v755 = vpack.c.bf16 %v592, %v588
    %v756 = vpack.c.bf16 %v700, %v697
    %v757 = vpack.c.bf16 %v600, %v596
    %v758 = vpack.c.bf16 %v602, %v598
    %v759 = vpack.c.bf16 %v708, %v705
    %v760 = vpack.c.bf16 %v610, %v606
    %v761 = vpack.c.bf16 %v612, %v608
    %v762 = vpack.c.bf16 %v716, %v713
    %v763 = vpack.c.bf16 %v620, %v616
    %v764 = vpack.c.bf16 %v622, %v618
    %v765 = vpack.c.bf16 %v724, %v721
    %v766 = vpack.c.bf16 %v630, %v626
    %v767 = vpack.c.bf16 %v632, %v628
    %v768 = vpack.c.bf16 %v732, %v729
    %v769 = vpack.c.bf16 %v640, %v636
    %v770 = vpack.c.bf16 %v642, %v638
    %v771 = vpack.c.bf16 %v740, %v737
    %v772 = vpack.c.bf16 %v650, %v646
    %v773 = vpack.c.bf16 %v652, %v648
    %v774 = vpack.c.bf16 %v748, %v745
    %v775 = vlaneseq
    %v776 = vshrl.u32 %v775, 7
    %v777 = vadd.s32 %v776, 8
    %v778 = vadd.s32 %v776, 16
    %v779 = vadd.s32 %v776, 24
    %v780 = vadd.s32 %v776, 32
    %v781 = vadd.s32 %v776, 40
    %v782 = vadd.s32 %v776, 48
    %v783 = vadd.s32 %v776, 56
    %v784 = vlaneseq
    %v785 = vand.u32 %v784, 127
    %vm786 = vcmp.ge.s32.totalorder %v776, %v785
    %vm787 = vcmp.ge.s32.totalorder %v777, %v785
    %vm788 = vcmp.ge.s32.totalorder %v778, %v785
    %vm789 = vcmp.ge.s32.totalorder %v779, %v785
    %vm790 = vcmp.ge.s32.totalorder %v780, %v785
    %vm791 = vcmp.ge.s32.totalorder %v781, %v785
    %vm792 = vcmp.ge.s32.totalorder %v782, %v785
    %vm793 = vcmp.ge.s32.totalorder %v783, %v785
    %v794 = vsel %vm786, 0.0, -1e+30
    %v795 = vsel %vm787, 0.0, -1e+30
    %v796 = vsel %vm788, 0.0, -1e+30
    %v797 = vsel %vm789, 0.0, -1e+30
    %v798 = vsel %vm790, 0.0, -1e+30
    %v799 = vsel %vm791, 0.0, -1e+30
    %v800 = vsel %vm792, 0.0, -1e+30
    %v801 = vsel %vm793, 0.0, -1e+30
    %vm802 = vcmask 261120
    %v804 = vsel %vm802, %v751, 0
    %v807 = vsel %vm802, %v754, 0
    %v810 = vsel %vm802, %v757, 0
    %v813 = vsel %vm802, %v760, 0
    %v816 = vsel %vm802, %v752, 0
    %v819 = vsel %vm802, %v755, 0
    %v822 = vsel %vm802, %v758, 0
    %v825 = vsel %vm802, %v761, 0
    %827 = vmatprep.subr.bf16.mxu0 0
    %828 = vmatpush1.bf16.xpose.msra.mxu0 0
    %829 = vmatprep.subr.bf16.mxu0 0
    %830 = vmatpush1.bf16.xpose.msra.mxu0 0
    %831 = vmatprep.subr.bf16.mxu0 0
    %832 = vmatpush1.bf16.xpose.msra.mxu0 0
    %833 = vmatprep.subr.bf16.mxu0 0
    %834 = vmatpush1.bf16.xpose.msra.mxu0 0
    %835 = vmatprep.subr.bf16.mxu0 0
    %836 = vmatpush1.bf16.xpose.msra.mxu0 %v825
    %837 = vmatprep.subr.bf16.mxu0 0
    %838 = vmatpush1.bf16.xpose.msra.mxu0 %v822
    %839 = vmatprep.subr.bf16.mxu0 0
    %840 = vmatpush1.bf16.xpose.msra.mxu0 %v819
    %841 = vmatprep.subr.bf16.mxu0 0
    %842 = vmatpush1.bf16.xpose.msra.mxu0 %v816
    %843 = vmatprep.subr.bf16.mxu0 0
    %844 = vmatpush2.bf16.xpose.msra.mxu0 0
    %845 = vmatprep.subr.bf16.mxu0 0
    %846 = vmatpush2.bf16.xpose.msra.mxu0 0
    %847 = vmatprep.subr.bf16.mxu0 0
    %848 = vmatpush2.bf16.xpose.msra.mxu0 0
    %849 = vmatprep.subr.bf16.mxu0 0
    %850 = vmatpush2.bf16.xpose.msra.mxu0 0
    %851 = vmatprep.subr.bf16.mxu0 0
    %852 = vmatpush2.bf16.xpose.msra.mxu0 0
    %853 = vmatprep.subr.bf16.mxu0 0
    %854 = vmatpush2.bf16.xpose.msra.mxu0 0
    %855 = vmatprep.subr.bf16.mxu0 0
    %856 = vmatpush2.bf16.xpose.msra.mxu0 0
    %857 = vmatprep.subr.bf16.mxu0 0
    %858 = vmatpush2.bf16.xpose.msra.mxu0 0
    %859 = vmatprep.mubr.bf16.mxu0 0
    %860 = vmatmul.mubr.bf16.gmra.mxu0 %v804
    %v861 = vpop.f32.mrf.mxu0
    %v862 = vadd.f32 %v794, %v861
    %v863 = vpop.f32.mrf.mxu0
    %v864 = vpop.f32.mrf.mxu0
    %v865 = vadd.f32 %v795, %v864
    %v866 = vpop.f32.mrf.mxu0
    %867 = vmatprep.mubr.bf16.mxu0 0
    %868 = vmatmul.mubr.bf16.gmra.mxu0 %v807
    %v869 = vpop.f32.mrf.mxu0
    %v870 = vadd.f32 %v796, %v869
    %v871 = vpop.f32.mrf.mxu0
    %v872 = vpop.f32.mrf.mxu0
    %v873 = vadd.f32 %v797, %v872
    %v874 = vpop.f32.mrf.mxu0
    %875 = vmatprep.mubr.bf16.mxu0 0
    %876 = vmatmul.mubr.bf16.gmra.mxu0 %v810
    %v877 = vpop.f32.mrf.mxu0
    %v878 = vadd.f32 %v798, %v877
    %v879 = vpop.f32.mrf.mxu0
    %v880 = vpop.f32.mrf.mxu0
    %v881 = vadd.f32 %v799, %v880
    %v882 = vpop.f32.mrf.mxu0
    %883 = vmatprep.mubr.bf16.mxu0 0
    %884 = vmatmul.mubr.bf16.gmra.mxu0 %v813
    %v885 = vpop.f32.mrf.mxu0
    %v886 = vadd.f32 %v800, %v885
    %v887 = vpop.f32.mrf.mxu0
    %v888 = vpop.f32.mrf.mxu0
    %v889 = vadd.f32 %v801, %v888
    %v890 = vpop.f32.mrf.mxu0
    %891 = vdwg.mxu0
    %vm892 = vcmask 523264
    %v893 = vsel %vm892, %v862, -inf
    %894 = vmax.xlane.f32.xlu0 %v893
    %v895 = vpop.xlane.xlu0 %894
    %v896 = vsel %vm892, %v865, -inf
    %897 = vmax.xlane.f32.xlu0 %v896
    %v898 = vpop.xlane.xlu0 %897
    %v899 = vsel %vm892, %v870, -inf
    %900 = vmax.xlane.f32.xlu0 %v899
    %v901 = vpop.xlane.xlu0 %900
    %v902 = vsel %vm892, %v873, -inf
    %903 = vmax.xlane.f32.xlu0 %v902
    %v904 = vpop.xlane.xlu0 %903
    %v905 = vsel %vm892, %v878, -inf
    %906 = vmax.xlane.f32.xlu0 %v905
    %v907 = vpop.xlane.xlu0 %906
    %v908 = vsel %vm892, %v881, -inf
    %909 = vmax.xlane.f32.xlu0 %v908
    %v910 = vpop.xlane.xlu0 %909
    %v911 = vsel %vm892, %v886, -inf
    %912 = vmax.xlane.f32.xlu0 %v911
    %v913 = vpop.xlane.xlu0 %912
    %v914 = vsel %vm892, %v889, -inf
    %915 = vmax.xlane.f32.xlu0 %v914
    %v916 = vpop.xlane.xlu0 %915
    %v917 = vsub.f32 %v862, %v895
    %v918 = vsub.f32 %v865, %v898
    %v919 = vsub.f32 %v870, %v901
    %v920 = vsub.f32 %v873, %v904
    %v921 = vsub.f32 %v878, %v907
    %v922 = vsub.f32 %v881, %v910
    %v923 = vsub.f32 %v886, %v913
    %v924 = vsub.f32 %v889, %v916
    %v925 = vmul.f32 %v917, 1.442695
    %v926 = vpow.pop %v925
    %v927 = vmul.f32 %v918, 1.442695
    %v928 = vpow.pop %v927
    %v929 = vmul.f32 %v919, 1.442695
    %v930 = vpow.pop %v929
    %v931 = vmul.f32 %v920, 1.442695
    %v932 = vpow.pop %v931
    %v933 = vmul.f32 %v921, 1.442695
    %v934 = vpow.pop %v933
    %v935 = vmul.f32 %v922, 1.442695
    %v936 = vpow.pop %v935
    %v937 = vmul.f32 %v923, 1.442695
    %v938 = vpow.pop %v937
    %v939 = vmul.f32 %v924, 1.442695
    %v940 = vpow.pop %v939
    %v941 = vsel %vm892, %v926, 0.0
    %942 = vadd.xlane.f32.xlu0 %v941
    %v943 = vpop.xlane.xlu0 %942
    %v944 = vsel %vm892, %v928, 0.0
    %945 = vadd.xlane.f32.xlu0 %v944
    %v946 = vpop.xlane.xlu0 %945
    %v947 = vsel %vm892, %v930, 0.0
    %948 = vadd.xlane.f32.xlu0 %v947
    %v949 = vpop.xlane.xlu0 %948
    %v950 = vsel %vm892, %v932, 0.0
    %951 = vadd.xlane.f32.xlu0 %v950
    %v952 = vpop.xlane.xlu0 %951
    %v953 = vsel %vm892, %v934, 0.0
    %954 = vadd.xlane.f32.xlu0 %v953
    %v955 = vpop.xlane.xlu0 %954
    %v956 = vsel %vm892, %v936, 0.0
    %957 = vadd.xlane.f32.xlu0 %v956
    %v958 = vpop.xlane.xlu0 %957
    %v959 = vsel %vm892, %v938, 0.0
    %960 = vadd.xlane.f32.xlu0 %v959
    %v961 = vpop.xlane.xlu0 %960
    %v962 = vsel %vm892, %v940, 0.0
    %963 = vadd.xlane.f32.xlu0 %v962
    %v964 = vpop.xlane.xlu0 %963
    %v965 = vrcp.pop %v943
    %v966 = vrcp.pop %v946
    %v967 = vrcp.pop %v949
    %v968 = vrcp.pop %v952
    %v969 = vrcp.pop %v955
    %v970 = vrcp.pop %v958
    %v971 = vrcp.pop %v961
    %v972 = vrcp.pop %v964
    %v973 = vmul.f32 %v926, %v965
    %v974 = vmul.f32 %v928, %v966
    %v975 = vmul.f32 %v930, %v967
    %v976 = vmul.f32 %v932, %v968
    %v977 = vmul.f32 %v934, %v969
    %v978 = vmul.f32 %v936, %v970
    %v979 = vmul.f32 %v938, %v971
    %v980 = vmul.f32 %v940, %v972
    %v981 = vpack.c.bf16 %v974, %v973
    %v982 = vpack.c.bf16 %v976, %v975
    %v983 = vpack.c.bf16 %v978, %v977
    %v984 = vpack.c.bf16 %v980, %v979
    %v986 = vsel %vm892, %v981, 0
    %v989 = vsel %vm892, %v982, 0
    %v992 = vsel %vm892, %v983, 0
    %v995 = vsel %vm892, %v984, 0
    %997 = vmatprep.subr.bf16.mxu0 0
    %998 = vmatpush1.bf16.msra.mxu0 0
    %999 = vmatprep.subr.bf16.mxu0 0
    %1000 = vmatpush1.bf16.msra.mxu0 0
    %1001 = vmatprep.subr.bf16.mxu0 0
    %1002 = vmatpush1.bf16.msra.mxu0 0
    %1003 = vmatprep.subr.bf16.mxu0 0
    %1004 = vmatpush1.bf16.msra.mxu0 0
    %1005 = vmatprep.subr.bf16.mxu0 0
    %1006 = vmatpush1.bf16.msra.mxu0 %v762
    %1007 = vmatprep.subr.bf16.mxu0 0
    %1008 = vmatpush1.bf16.msra.mxu0 %v759
    %1009 = vmatprep.subr.bf16.mxu0 0
    %1010 = vmatpush1.bf16.msra.mxu0 %v756
    %1011 = vmatprep.subr.bf16.mxu0 0
    %1012 = vmatpush1.bf16.msra.mxu0 %v753
    %1013 = vmatprep.subr.bf16.mxu0 0
    %1014 = vmatpush2.bf16.msra.mxu0 0
    %1015 = vmatprep.subr.bf16.mxu0 0
    %1016 = vmatpush2.bf16.msra.mxu0 0
    %1017 = vmatprep.subr.bf16.mxu0 0
    %1018 = vmatpush2.bf16.msra.mxu0 0
    %1019 = vmatprep.subr.bf16.mxu0 0
    %1020 = vmatpush2.bf16.msra.mxu0 0
    %1021 = vmatprep.subr.bf16.mxu0 0
    %1022 = vmatpush2.bf16.msra.mxu0 0
    %1023 = vmatprep.subr.bf16.mxu0 0
    %1024 = vmatpush2.bf16.msra.mxu0 0
    %1025 = vmatprep.subr.bf16.mxu0 0
    %1026 = vmatpush2.bf16.msra.mxu0 0
    %1027 = vmatprep.subr.bf16.mxu0 0
    %1028 = vmatpush2.bf16.msra.mxu0 0
    %1029 = vmatprep.mubr.bf16.mxu0 0
    %1030 = vmatmul.mubr.bf16.gmra.mxu0 %v986
    %v1031 = vpop.f32.mrf.mxu0
    %v1032 = vadd.f32 0.0, %v1031
    %v1033 = vpop.f32.mrf.mxu0
    %v1034 = vpop.f32.mrf.mxu0
    %v1035 = vadd.f32 0.0, %v1034
    %v1036 = vpop.f32.mrf.mxu0
    %1037 = vmatprep.mubr.bf16.mxu0 0
    %1038 = vmatmul.mubr.bf16.gmra.mxu0 %v989
    %v1039 = vpop.f32.mrf.mxu0
    %v1040 = vadd.f32 0.0, %v1039
    %v1041 = vpop.f32.mrf.mxu0
    %v1042 = vpop.f32.mrf.mxu0
    %v1043 = vadd.f32 0.0, %v1042
    %v1044 = vpop.f32.mrf.mxu0
    %1045 = vmatprep.mubr.bf16.mxu0 0
    %1046 = vmatmul.mubr.bf16.gmra.mxu0 %v992
    %v1047 = vpop.f32.mrf.mxu0
    %v1048 = vadd.f32 0.0, %v1047
    %v1049 = vpop.f32.mrf.mxu0
    %v1050 = vpop.f32.mrf.mxu0
    %v1051 = vadd.f32 0.0, %v1050
    %v1052 = vpop.f32.mrf.mxu0
    %1053 = vmatprep.mubr.bf16.mxu0 0
    %1054 = vmatmul.mubr.bf16.gmra.mxu0 %v995
    %v1055 = vpop.f32.mrf.mxu0
    %v1056 = vadd.f32 0.0, %v1055
    %v1057 = vpop.f32.mrf.mxu0
    %v1058 = vpop.f32.mrf.mxu0
    %v1059 = vadd.f32 0.0, %v1058
    %v1060 = vpop.f32.mrf.mxu0
    %1061 = vdwg.mxu0
    %1066 = vrot.lane.b32.xlu0 %v751, 96
    %v1067 = vpop.permute.xlu0 %1066
    %1068 = vrot.lane.b32.xlu0 %v754, 96
    %v1069 = vpop.permute.xlu0 %1068
    %1070 = vrot.lane.b32.xlu0 %v757, 96
    %v1071 = vpop.permute.xlu0 %1070
    %1072 = vrot.lane.b32.xlu0 %v760, 96
    %v1073 = vpop.permute.xlu0 %1072
    %1078 = vrot.lane.b32.xlu0 %v752, 96
    %v1079 = vpop.permute.xlu0 %1078
    %1080 = vrot.lane.b32.xlu0 %v755, 96
    %v1081 = vpop.permute.xlu0 %1080
    %1082 = vrot.lane.b32.xlu0 %v758, 96
    %v1083 = vpop.permute.xlu0 %1082
    %1084 = vrot.lane.b32.xlu0 %v761, 96
    %v1085 = vpop.permute.xlu0 %1084
    %v1087 = vsel %vm802, %v1067, 0
    %v1090 = vsel %vm802, %v1069, 0
    %v1093 = vsel %vm802, %v1071, 0
    %v1096 = vsel %vm802, %v1073, 0
    %v1099 = vsel %vm802, %v1079, 0
    %v1102 = vsel %vm802, %v1081, 0
    %v1105 = vsel %vm802, %v1083, 0
    %v1108 = vsel %vm802, %v1085, 0
    %1110 = vmatprep.subr.bf16.mxu0 0
    %1111 = vmatpush1.bf16.xpose.msra.mxu0 0
    %1112 = vmatprep.subr.bf16.mxu0 0
    %1113 = vmatpush1.bf16.xpose.msra.mxu0 0
    %1114 = vmatprep.subr.bf16.mxu0 0
    %1115 = vmatpush1.bf16.xpose.msra.mxu0 0
    %1116 = vmatprep.subr.bf16.mxu0 0
    %1117 = vmatpush1.bf16.xpose.msra.mxu0 0
    %1118 = vmatprep.subr.bf16.mxu0 0
    %1119 = vmatpush1.bf16.xpose.msra.mxu0 %v1108
    %1120 = vmatprep.subr.bf16.mxu0 0
    %1121 = vmatpush1.bf16.xpose.msra.mxu0 %v1105
    %1122 = vmatprep.subr.bf16.mxu0 0
    %1123 = vmatpush1.bf16.xpose.msra.mxu0 %v1102
    %1124 = vmatprep.subr.bf16.mxu0 0
    %1125 = vmatpush1.bf16.xpose.msra.mxu0 %v1099
    %1126 = vmatprep.subr.bf16.mxu0 0
    %1127 = vmatpush2.bf16.xpose.msra.mxu0 0
    %1128 = vmatprep.subr.bf16.mxu0 0
    %1129 = vmatpush2.bf16.xpose.msra.mxu0 0
    %1130 = vmatprep.subr.bf16.mxu0 0
    %1131 = vmatpush2.bf16.xpose.msra.mxu0 0
    %1132 = vmatprep.subr.bf16.mxu0 0
    %1133 = vmatpush2.bf16.xpose.msra.mxu0 0
    %1134 = vmatprep.subr.bf16.mxu0 0
    %1135 = vmatpush2.bf16.xpose.msra.mxu0 0
    %1136 = vmatprep.subr.bf16.mxu0 0
    %1137 = vmatpush2.bf16.xpose.msra.mxu0 0
    %1138 = vmatprep.subr.bf16.mxu0 0
    %1139 = vmatpush2.bf16.xpose.msra.mxu0 0
    %1140 = vmatprep.subr.bf16.mxu0 0
    %1141 = vmatpush2.bf16.xpose.msra.mxu0 0
    %1142 = vmatprep.mubr.bf16.mxu0 0
    %1143 = vmatmul.mubr.bf16.gmra.mxu0 %v1087
    %v1144 = vpop.f32.mrf.mxu0
    %v1145 = vadd.f32 %v794, %v1144
    %v1146 = vpop.f32.mrf.mxu0
    %v1147 = vpop.f32.mrf.mxu0
    %v1148 = vadd.f32 %v795, %v1147
    %v1149 = vpop.f32.mrf.mxu0
    %1150 = vmatprep.mubr.bf16.mxu0 0
    %1151 = vmatmul.mubr.bf16.gmra.mxu0 %v1090
    %v1152 = vpop.f32.mrf.mxu0
    %v1153 = vadd.f32 %v796, %v1152
    %v1154 = vpop.f32.mrf.mxu0
    %v1155 = vpop.f32.mrf.mxu0
    %v1156 = vadd.f32 %v797, %v1155
    %v1157 = vpop.f32.mrf.mxu0
    %1158 = vmatprep.mubr.bf16.mxu0 0
    %1159 = vmatmul.mubr.bf16.gmra.mxu0 %v1093
    %v1160 = vpop.f32.mrf.mxu0
    %v1161 = vadd.f32 %v798, %v1160
    %v1162 = vpop.f32.mrf.mxu0
    %v1163 = vpop.f32.mrf.mxu0
    %v1164 = vadd.f32 %v799, %v1163
    %v1165 = vpop.f32.mrf.mxu0
    %1166 = vmatprep.mubr.bf16.mxu0 0
    %1167 = vmatmul.mubr.bf16.gmra.mxu0 %v1096
    %v1168 = vpop.f32.mrf.mxu0
    %v1169 = vadd.f32 %v800, %v1168
    %v1170 = vpop.f32.mrf.mxu0
    %v1171 = vpop.f32.mrf.mxu0
    %v1172 = vadd.f32 %v801, %v1171
    %v1173 = vpop.f32.mrf.mxu0
    %1174 = vdwg.mxu0
    %v1175 = vsel %vm892, %v1145, -inf
    %1176 = vmax.xlane.f32.xlu0 %v1175
    %v1177 = vpop.xlane.xlu0 %1176
    %v1178 = vsel %vm892, %v1148, -inf
    %1179 = vmax.xlane.f32.xlu0 %v1178
    %v1180 = vpop.xlane.xlu0 %1179
    %v1181 = vsel %vm892, %v1153, -inf
    %1182 = vmax.xlane.f32.xlu0 %v1181
    %v1183 = vpop.xlane.xlu0 %1182
    %v1184 = vsel %vm892, %v1156, -inf
    %1185 = vmax.xlane.f32.xlu0 %v1184
    %v1186 = vpop.xlane.xlu0 %1185
    %v1187 = vsel %vm892, %v1161, -inf
    %1188 = vmax.xlane.f32.xlu0 %v1187
    %v1189 = vpop.xlane.xlu0 %1188
    %v1190 = vsel %vm892, %v1164, -inf
    %1191 = vmax.xlane.f32.xlu0 %v1190
    %v1192 = vpop.xlane.xlu0 %1191
    %v1193 = vsel %vm892, %v1169, -inf
    %1194 = vmax.xlane.f32.xlu0 %v1193
    %v1195 = vpop.xlane.xlu0 %1194
    %v1196 = vsel %vm892, %v1172, -inf
    %1197 = vmax.xlane.f32.xlu0 %v1196
    %v1198 = vpop.xlane.xlu0 %1197
    %v1199 = vsub.f32 %v1145, %v1177
    %v1200 = vsub.f32 %v1148, %v1180
    %v1201 = vsub.f32 %v1153, %v1183
    %v1202 = vsub.f32 %v1156, %v1186
    %v1203 = vsub.f32 %v1161, %v1189
    %v1204 = vsub.f32 %v1164, %v1192
    %v1205 = vsub.f32 %v1169, %v1195
    %v1206 = vsub.f32 %v1172, %v1198
    %v1207 = vmul.f32 %v1199, 1.442695
    %v1208 = vpow.pop %v1207
    %v1209 = vmul.f32 %v1200, 1.442695
    %v1210 = vpow.pop %v1209
    %v1211 = vmul.f32 %v1201, 1.442695
    %v1212 = vpow.pop %v1211
    %v1213 = vmul.f32 %v1202, 1.442695
    %v1214 = vpow.pop %v1213
    %v1215 = vmul.f32 %v1203, 1.442695
    %v1216 = vpow.pop %v1215
    %v1217 = vmul.f32 %v1204, 1.442695
    %v1218 = vpow.pop %v1217
    %v1219 = vmul.f32 %v1205, 1.442695
    %v1220 = vpow.pop %v1219
    %v1221 = vmul.f32 %v1206, 1.442695
    %v1222 = vpow.pop %v1221
    %v1223 = vsel %vm892, %v1208, 0.0
    %1224 = vadd.xlane.f32.xlu0 %v1223
    %v1225 = vpop.xlane.xlu0 %1224
    %v1226 = vsel %vm892, %v1210, 0.0
    %1227 = vadd.xlane.f32.xlu0 %v1226
    %v1228 = vpop.xlane.xlu0 %1227
    %v1229 = vsel %vm892, %v1212, 0.0
    %1230 = vadd.xlane.f32.xlu0 %v1229
    %v1231 = vpop.xlane.xlu0 %1230
    %v1232 = vsel %vm892, %v1214, 0.0
    %1233 = vadd.xlane.f32.xlu0 %v1232
    %v1234 = vpop.xlane.xlu0 %1233
    %v1235 = vsel %vm892, %v1216, 0.0
    %1236 = vadd.xlane.f32.xlu0 %v1235
    %v1237 = vpop.xlane.xlu0 %1236
    %v1238 = vsel %vm892, %v1218, 0.0
    %1239 = vadd.xlane.f32.xlu0 %v1238
    %v1240 = vpop.xlane.xlu0 %1239
    %v1241 = vsel %vm892, %v1220, 0.0
    %1242 = vadd.xlane.f32.xlu0 %v1241
    %v1243 = vpop.xlane.xlu0 %1242
    %v1244 = vsel %vm892, %v1222, 0.0
    %1245 = vadd.xlane.f32.xlu0 %v1244
    %v1246 = vpop.xlane.xlu0 %1245
    %v1247 = vrcp.pop %v1225
    %v1248 = vrcp.pop %v1228
    %v1249 = vrcp.pop %v1231
    %v1250 = vrcp.pop %v1234
    %v1251 = vrcp.pop %v1237
    %v1252 = vrcp.pop %v1240
    %v1253 = vrcp.pop %v1243
    %v1254 = vrcp.pop %v1246
    %v1255 = vmul.f32 %v1208, %v1247
    %v1256 = vmul.f32 %v1210, %v1248
    %v1257 = vmul.f32 %v1212, %v1249
    %v1258 = vmul.f32 %v1214, %v1250
    %v1259 = vmul.f32 %v1216, %v1251
    %v1260 = vmul.f32 %v1218, %v1252
    %v1261 = vmul.f32 %v1220, %v1253
    %v1262 = vmul.f32 %v1222, %v1254
    %v1263 = vpack.c.bf16 %v1256, %v1255
    %v1264 = vpack.c.bf16 %v1258, %v1257
    %v1265 = vpack.c.bf16 %v1260, %v1259
    %v1266 = vpack.c.bf16 %v1262, %v1261
    %1271 = vrot.lane.b32.xlu0 %v753, 96
    %v1272 = vpop.permute.xlu0 %1271
    %1273 = vrot.lane.b32.xlu0 %v756, 96
    %v1274 = vpop.permute.xlu0 %1273
    %1275 = vrot.lane.b32.xlu0 %v759, 96
    %v1276 = vpop.permute.xlu0 %1275
    %1277 = vrot.lane.b32.xlu0 %v762, 96
    %v1278 = vpop.permute.xlu0 %1277
    %v1284 = vsel %vm892, %v1263, 0
    %v1287 = vsel %vm892, %v1264, 0
    %v1290 = vsel %vm892, %v1265, 0
    %v1293 = vsel %vm892, %v1266, 0
    %1295 = vmatprep.subr.bf16.mxu0 0
    %1296 = vmatpush1.bf16.msra.mxu0 0
    %1297 = vmatprep.subr.bf16.mxu0 0
    %1298 = vmatpush1.bf16.msra.mxu0 0
    %1299 = vmatprep.subr.bf16.mxu0 0
    %1300 = vmatpush1.bf16.msra.mxu0 0
    %1301 = vmatprep.subr.bf16.mxu0 0
    %1302 = vmatpush1.bf16.msra.mxu0 0
    %1303 = vmatprep.subr.bf16.mxu0 0
    %1304 = vmatpush1.bf16.msra.mxu0 %v1278
    %1305 = vmatprep.subr.bf16.mxu0 0
    %1306 = vmatpush1.bf16.msra.mxu0 %v1276
    %1307 = vmatprep.subr.bf16.mxu0 0
    %1308 = vmatpush1.bf16.msra.mxu0 %v1274
    %1309 = vmatprep.subr.bf16.mxu0 0
    %1310 = vmatpush1.bf16.msra.mxu0 %v1272
    %1311 = vmatprep.subr.bf16.mxu0 0
    %1312 = vmatpush2.bf16.msra.mxu0 0
    %1313 = vmatprep.subr.bf16.mxu0 0
    %1314 = vmatpush2.bf16.msra.mxu0 0
    %1315 = vmatprep.subr.bf16.mxu0 0
    %1316 = vmatpush2.bf16.msra.mxu0 0
    %1317 = vmatprep.subr.bf16.mxu0 0
    %1318 = vmatpush2.bf16.msra.mxu0 0
    %1319 = vmatprep.subr.bf16.mxu0 0
    %1320 = vmatpush2.bf16.msra.mxu0 0
    %1321 = vmatprep.subr.bf16.mxu0 0
    %1322 = vmatpush2.bf16.msra.mxu0 0
    %1323 = vmatprep.subr.bf16.mxu0 0
    %1324 = vmatpush2.bf16.msra.mxu0 0
    %1325 = vmatprep.subr.bf16.mxu0 0
    %1326 = vmatpush2.bf16.msra.mxu0 0
    %1327 = vmatprep.mubr.bf16.mxu0 0
    %1328 = vmatmul.mubr.bf16.gmra.mxu0 %v1284
    %v1329 = vpop.f32.mrf.mxu0
    %v1330 = vadd.f32 0.0, %v1329
    %v1331 = vpop.f32.mrf.mxu0
    %v1332 = vpop.f32.mrf.mxu0
    %v1333 = vadd.f32 0.0, %v1332
    %v1334 = vpop.f32.mrf.mxu0
    %1335 = vmatprep.mubr.bf16.mxu0 0
    %1336 = vmatmul.mubr.bf16.gmra.mxu0 %v1287
    %v1337 = vpop.f32.mrf.mxu0
    %v1338 = vadd.f32 0.0, %v1337
    %v1339 = vpop.f32.mrf.mxu0
    %v1340 = vpop.f32.mrf.mxu0
    %v1341 = vadd.f32 0.0, %v1340
    %v1342 = vpop.f32.mrf.mxu0
    %1343 = vmatprep.mubr.bf16.mxu0 0
    %1344 = vmatmul.mubr.bf16.gmra.mxu0 %v1290
    %v1345 = vpop.f32.mrf.mxu0
    %v1346 = vadd.f32 0.0, %v1345
    %v1347 = vpop.f32.mrf.mxu0
    %v1348 = vpop.f32.mrf.mxu0
    %v1349 = vadd.f32 0.0, %v1348
    %v1350 = vpop.f32.mrf.mxu0
    %1351 = vmatprep.mubr.bf16.mxu0 0
    %1352 = vmatmul.mubr.bf16.gmra.mxu0 %v1293
    %v1353 = vpop.f32.mrf.mxu0
    %v1354 = vadd.f32 0.0, %v1353
    %v1355 = vpop.f32.mrf.mxu0
    %v1356 = vpop.f32.mrf.mxu0
    %v1357 = vadd.f32 0.0, %v1356
    %v1358 = vpop.f32.mrf.mxu0
    %1359 = vdwg.mxu0
    %1360 = vrot.lane.b32.xlu0 %v751, 64
    %v1361 = vpop.permute.xlu0 %1360
    %1362 = vrot.lane.b32.xlu0 %v754, 64
    %v1363 = vpop.permute.xlu0 %1362
    %1364 = vrot.lane.b32.xlu0 %v757, 64
    %v1365 = vpop.permute.xlu0 %1364
    %1366 = vrot.lane.b32.xlu0 %v760, 64
    %v1367 = vpop.permute.xlu0 %1366
    %1368 = vrot.lane.b32.xlu0 %v752, 64
    %v1369 = vpop.permute.xlu0 %1368
    %1370 = vrot.lane.b32.xlu0 %v755, 64
    %v1371 = vpop.permute.xlu0 %1370
    %1372 = vrot.lane.b32.xlu0 %v758, 64
    %v1373 = vpop.permute.xlu0 %1372
    %1374 = vrot.lane.b32.xlu0 %v761, 64
    %v1375 = vpop.permute.xlu0 %1374
    %v1377 = vsel %vm802, %v1361, 0
    %v1380 = vsel %vm802, %v1363, 0
    %v1383 = vsel %vm802, %v1365, 0
    %v1386 = vsel %vm802, %v1367, 0
    %v1389 = vsel %vm802, %v1369, 0
    %v1392 = vsel %vm802, %v1371, 0
    %v1395 = vsel %vm802, %v1373, 0
    %v1398 = vsel %vm802, %v1375, 0
    %1400 = vmatprep.subr.bf16.mxu0 0
    %1401 = vmatpush1.bf16.xpose.msra.mxu0 0
    %1402 = vmatprep.subr.bf16.mxu0 0
    %1403 = vmatpush1.bf16.xpose.msra.mxu0 0
    %1404 = vmatprep.subr.bf16.mxu0 0
    %1405 = vmatpush1.bf16.xpose.msra.mxu0 0
    %1406 = vmatprep.subr.bf16.mxu0 0
    %1407 = vmatpush1.bf16.xpose.msra.mxu0 0
    %1408 = vmatprep.subr.bf16.mxu0 0
    %1409 = vmatpush1.bf16.xpose.msra.mxu0 %v1398
    %1410 = vmatprep.subr.bf16.mxu0 0
    %1411 = vmatpush1.bf16.xpose.msra.mxu0 %v1395
    %1412 = vmatprep.subr.bf16.mxu0 0
    %1413 = vmatpush1.bf16.xpose.msra.mxu0 %v1392
    %1414 = vmatprep.subr.bf16.mxu0 0
    %1415 = vmatpush1.bf16.xpose.msra.mxu0 %v1389
    %1416 = vmatprep.subr.bf16.mxu0 0
    %1417 = vmatpush2.bf16.xpose.msra.mxu0 0
    %1418 = vmatprep.subr.bf16.mxu0 0
    %1419 = vmatpush2.bf16.xpose.msra.mxu0 0
    %1420 = vmatprep.subr.bf16.mxu0 0
    %1421 = vmatpush2.bf16.xpose.msra.mxu0 0
    %1422 = vmatprep.subr.bf16.mxu0 0
    %1423 = vmatpush2.bf16.xpose.msra.mxu0 0
    %1424 = vmatprep.subr.bf16.mxu0 0
    %1425 = vmatpush2.bf16.xpose.msra.mxu0 0
    %1426 = vmatprep.subr.bf16.mxu0 0
    %1427 = vmatpush2.bf16.xpose.msra.mxu0 0
    %1428 = vmatprep.subr.bf16.mxu0 0
    %1429 = vmatpush2.bf16.xpose.msra.mxu0 0
    %1430 = vmatprep.subr.bf16.mxu0 0
    %1431 = vmatpush2.bf16.xpose.msra.mxu0 0
    %1432 = vmatprep.mubr.bf16.mxu0 0
    %1433 = vmatmul.mubr.bf16.gmra.mxu0 %v1377
    %v1434 = vpop.f32.mrf.mxu0
    %v1435 = vadd.f32 %v794, %v1434
    %v1436 = vpop.f32.mrf.mxu0
    %v1437 = vpop.f32.mrf.mxu0
    %v1438 = vadd.f32 %v795, %v1437
    %v1439 = vpop.f32.mrf.mxu0
    %1440 = vmatprep.mubr.bf16.mxu0 0
    %1441 = vmatmul.mubr.bf16.gmra.mxu0 %v1380
    %v1442 = vpop.f32.mrf.mxu0
    %v1443 = vadd.f32 %v796, %v1442
    %v1444 = vpop.f32.mrf.mxu0
    %v1445 = vpop.f32.mrf.mxu0
    %v1446 = vadd.f32 %v797, %v1445
    %v1447 = vpop.f32.mrf.mxu0
    %1448 = vmatprep.mubr.bf16.mxu0 0
    %1449 = vmatmul.mubr.bf16.gmra.mxu0 %v1383
    %v1450 = vpop.f32.mrf.mxu0
    %v1451 = vadd.f32 %v798, %v1450
    %v1452 = vpop.f32.mrf.mxu0
    %v1453 = vpop.f32.mrf.mxu0
    %v1454 = vadd.f32 %v799, %v1453
    %v1455 = vpop.f32.mrf.mxu0
    %1456 = vmatprep.mubr.bf16.mxu0 0
    %1457 = vmatmul.mubr.bf16.gmra.mxu0 %v1386
    %v1458 = vpop.f32.mrf.mxu0
    %v1459 = vadd.f32 %v800, %v1458
    %v1460 = vpop.f32.mrf.mxu0
    %v1461 = vpop.f32.mrf.mxu0
    %v1462 = vadd.f32 %v801, %v1461
    %v1463 = vpop.f32.mrf.mxu0
    %1464 = vdwg.mxu0
    %v1465 = vsel %vm892, %v1435, -inf
    %1466 = vmax.xlane.f32.xlu0 %v1465
    %v1467 = vpop.xlane.xlu0 %1466
    %v1468 = vsel %vm892, %v1438, -inf
    %1469 = vmax.xlane.f32.xlu0 %v1468
    %v1470 = vpop.xlane.xlu0 %1469
    %v1471 = vsel %vm892, %v1443, -inf
    %1472 = vmax.xlane.f32.xlu0 %v1471
    %v1473 = vpop.xlane.xlu0 %1472
    %v1474 = vsel %vm892, %v1446, -inf
    %1475 = vmax.xlane.f32.xlu0 %v1474
    %v1476 = vpop.xlane.xlu0 %1475
    %v1477 = vsel %vm892, %v1451, -inf
    %1478 = vmax.xlane.f32.xlu0 %v1477
    %v1479 = vpop.xlane.xlu0 %1478
    %v1480 = vsel %vm892, %v1454, -inf
    %1481 = vmax.xlane.f32.xlu0 %v1480
    %v1482 = vpop.xlane.xlu0 %1481
    %v1483 = vsel %vm892, %v1459, -inf
    %1484 = vmax.xlane.f32.xlu0 %v1483
    %v1485 = vpop.xlane.xlu0 %1484
    %v1486 = vsel %vm892, %v1462, -inf
    %1487 = vmax.xlane.f32.xlu0 %v1486
    %v1488 = vpop.xlane.xlu0 %1487
    %v1489 = vsub.f32 %v1435, %v1467
    %v1490 = vsub.f32 %v1438, %v1470
    %v1491 = vsub.f32 %v1443, %v1473
    %v1492 = vsub.f32 %v1446, %v1476
    %v1493 = vsub.f32 %v1451, %v1479
    %v1494 = vsub.f32 %v1454, %v1482
    %v1495 = vsub.f32 %v1459, %v1485
    %v1496 = vsub.f32 %v1462, %v1488
    %v1497 = vmul.f32 %v1489, 1.442695
    %v1498 = vpow.pop %v1497
    %v1499 = vmul.f32 %v1490, 1.442695
    %v1500 = vpow.pop %v1499
    %v1501 = vmul.f32 %v1491, 1.442695
    %v1502 = vpow.pop %v1501
    %v1503 = vmul.f32 %v1492, 1.442695
    %v1504 = vpow.pop %v1503
    %v1505 = vmul.f32 %v1493, 1.442695
    %v1506 = vpow.pop %v1505
    %v1507 = vmul.f32 %v1494, 1.442695
    %v1508 = vpow.pop %v1507
    %v1509 = vmul.f32 %v1495, 1.442695
    %v1510 = vpow.pop %v1509
    %v1511 = vmul.f32 %v1496, 1.442695
    %v1512 = vpow.pop %v1511
    %v1513 = vsel %vm892, %v1498, 0.0
    %1514 = vadd.xlane.f32.xlu0 %v1513
    %v1515 = vpop.xlane.xlu0 %1514
    %v1516 = vsel %vm892, %v1500, 0.0
    %1517 = vadd.xlane.f32.xlu0 %v1516
    %v1518 = vpop.xlane.xlu0 %1517
    %v1519 = vsel %vm892, %v1502, 0.0
    %1520 = vadd.xlane.f32.xlu0 %v1519
    %v1521 = vpop.xlane.xlu0 %1520
    %v1522 = vsel %vm892, %v1504, 0.0
    %1523 = vadd.xlane.f32.xlu0 %v1522
    %v1524 = vpop.xlane.xlu0 %1523
    %v1525 = vsel %vm892, %v1506, 0.0
    %1526 = vadd.xlane.f32.xlu0 %v1525
    %v1527 = vpop.xlane.xlu0 %1526
    %v1528 = vsel %vm892, %v1508, 0.0
    %1529 = vadd.xlane.f32.xlu0 %v1528
    %v1530 = vpop.xlane.xlu0 %1529
    %v1531 = vsel %vm892, %v1510, 0.0
    %1532 = vadd.xlane.f32.xlu0 %v1531
    %v1533 = vpop.xlane.xlu0 %1532
    %v1534 = vsel %vm892, %v1512, 0.0
    %1535 = vadd.xlane.f32.xlu0 %v1534
    %v1536 = vpop.xlane.xlu0 %1535
    %v1537 = vrcp.pop %v1515
    %v1538 = vrcp.pop %v1518
    %v1539 = vrcp.pop %v1521
    %v1540 = vrcp.pop %v1524
    %v1541 = vrcp.pop %v1527
    %v1542 = vrcp.pop %v1530
    %v1543 = vrcp.pop %v1533
    %v1544 = vrcp.pop %v1536
    %v1545 = vmul.f32 %v1498, %v1537
    %v1546 = vmul.f32 %v1500, %v1538
    %v1547 = vmul.f32 %v1502, %v1539
    %v1548 = vmul.f32 %v1504, %v1540
    %v1549 = vmul.f32 %v1506, %v1541
    %v1550 = vmul.f32 %v1508, %v1542
    %v1551 = vmul.f32 %v1510, %v1543
    %v1552 = vmul.f32 %v1512, %v1544
    %v1553 = vpack.c.bf16 %v1546, %v1545
    %v1554 = vpack.c.bf16 %v1548, %v1547
    %v1555 = vpack.c.bf16 %v1550, %v1549
    %v1556 = vpack.c.bf16 %v1552, %v1551
    %1557 = vrot.lane.b32.xlu0 %v753, 64
    %v1558 = vpop.permute.xlu0 %1557
    %1559 = vrot.lane.b32.xlu0 %v756, 64
    %v1560 = vpop.permute.xlu0 %1559
    %1561 = vrot.lane.b32.xlu0 %v759, 64
    %v1562 = vpop.permute.xlu0 %1561
    %1563 = vrot.lane.b32.xlu0 %v762, 64
    %v1564 = vpop.permute.xlu0 %1563
    %v1570 = vsel %vm892, %v1553, 0
    %v1573 = vsel %vm892, %v1554, 0
    %v1576 = vsel %vm892, %v1555, 0
    %v1579 = vsel %vm892, %v1556, 0
    %1581 = vmatprep.subr.bf16.mxu0 0
    %1582 = vmatpush1.bf16.msra.mxu0 0
    %1583 = vmatprep.subr.bf16.mxu0 0
    %1584 = vmatpush1.bf16.msra.mxu0 0
    %1585 = vmatprep.subr.bf16.mxu0 0
    %1586 = vmatpush1.bf16.msra.mxu0 0
    %1587 = vmatprep.subr.bf16.mxu0 0
    %1588 = vmatpush1.bf16.msra.mxu0 0
    %1589 = vmatprep.subr.bf16.mxu0 0
    %1590 = vmatpush1.bf16.msra.mxu0 %v1564
    %1591 = vmatprep.subr.bf16.mxu0 0
    %1592 = vmatpush1.bf16.msra.mxu0 %v1562
    %1593 = vmatprep.subr.bf16.mxu0 0
    %1594 = vmatpush1.bf16.msra.mxu0 %v1560
    %1595 = vmatprep.subr.bf16.mxu0 0
    %1596 = vmatpush1.bf16.msra.mxu0 %v1558
    %1597 = vmatprep.subr.bf16.mxu0 0
    %1598 = vmatpush2.bf16.msra.mxu0 0
    %1599 = vmatprep.subr.bf16.mxu0 0
    %1600 = vmatpush2.bf16.msra.mxu0 0
    %1601 = vmatprep.subr.bf16.mxu0 0
    %1602 = vmatpush2.bf16.msra.mxu0 0
    %1603 = vmatprep.subr.bf16.mxu0 0
    %1604 = vmatpush2.bf16.msra.mxu0 0
    %1605 = vmatprep.subr.bf16.mxu0 0
    %1606 = vmatpush2.bf16.msra.mxu0 0
    %1607 = vmatprep.subr.bf16.mxu0 0
    %1608 = vmatpush2.bf16.msra.mxu0 0
    %1609 = vmatprep.subr.bf16.mxu0 0
    %1610 = vmatpush2.bf16.msra.mxu0 0
    %1611 = vmatprep.subr.bf16.mxu0 0
    %1612 = vmatpush2.bf16.msra.mxu0 0
    %1613 = vmatprep.mubr.bf16.mxu0 0
    %1614 = vmatmul.mubr.bf16.gmra.mxu0 %v1570
    %v1615 = vpop.f32.mrf.mxu0
    %v1616 = vadd.f32 0.0, %v1615
    %v1617 = vpop.f32.mrf.mxu0
    %v1618 = vpop.f32.mrf.mxu0
    %v1619 = vadd.f32 0.0, %v1618
    %v1620 = vpop.f32.mrf.mxu0
    %1621 = vmatprep.mubr.bf16.mxu0 0
    %1622 = vmatmul.mubr.bf16.gmra.mxu0 %v1573
    %v1623 = vpop.f32.mrf.mxu0
    %v1624 = vadd.f32 0.0, %v1623
    %v1625 = vpop.f32.mrf.mxu0
    %v1626 = vpop.f32.mrf.mxu0
    %v1627 = vadd.f32 0.0, %v1626
    %v1628 = vpop.f32.mrf.mxu0
    %1629 = vmatprep.mubr.bf16.mxu0 0
    %1630 = vmatmul.mubr.bf16.gmra.mxu0 %v1576
    %v1631 = vpop.f32.mrf.mxu0
    %v1632 = vadd.f32 0.0, %v1631
    %v1633 = vpop.f32.mrf.mxu0
    %v1634 = vpop.f32.mrf.mxu0
    %v1635 = vadd.f32 0.0, %v1634
    %v1636 = vpop.f32.mrf.mxu0
    %1637 = vmatprep.mubr.bf16.mxu0 0
    %1638 = vmatmul.mubr.bf16.gmra.mxu0 %v1579
    %v1639 = vpop.f32.mrf.mxu0
    %v1640 = vadd.f32 0.0, %v1639
    %v1641 = vpop.f32.mrf.mxu0
    %v1642 = vpop.f32.mrf.mxu0
    %v1643 = vadd.f32 0.0, %v1642
    %v1644 = vpop.f32.mrf.mxu0
    %1645 = vdwg.mxu0
    %1646 = vrot.lane.b32.xlu0 %v751, 32
    %v1647 = vpop.permute.xlu0 %1646
    %1648 = vrot.lane.b32.xlu0 %v754, 32
    %v1649 = vpop.permute.xlu0 %1648
    %1650 = vrot.lane.b32.xlu0 %v757, 32
    %v1651 = vpop.permute.xlu0 %1650
    %1652 = vrot.lane.b32.xlu0 %v760, 32
    %v1653 = vpop.permute.xlu0 %1652
    %1654 = vrot.lane.b32.xlu0 %v752, 32
    %v1655 = vpop.permute.xlu0 %1654
    %1656 = vrot.lane.b32.xlu0 %v755, 32
    %v1657 = vpop.permute.xlu0 %1656
    %1658 = vrot.lane.b32.xlu0 %v758, 32
    %v1659 = vpop.permute.xlu0 %1658
    %1660 = vrot.lane.b32.xlu0 %v761, 32
    %v1661 = vpop.permute.xlu0 %1660
    %v1663 = vsel %vm802, %v1647, 0
    %v1666 = vsel %vm802, %v1649, 0
    %v1669 = vsel %vm802, %v1651, 0
    %v1672 = vsel %vm802, %v1653, 0
    %v1675 = vsel %vm802, %v1655, 0
    %v1678 = vsel %vm802, %v1657, 0
    %v1681 = vsel %vm802, %v1659, 0
    %v1684 = vsel %vm802, %v1661, 0
    %1686 = vmatprep.subr.bf16.mxu0 0
    %1687 = vmatpush1.bf16.xpose.msra.mxu0 0
    %1688 = vmatprep.subr.bf16.mxu0 0
    %1689 = vmatpush1.bf16.xpose.msra.mxu0 0
    %1690 = vmatprep.subr.bf16.mxu0 0
    %1691 = vmatpush1.bf16.xpose.msra.mxu0 0
    %1692 = vmatprep.subr.bf16.mxu0 0
    %1693 = vmatpush1.bf16.xpose.msra.mxu0 0
    %1694 = vmatprep.subr.bf16.mxu0 0
    %1695 = vmatpush1.bf16.xpose.msra.mxu0 %v1684
    %1696 = vmatprep.subr.bf16.mxu0 0
    %1697 = vmatpush1.bf16.xpose.msra.mxu0 %v1681
    %1698 = vmatprep.subr.bf16.mxu0 0
    %1699 = vmatpush1.bf16.xpose.msra.mxu0 %v1678
    %1700 = vmatprep.subr.bf16.mxu0 0
    %1701 = vmatpush1.bf16.xpose.msra.mxu0 %v1675
    %1702 = vmatprep.subr.bf16.mxu0 0
    %1703 = vmatpush2.bf16.xpose.msra.mxu0 0
    %1704 = vmatprep.subr.bf16.mxu0 0
    %1705 = vmatpush2.bf16.xpose.msra.mxu0 0
    %1706 = vmatprep.subr.bf16.mxu0 0
    %1707 = vmatpush2.bf16.xpose.msra.mxu0 0
    %1708 = vmatprep.subr.bf16.mxu0 0
    %1709 = vmatpush2.bf16.xpose.msra.mxu0 0
    %1710 = vmatprep.subr.bf16.mxu0 0
    %1711 = vmatpush2.bf16.xpose.msra.mxu0 0
    %1712 = vmatprep.subr.bf16.mxu0 0
    %1713 = vmatpush2.bf16.xpose.msra.mxu0 0
    %1714 = vmatprep.subr.bf16.mxu0 0
    %1715 = vmatpush2.bf16.xpose.msra.mxu0 0
    %1716 = vmatprep.subr.bf16.mxu0 0
    %1717 = vmatpush2.bf16.xpose.msra.mxu0 0
    %1718 = vmatprep.mubr.bf16.mxu0 0
    %1719 = vmatmul.mubr.bf16.gmra.mxu0 %v1663
    %v1720 = vpop.f32.mrf.mxu0
    %v1721 = vadd.f32 %v794, %v1720
    %v1722 = vpop.f32.mrf.mxu0
    %v1723 = vpop.f32.mrf.mxu0
    %v1724 = vadd.f32 %v795, %v1723
    %v1725 = vpop.f32.mrf.mxu0
    %1726 = vmatprep.mubr.bf16.mxu0 0
    %1727 = vmatmul.mubr.bf16.gmra.mxu0 %v1666
    %v1728 = vpop.f32.mrf.mxu0
    %v1729 = vadd.f32 %v796, %v1728
    %v1730 = vpop.f32.mrf.mxu0
    %v1731 = vpop.f32.mrf.mxu0
    %v1732 = vadd.f32 %v797, %v1731
    %v1733 = vpop.f32.mrf.mxu0
    %1734 = vmatprep.mubr.bf16.mxu0 0
    %1735 = vmatmul.mubr.bf16.gmra.mxu0 %v1669
    %v1736 = vpop.f32.mrf.mxu0
    %v1737 = vadd.f32 %v798, %v1736
    %v1738 = vpop.f32.mrf.mxu0
    %v1739 = vpop.f32.mrf.mxu0
    %v1740 = vadd.f32 %v799, %v1739
    %v1741 = vpop.f32.mrf.mxu0
    %1742 = vmatprep.mubr.bf16.mxu0 0
    %1743 = vmatmul.mubr.bf16.gmra.mxu0 %v1672
    %v1744 = vpop.f32.mrf.mxu0
    %v1745 = vadd.f32 %v800, %v1744
    %v1746 = vpop.f32.mrf.mxu0
    %v1747 = vpop.f32.mrf.mxu0
    %v1748 = vadd.f32 %v801, %v1747
    %v1749 = vpop.f32.mrf.mxu0
    %1750 = vdwg.mxu0
    %v1751 = vsel %vm892, %v1721, -inf
    %1752 = vmax.xlane.f32.xlu0 %v1751
    %v1753 = vpop.xlane.xlu0 %1752
    %v1754 = vsel %vm892, %v1724, -inf
    %1755 = vmax.xlane.f32.xlu0 %v1754
    %v1756 = vpop.xlane.xlu0 %1755
    %v1757 = vsel %vm892, %v1729, -inf
    %1758 = vmax.xlane.f32.xlu0 %v1757
    %v1759 = vpop.xlane.xlu0 %1758
    %v1760 = vsel %vm892, %v1732, -inf
    %1761 = vmax.xlane.f32.xlu0 %v1760
    %v1762 = vpop.xlane.xlu0 %1761
    %v1763 = vsel %vm892, %v1737, -inf
    %1764 = vmax.xlane.f32.xlu0 %v1763
    %v1765 = vpop.xlane.xlu0 %1764
    %v1766 = vsel %vm892, %v1740, -inf
    %1767 = vmax.xlane.f32.xlu0 %v1766
    %v1768 = vpop.xlane.xlu0 %1767
    %v1769 = vsel %vm892, %v1745, -inf
    %1770 = vmax.xlane.f32.xlu0 %v1769
    %v1771 = vpop.xlane.xlu0 %1770
    %v1772 = vsel %vm892, %v1748, -inf
    %1773 = vmax.xlane.f32.xlu0 %v1772
    %v1774 = vpop.xlane.xlu0 %1773
    %v1775 = vsub.f32 %v1721, %v1753
    %v1776 = vsub.f32 %v1724, %v1756
    %v1777 = vsub.f32 %v1729, %v1759
    %v1778 = vsub.f32 %v1732, %v1762
    %v1779 = vsub.f32 %v1737, %v1765
    %v1780 = vsub.f32 %v1740, %v1768
    %v1781 = vsub.f32 %v1745, %v1771
    %v1782 = vsub.f32 %v1748, %v1774
    %v1783 = vmul.f32 %v1775, 1.442695
    %v1784 = vpow.pop %v1783
    %v1785 = vmul.f32 %v1776, 1.442695
    %v1786 = vpow.pop %v1785
    %v1787 = vmul.f32 %v1777, 1.442695
    %v1788 = vpow.pop %v1787
    %v1789 = vmul.f32 %v1778, 1.442695
    %v1790 = vpow.pop %v1789
    %v1791 = vmul.f32 %v1779, 1.442695
    %v1792 = vpow.pop %v1791
    %v1793 = vmul.f32 %v1780, 1.442695
    %v1794 = vpow.pop %v1793
    %v1795 = vmul.f32 %v1781, 1.442695
    %v1796 = vpow.pop %v1795
    %v1797 = vmul.f32 %v1782, 1.442695
    %v1798 = vpow.pop %v1797
    %v1799 = vsel %vm892, %v1784, 0.0
    %1800 = vadd.xlane.f32.xlu0 %v1799
    %v1801 = vpop.xlane.xlu0 %1800
    %v1802 = vsel %vm892, %v1786, 0.0
    %1803 = vadd.xlane.f32.xlu0 %v1802
    %v1804 = vpop.xlane.xlu0 %1803
    %v1805 = vsel %vm892, %v1788, 0.0
    %1806 = vadd.xlane.f32.xlu0 %v1805
    %v1807 = vpop.xlane.xlu0 %1806
    %v1808 = vsel %vm892, %v1790, 0.0
    %1809 = vadd.xlane.f32.xlu0 %v1808
    %v1810 = vpop.xlane.xlu0 %1809
    %v1811 = vsel %vm892, %v1792, 0.0
    %1812 = vadd.xlane.f32.xlu0 %v1811
    %v1813 = vpop.xlane.xlu0 %1812
    %v1814 = vsel %vm892, %v1794, 0.0
    %1815 = vadd.xlane.f32.xlu0 %v1814
    %v1816 = vpop.xlane.xlu0 %1815
    %v1817 = vsel %vm892, %v1796, 0.0
    %1818 = vadd.xlane.f32.xlu0 %v1817
    %v1819 = vpop.xlane.xlu0 %1818
    %v1820 = vsel %vm892, %v1798, 0.0
    %1821 = vadd.xlane.f32.xlu0 %v1820
    %v1822 = vpop.xlane.xlu0 %1821
    %v1823 = vrcp.pop %v1801
    %v1824 = vrcp.pop %v1804
    %v1825 = vrcp.pop %v1807
    %v1826 = vrcp.pop %v1810
    %v1827 = vrcp.pop %v1813
    %v1828 = vrcp.pop %v1816
    %v1829 = vrcp.pop %v1819
    %v1830 = vrcp.pop %v1822
    %v1831 = vmul.f32 %v1784, %v1823
    %v1832 = vmul.f32 %v1786, %v1824
    %v1833 = vmul.f32 %v1788, %v1825
    %v1834 = vmul.f32 %v1790, %v1826
    %v1835 = vmul.f32 %v1792, %v1827
    %v1836 = vmul.f32 %v1794, %v1828
    %v1837 = vmul.f32 %v1796, %v1829
    %v1838 = vmul.f32 %v1798, %v1830
    %v1839 = vpack.c.bf16 %v1832, %v1831
    %v1840 = vpack.c.bf16 %v1834, %v1833
    %v1841 = vpack.c.bf16 %v1836, %v1835
    %v1842 = vpack.c.bf16 %v1838, %v1837
    %1843 = vrot.lane.b32.xlu0 %v753, 32
    %v1844 = vpop.permute.xlu0 %1843
    %1845 = vrot.lane.b32.xlu0 %v756, 32
    %v1846 = vpop.permute.xlu0 %1845
    %1847 = vrot.lane.b32.xlu0 %v759, 32
    %v1848 = vpop.permute.xlu0 %1847
    %1849 = vrot.lane.b32.xlu0 %v762, 32
    %v1850 = vpop.permute.xlu0 %1849
    %v1856 = vsel %vm892, %v1839, 0
    %v1859 = vsel %vm892, %v1840, 0
    %v1862 = vsel %vm892, %v1841, 0
    %v1865 = vsel %vm892, %v1842, 0
    %1867 = vmatprep.subr.bf16.mxu0 0
    %1868 = vmatpush1.bf16.msra.mxu0 0
    %1869 = vmatprep.subr.bf16.mxu0 0
    %1870 = vmatpush1.bf16.msra.mxu0 0
    %1871 = vmatprep.subr.bf16.mxu0 0
    %1872 = vmatpush1.bf16.msra.mxu0 0
    %1873 = vmatprep.subr.bf16.mxu0 0
    %1874 = vmatpush1.bf16.msra.mxu0 0
    %1875 = vmatprep.subr.bf16.mxu0 0
    %1876 = vmatpush1.bf16.msra.mxu0 %v1850
    %1877 = vmatprep.subr.bf16.mxu0 0
    %1878 = vmatpush1.bf16.msra.mxu0 %v1848
    %1879 = vmatprep.subr.bf16.mxu0 0
    %1880 = vmatpush1.bf16.msra.mxu0 %v1846
    %1881 = vmatprep.subr.bf16.mxu0 0
    %1882 = vmatpush1.bf16.msra.mxu0 %v1844
    %1883 = vmatprep.subr.bf16.mxu0 0
    %1884 = vmatpush2.bf16.msra.mxu0 0
    %1885 = vmatprep.subr.bf16.mxu0 0
    %1886 = vmatpush2.bf16.msra.mxu0 0
    %1887 = vmatprep.subr.bf16.mxu0 0
    %1888 = vmatpush2.bf16.msra.mxu0 0
    %1889 = vmatprep.subr.bf16.mxu0 0
    %1890 = vmatpush2.bf16.msra.mxu0 0
    %1891 = vmatprep.subr.bf16.mxu0 0
    %1892 = vmatpush2.bf16.msra.mxu0 0
    %1893 = vmatprep.subr.bf16.mxu0 0
    %1894 = vmatpush2.bf16.msra.mxu0 0
    %1895 = vmatprep.subr.bf16.mxu0 0
    %1896 = vmatpush2.bf16.msra.mxu0 0
    %1897 = vmatprep.subr.bf16.mxu0 0
    %1898 = vmatpush2.bf16.msra.mxu0 0
    %1899 = vmatprep.mubr.bf16.mxu0 0
    %1900 = vmatmul.mubr.bf16.gmra.mxu0 %v1856
    %v1901 = vpop.f32.mrf.mxu0
    %v1902 = vadd.f32 0.0, %v1901
    %v1903 = vpop.f32.mrf.mxu0
    %v1904 = vpop.f32.mrf.mxu0
    %v1905 = vadd.f32 0.0, %v1904
    %v1906 = vpop.f32.mrf.mxu0
    %1907 = vmatprep.mubr.bf16.mxu0 0
    %1908 = vmatmul.mubr.bf16.gmra.mxu0 %v1859
    %v1909 = vpop.f32.mrf.mxu0
    %v1910 = vadd.f32 0.0, %v1909
    %v1911 = vpop.f32.mrf.mxu0
    %v1912 = vpop.f32.mrf.mxu0
    %v1913 = vadd.f32 0.0, %v1912
    %v1914 = vpop.f32.mrf.mxu0
    %1915 = vmatprep.mubr.bf16.mxu0 0
    %1916 = vmatmul.mubr.bf16.gmra.mxu0 %v1862
    %v1917 = vpop.f32.mrf.mxu0
    %v1918 = vadd.f32 0.0, %v1917
    %v1919 = vpop.f32.mrf.mxu0
    %v1920 = vpop.f32.mrf.mxu0
    %v1921 = vadd.f32 0.0, %v1920
    %v1922 = vpop.f32.mrf.mxu0
    %1923 = vmatprep.mubr.bf16.mxu0 0
    %1924 = vmatmul.mubr.bf16.gmra.mxu0 %v1865
    %v1925 = vpop.f32.mrf.mxu0
    %v1926 = vadd.f32 0.0, %v1925
    %v1927 = vpop.f32.mrf.mxu0
    %v1928 = vpop.f32.mrf.mxu0
    %v1929 = vadd.f32 0.0, %v1928
    %v1930 = vpop.f32.mrf.mxu0
    %1931 = vdwg.mxu0
    %1940 = vrot.lane.b32.xlu0 %v1330, 32
    %v1941 = vpop.permute.xlu0 %1940
    %1942 = vrot.lane.b32.xlu0 %v1333, 32
    %v1943 = vpop.permute.xlu0 %1942
    %1944 = vrot.lane.b32.xlu0 %v1338, 32
    %v1945 = vpop.permute.xlu0 %1944
    %1946 = vrot.lane.b32.xlu0 %v1341, 32
    %v1947 = vpop.permute.xlu0 %1946
    %1948 = vrot.lane.b32.xlu0 %v1346, 32
    %v1949 = vpop.permute.xlu0 %1948
    %1950 = vrot.lane.b32.xlu0 %v1349, 32
    %v1951 = vpop.permute.xlu0 %1950
    %1952 = vrot.lane.b32.xlu0 %v1354, 32
    %v1953 = vpop.permute.xlu0 %1952
    %1954 = vrot.lane.b32.xlu0 %v1357, 32
    %v1955 = vpop.permute.xlu0 %1954
    %1972 = vrot.lane.b32.xlu0 %v1616, 64
    %v1973 = vpop.permute.xlu0 %1972
    %1974 = vrot.lane.b32.xlu0 %v1619, 64
    %v1975 = vpop.permute.xlu0 %1974
    %1976 = vrot.lane.b32.xlu0 %v1624, 64
    %v1977 = vpop.permute.xlu0 %1976
    %1978 = vrot.lane.b32.xlu0 %v1627, 64
    %v1979 = vpop.permute.xlu0 %1978
    %1980 = vrot.lane.b32.xlu0 %v1632, 64
    %v1981 = vpop.permute.xlu0 %1980
    %1982 = vrot.lane.b32.xlu0 %v1635, 64
    %v1983 = vpop.permute.xlu0 %1982
    %1984 = vrot.lane.b32.xlu0 %v1640, 64
    %v1985 = vpop.permute.xlu0 %1984
    %1986 = vrot.lane.b32.xlu0 %v1643, 64
    %v1987 = vpop.permute.xlu0 %1986
    %2004 = vrot.lane.b32.xlu0 %v1902, 96
    %v2005 = vpop.permute.xlu0 %2004
    %2006 = vrot.lane.b32.xlu0 %v1905, 96
    %v2007 = vpop.permute.xlu0 %2006
    %2008 = vrot.lane.b32.xlu0 %v1910, 96
    %v2009 = vpop.permute.xlu0 %2008
    %2010 = vrot.lane.b32.xlu0 %v1913, 96
    %v2011 = vpop.permute.xlu0 %2010
    %2012 = vrot.lane.b32.xlu0 %v1918, 96
    %v2013 = vpop.permute.xlu0 %2012
    %2014 = vrot.lane.b32.xlu0 %v1921, 96
    %v2015 = vpop.permute.xlu0 %2014
    %2016 = vrot.lane.b32.xlu0 %v1926, 96
    %v2017 = vpop.permute.xlu0 %2016
    %2018 = vrot.lane.b32.xlu0 %v1929, 96
    %v2019 = vpop.permute.xlu0 %2018
    %v2028 = vsel %vm802, %v1032, %v1941
    %v2029 = vsel %vm802, %v1035, %v1943
    %v2030 = vsel %vm802, %v1040, %v1945
    %v2031 = vsel %vm802, %v1043, %v1947
    %v2032 = vsel %vm802, %v1048, %v1949
    %v2033 = vsel %vm802, %v1051, %v1951
    %v2034 = vsel %vm802, %v1056, %v1953
    %v2035 = vsel %vm802, %v1059, %v1955
    %v2036 = vsel %vm892, %v2028, %v1973
    %v2037 = vsel %vm892, %v2029, %v1975
    %v2038 = vsel %vm892, %v2030, %v1977
    %v2039 = vsel %vm892, %v2031, %v1979
    %v2040 = vsel %vm892, %v2032, %v1981
    %v2041 = vsel %vm892, %v2033, %v1983
    %v2042 = vsel %vm892, %v2034, %v1985
    %v2043 = vsel %vm892, %v2035, %v1987
    %vm2044 = vcmask 785408
    %v2045 = vsel %vm2044, %v2036, %v2005
    %v2046 = vsel %vm2044, %v2037, %v2007
    %v2047 = vsel %vm2044, %v2038, %v2009
    %v2048 = vsel %vm2044, %v2039, %v2011
    %v2049 = vsel %vm2044, %v2040, %v2013
    %v2050 = vsel %vm2044, %v2041, %v2015
    %v2051 = vsel %vm2044, %v2042, %v2017
    %v2052 = vsel %vm2044, %v2043, %v2019
    %v2054 = vsel %vm802, %v763, 0
    %v2057 = vsel %vm802, %v766, 0
    %v2060 = vsel %vm802, %v769, 0
    %v2063 = vsel %vm802, %v772, 0
    %v2066 = vsel %vm802, %v764, 0
    %v2069 = vsel %vm802, %v767, 0
    %v2072 = vsel %vm802, %v770, 0
    %v2075 = vsel %vm802, %v773, 0
    %2077 = vmatprep.subr.bf16.mxu0 0
    %2078 = vmatpush1.bf16.xpose.msra.mxu0 0
    %2079 = vmatprep.subr.bf16.mxu0 0
    %2080 = vmatpush1.bf16.xpose.msra.mxu0 0
    %2081 = vmatprep.subr.bf16.mxu0 0
    %2082 = vmatpush1.bf16.xpose.msra.mxu0 0
    %2083 = vmatprep.subr.bf16.mxu0 0
    %2084 = vmatpush1.bf16.xpose.msra.mxu0 0
    %2085 = vmatprep.subr.bf16.mxu0 0
    %2086 = vmatpush1.bf16.xpose.msra.mxu0 %v2075
    %2087 = vmatprep.subr.bf16.mxu0 0
    %2088 = vmatpush1.bf16.xpose.msra.mxu0 %v2072
    %2089 = vmatprep.subr.bf16.mxu0 0
    %2090 = vmatpush1.bf16.xpose.msra.mxu0 %v2069
    %2091 = vmatprep.subr.bf16.mxu0 0
    %2092 = vmatpush1.bf16.xpose.msra.mxu0 %v2066
    %2093 = vmatprep.subr.bf16.mxu0 0
    %2094 = vmatpush2.bf16.xpose.msra.mxu0 0
    %2095 = vmatprep.subr.bf16.mxu0 0
    %2096 = vmatpush2.bf16.xpose.msra.mxu0 0
    %2097 = vmatprep.subr.bf16.mxu0 0
    %2098 = vmatpush2.bf16.xpose.msra.mxu0 0
    %2099 = vmatprep.subr.bf16.mxu0 0
    %2100 = vmatpush2.bf16.xpose.msra.mxu0 0
    %2101 = vmatprep.subr.bf16.mxu0 0
    %2102 = vmatpush2.bf16.xpose.msra.mxu0 0
    %2103 = vmatprep.subr.bf16.mxu0 0
    %2104 = vmatpush2.bf16.xpose.msra.mxu0 0
    %2105 = vmatprep.subr.bf16.mxu0 0
    %2106 = vmatpush2.bf16.xpose.msra.mxu0 0
    %2107 = vmatprep.subr.bf16.mxu0 0
    %2108 = vmatpush2.bf16.xpose.msra.mxu0 0
    %2109 = vmatprep.mubr.bf16.mxu0 0
    %2110 = vmatmul.mubr.bf16.gmra.mxu0 %v2054
    %v2111 = vpop.f32.mrf.mxu0
    %v2112 = vadd.f32 %v794, %v2111
    %v2113 = vpop.f32.mrf.mxu0
    %v2114 = vpop.f32.mrf.mxu0
    %v2115 = vadd.f32 %v795, %v2114
    %v2116 = vpop.f32.mrf.mxu0
    %2117 = vmatprep.mubr.bf16.mxu0 0
    %2118 = vmatmul.mubr.bf16.gmra.mxu0 %v2057
    %v2119 = vpop.f32.mrf.mxu0
    %v2120 = vadd.f32 %v796, %v2119
    %v2121 = vpop.f32.mrf.mxu0
    %v2122 = vpop.f32.mrf.mxu0
    %v2123 = vadd.f32 %v797, %v2122
    %v2124 = vpop.f32.mrf.mxu0
    %2125 = vmatprep.mubr.bf16.mxu0 0
    %2126 = vmatmul.mubr.bf16.gmra.mxu0 %v2060
    %v2127 = vpop.f32.mrf.mxu0
    %v2128 = vadd.f32 %v798, %v2127
    %v2129 = vpop.f32.mrf.mxu0
    %v2130 = vpop.f32.mrf.mxu0
    %v2131 = vadd.f32 %v799, %v2130
    %v2132 = vpop.f32.mrf.mxu0
    %2133 = vmatprep.mubr.bf16.mxu0 0
    %2134 = vmatmul.mubr.bf16.gmra.mxu0 %v2063
    %v2135 = vpop.f32.mrf.mxu0
    %v2136 = vadd.f32 %v800, %v2135
    %v2137 = vpop.f32.mrf.mxu0
    %v2138 = vpop.f32.mrf.mxu0
    %v2139 = vadd.f32 %v801, %v2138
    %v2140 = vpop.f32.mrf.mxu0
    %2141 = vdwg.mxu0
    %v2142 = vsel %vm892, %v2112, -inf
    %2143 = vmax.xlane.f32.xlu0 %v2142
    %v2144 = vpop.xlane.xlu0 %2143
    %v2145 = vsel %vm892, %v2115, -inf
    %2146 = vmax.xlane.f32.xlu0 %v2145
    %v2147 = vpop.xlane.xlu0 %2146
    %v2148 = vsel %vm892, %v2120, -inf
    %2149 = vmax.xlane.f32.xlu0 %v2148
    %v2150 = vpop.xlane.xlu0 %2149
    %v2151 = vsel %vm892, %v2123, -inf
    %2152 = vmax.xlane.f32.xlu0 %v2151
    %v2153 = vpop.xlane.xlu0 %2152
    %v2154 = vsel %vm892, %v2128, -inf
    %2155 = vmax.xlane.f32.xlu0 %v2154
    %v2156 = vpop.xlane.xlu0 %2155
    %v2157 = vsel %vm892, %v2131, -inf
    %2158 = vmax.xlane.f32.xlu0 %v2157
    %v2159 = vpop.xlane.xlu0 %2158
    %v2160 = vsel %vm892, %v2136, -inf
    %2161 = vmax.xlane.f32.xlu0 %v2160
    %v2162 = vpop.xlane.xlu0 %2161
    %v2163 = vsel %vm892, %v2139, -inf
    %2164 = vmax.xlane.f32.xlu0 %v2163
    %v2165 = vpop.xlane.xlu0 %2164
    %v2166 = vsub.f32 %v2112, %v2144
    %v2167 = vsub.f32 %v2115, %v2147
    %v2168 = vsub.f32 %v2120, %v2150
    %v2169 = vsub.f32 %v2123, %v2153
    %v2170 = vsub.f32 %v2128, %v2156
    %v2171 = vsub.f32 %v2131, %v2159
    %v2172 = vsub.f32 %v2136, %v2162
    %v2173 = vsub.f32 %v2139, %v2165
    %v2174 = vmul.f32 %v2166, 1.442695
    %v2175 = vpow.pop %v2174
    %v2176 = vmul.f32 %v2167, 1.442695
    %v2177 = vpow.pop %v2176
    %v2178 = vmul.f32 %v2168, 1.442695
    %v2179 = vpow.pop %v2178
    %v2180 = vmul.f32 %v2169, 1.442695
    %v2181 = vpow.pop %v2180
    %v2182 = vmul.f32 %v2170, 1.442695
    %v2183 = vpow.pop %v2182
    %v2184 = vmul.f32 %v2171, 1.442695
    %v2185 = vpow.pop %v2184
    %v2186 = vmul.f32 %v2172, 1.442695
    %v2187 = vpow.pop %v2186
    %v2188 = vmul.f32 %v2173, 1.442695
    %v2189 = vpow.pop %v2188
    %v2190 = vsel %vm892, %v2175, 0.0
    %2191 = vadd.xlane.f32.xlu0 %v2190
    %v2192 = vpop.xlane.xlu0 %2191
    %v2193 = vsel %vm892, %v2177, 0.0
    %2194 = vadd.xlane.f32.xlu0 %v2193
    %v2195 = vpop.xlane.xlu0 %2194
    %v2196 = vsel %vm892, %v2179, 0.0
    %2197 = vadd.xlane.f32.xlu0 %v2196
    %v2198 = vpop.xlane.xlu0 %2197
    %v2199 = vsel %vm892, %v2181, 0.0
    %2200 = vadd.xlane.f32.xlu0 %v2199
    %v2201 = vpop.xlane.xlu0 %2200
    %v2202 = vsel %vm892, %v2183, 0.0
    %2203 = vadd.xlane.f32.xlu0 %v2202
    %v2204 = vpop.xlane.xlu0 %2203
    %v2205 = vsel %vm892, %v2185, 0.0
    %2206 = vadd.xlane.f32.xlu0 %v2205
    %v2207 = vpop.xlane.xlu0 %2206
    %v2208 = vsel %vm892, %v2187, 0.0
    %2209 = vadd.xlane.f32.xlu0 %v2208
    %v2210 = vpop.xlane.xlu0 %2209
    %v2211 = vsel %vm892, %v2189, 0.0
    %2212 = vadd.xlane.f32.xlu0 %v2211
    %v2213 = vpop.xlane.xlu0 %2212
    %v2214 = vrcp.pop %v2192
    %v2215 = vrcp.pop %v2195
    %v2216 = vrcp.pop %v2198
    %v2217 = vrcp.pop %v2201
    %v2218 = vrcp.pop %v2204
    %v2219 = vrcp.pop %v2207
    %v2220 = vrcp.pop %v2210
    %v2221 = vrcp.pop %v2213
    %v2222 = vmul.f32 %v2175, %v2214
    %v2223 = vmul.f32 %v2177, %v2215
    %v2224 = vmul.f32 %v2179, %v2216
    %v2225 = vmul.f32 %v2181, %v2217
    %v2226 = vmul.f32 %v2183, %v2218
    %v2227 = vmul.f32 %v2185, %v2219
    %v2228 = vmul.f32 %v2187, %v2220
    %v2229 = vmul.f32 %v2189, %v2221
    %v2230 = vpack.c.bf16 %v2223, %v2222
    %v2231 = vpack.c.bf16 %v2225, %v2224
    %v2232 = vpack.c.bf16 %v2227, %v2226
    %v2233 = vpack.c.bf16 %v2229, %v2228
    %v2235 = vsel %vm892, %v2230, 0
    %v2238 = vsel %vm892, %v2231, 0
    %v2241 = vsel %vm892, %v2232, 0
    %v2244 = vsel %vm892, %v2233, 0
    %2246 = vmatprep.subr.bf16.mxu0 0
    %2247 = vmatpush1.bf16.msra.mxu0 0
    %2248 = vmatprep.subr.bf16.mxu0 0
    %2249 = vmatpush1.bf16.msra.mxu0 0
    %2250 = vmatprep.subr.bf16.mxu0 0
    %2251 = vmatpush1.bf16.msra.mxu0 0
    %2252 = vmatprep.subr.bf16.mxu0 0
    %2253 = vmatpush1.bf16.msra.mxu0 0
    %2254 = vmatprep.subr.bf16.mxu0 0
    %2255 = vmatpush1.bf16.msra.mxu0 %v774
    %2256 = vmatprep.subr.bf16.mxu0 0
    %2257 = vmatpush1.bf16.msra.mxu0 %v771
    %2258 = vmatprep.subr.bf16.mxu0 0
    %2259 = vmatpush1.bf16.msra.mxu0 %v768
    %2260 = vmatprep.subr.bf16.mxu0 0
    %2261 = vmatpush1.bf16.msra.mxu0 %v765
    %2262 = vmatprep.subr.bf16.mxu0 0
    %2263 = vmatpush2.bf16.msra.mxu0 0
    %2264 = vmatprep.subr.bf16.mxu0 0
    %2265 = vmatpush2.bf16.msra.mxu0 0
    %2266 = vmatprep.subr.bf16.mxu0 0
    %2267 = vmatpush2.bf16.msra.mxu0 0
    %2268 = vmatprep.subr.bf16.mxu0 0
    %2269 = vmatpush2.bf16.msra.mxu0 0
    %2270 = vmatprep.subr.bf16.mxu0 0
    %2271 = vmatpush2.bf16.msra.mxu0 0
    %2272 = vmatprep.subr.bf16.mxu0 0
    %2273 = vmatpush2.bf16.msra.mxu0 0
    %2274 = vmatprep.subr.bf16.mxu0 0
    %2275 = vmatpush2.bf16.msra.mxu0 0
    %2276 = vmatprep.subr.bf16.mxu0 0
    %2277 = vmatpush2.bf16.msra.mxu0 0
    %2278 = vmatprep.mubr.bf16.mxu0 0
    %2279 = vmatmul.mubr.bf16.gmra.mxu0 %v2235
    %v2280 = vpop.f32.mrf.mxu0
    %v2281 = vadd.f32 0.0, %v2280
    %v2282 = vpop.f32.mrf.mxu0
    %v2283 = vpop.f32.mrf.mxu0
    %v2284 = vadd.f32 0.0, %v2283
    %v2285 = vpop.f32.mrf.mxu0
    %2286 = vmatprep.mubr.bf16.mxu0 0
    %2287 = vmatmul.mubr.bf16.gmra.mxu0 %v2238
    %v2288 = vpop.f32.mrf.mxu0
    %v2289 = vadd.f32 0.0, %v2288
    %v2290 = vpop.f32.mrf.mxu0
    %v2291 = vpop.f32.mrf.mxu0
    %v2292 = vadd.f32 0.0, %v2291
    %v2293 = vpop.f32.mrf.mxu0
    %2294 = vmatprep.mubr.bf16.mxu0 0
    %2295 = vmatmul.mubr.bf16.gmra.mxu0 %v2241
    %v2296 = vpop.f32.mrf.mxu0
    %v2297 = vadd.f32 0.0, %v2296
    %v2298 = vpop.f32.mrf.mxu0
    %v2299 = vpop.f32.mrf.mxu0
    %v2300 = vadd.f32 0.0, %v2299
    %v2301 = vpop.f32.mrf.mxu0
    %2302 = vmatprep.mubr.bf16.mxu0 0
    %2303 = vmatmul.mubr.bf16.gmra.mxu0 %v2244
    %v2304 = vpop.f32.mrf.mxu0
    %v2305 = vadd.f32 0.0, %v2304
    %v2306 = vpop.f32.mrf.mxu0
    %v2307 = vpop.f32.mrf.mxu0
    %v2308 = vadd.f32 0.0, %v2307
    %v2309 = vpop.f32.mrf.mxu0
    %2310 = vdwg.mxu0
    %2315 = vrot.lane.b32.xlu0 %v763, 96
    %v2316 = vpop.permute.xlu0 %2315
    %2317 = vrot.lane.b32.xlu0 %v766, 96
    %v2318 = vpop.permute.xlu0 %2317
    %2319 = vrot.lane.b32.xlu0 %v769, 96
    %v2320 = vpop.permute.xlu0 %2319
    %2321 = vrot.lane.b32.xlu0 %v772, 96
    %v2322 = vpop.permute.xlu0 %2321
    %2327 = vrot.lane.b32.xlu0 %v764, 96
    %v2328 = vpop.permute.xlu0 %2327
    %2329 = vrot.lane.b32.xlu0 %v767, 96
    %v2330 = vpop.permute.xlu0 %2329
    %2331 = vrot.lane.b32.xlu0 %v770, 96
    %v2332 = vpop.permute.xlu0 %2331
    %2333 = vrot.lane.b32.xlu0 %v773, 96
    %v2334 = vpop.permute.xlu0 %2333
    %v2336 = vsel %vm802, %v2316, 0
    %v2339 = vsel %vm802, %v2318, 0
    %v2342 = vsel %vm802, %v2320, 0
    %v2345 = vsel %vm802, %v2322, 0
    %v2348 = vsel %vm802, %v2328, 0
    %v2351 = vsel %vm802, %v2330, 0
    %v2354 = vsel %vm802, %v2332, 0
    %v2357 = vsel %vm802, %v2334, 0
    %2359 = vmatprep.subr.bf16.mxu0 0
    %2360 = vmatpush1.bf16.xpose.msra.mxu0 0
    %2361 = vmatprep.subr.bf16.mxu0 0
    %2362 = vmatpush1.bf16.xpose.msra.mxu0 0
    %2363 = vmatprep.subr.bf16.mxu0 0
    %2364 = vmatpush1.bf16.xpose.msra.mxu0 0
    %2365 = vmatprep.subr.bf16.mxu0 0
    %2366 = vmatpush1.bf16.xpose.msra.mxu0 0
    %2367 = vmatprep.subr.bf16.mxu0 0
    %2368 = vmatpush1.bf16.xpose.msra.mxu0 %v2357
    %2369 = vmatprep.subr.bf16.mxu0 0
    %2370 = vmatpush1.bf16.xpose.msra.mxu0 %v2354
    %2371 = vmatprep.subr.bf16.mxu0 0
    %2372 = vmatpush1.bf16.xpose.msra.mxu0 %v2351
    %2373 = vmatprep.subr.bf16.mxu0 0
    %2374 = vmatpush1.bf16.xpose.msra.mxu0 %v2348
    %2375 = vmatprep.subr.bf16.mxu0 0
    %2376 = vmatpush2.bf16.xpose.msra.mxu0 0
    %2377 = vmatprep.subr.bf16.mxu0 0
    %2378 = vmatpush2.bf16.xpose.msra.mxu0 0
    %2379 = vmatprep.subr.bf16.mxu0 0
    %2380 = vmatpush2.bf16.xpose.msra.mxu0 0
    %2381 = vmatprep.subr.bf16.mxu0 0
    %2382 = vmatpush2.bf16.xpose.msra.mxu0 0
    %2383 = vmatprep.subr.bf16.mxu0 0
    %2384 = vmatpush2.bf16.xpose.msra.mxu0 0
    %2385 = vmatprep.subr.bf16.mxu0 0
    %2386 = vmatpush2.bf16.xpose.msra.mxu0 0
    %2387 = vmatprep.subr.bf16.mxu0 0
    %2388 = vmatpush2.bf16.xpose.msra.mxu0 0
    %2389 = vmatprep.subr.bf16.mxu0 0
    %2390 = vmatpush2.bf16.xpose.msra.mxu0 0
    %2391 = vmatprep.mubr.bf16.mxu0 0
    %2392 = vmatmul.mubr.bf16.gmra.mxu0 %v2336
    %v2393 = vpop.f32.mrf.mxu0
    %v2394 = vadd.f32 %v794, %v2393
    %v2395 = vpop.f32.mrf.mxu0
    %v2396 = vpop.f32.mrf.mxu0
    %v2397 = vadd.f32 %v795, %v2396
    %v2398 = vpop.f32.mrf.mxu0
    %2399 = vmatprep.mubr.bf16.mxu0 0
    %2400 = vmatmul.mubr.bf16.gmra.mxu0 %v2339
    %v2401 = vpop.f32.mrf.mxu0
    %v2402 = vadd.f32 %v796, %v2401
    %v2403 = vpop.f32.mrf.mxu0
    %v2404 = vpop.f32.mrf.mxu0
    %v2405 = vadd.f32 %v797, %v2404
    %v2406 = vpop.f32.mrf.mxu0
    %2407 = vmatprep.mubr.bf16.mxu0 0
    %2408 = vmatmul.mubr.bf16.gmra.mxu0 %v2342
    %v2409 = vpop.f32.mrf.mxu0
    %v2410 = vadd.f32 %v798, %v2409
    %v2411 = vpop.f32.mrf.mxu0
    %v2412 = vpop.f32.mrf.mxu0
    %v2413 = vadd.f32 %v799, %v2412
    %v2414 = vpop.f32.mrf.mxu0
    %2415 = vmatprep.mubr.bf16.mxu0 0
    %2416 = vmatmul.mubr.bf16.gmra.mxu0 %v2345
    %v2417 = vpop.f32.mrf.mxu0
    %v2418 = vadd.f32 %v800, %v2417
    %v2419 = vpop.f32.mrf.mxu0
    %v2420 = vpop.f32.mrf.mxu0
    %v2421 = vadd.f32 %v801, %v2420
    %v2422 = vpop.f32.mrf.mxu0
    %2423 = vdwg.mxu0
    %v2424 = vsel %vm892, %v2394, -inf
    %2425 = vmax.xlane.f32.xlu0 %v2424
    %v2426 = vpop.xlane.xlu0 %2425
    %v2427 = vsel %vm892, %v2397, -inf
    %2428 = vmax.xlane.f32.xlu0 %v2427
    %v2429 = vpop.xlane.xlu0 %2428
    %v2430 = vsel %vm892, %v2402, -inf
    %2431 = vmax.xlane.f32.xlu0 %v2430
    %v2432 = vpop.xlane.xlu0 %2431
    %v2433 = vsel %vm892, %v2405, -inf
    %2434 = vmax.xlane.f32.xlu0 %v2433
    %v2435 = vpop.xlane.xlu0 %2434
    %v2436 = vsel %vm892, %v2410, -inf
    %2437 = vmax.xlane.f32.xlu0 %v2436
    %v2438 = vpop.xlane.xlu0 %2437
    %v2439 = vsel %vm892, %v2413, -inf
    %2440 = vmax.xlane.f32.xlu0 %v2439
    %v2441 = vpop.xlane.xlu0 %2440
    %v2442 = vsel %vm892, %v2418, -inf
    %2443 = vmax.xlane.f32.xlu0 %v2442
    %v2444 = vpop.xlane.xlu0 %2443
    %v2445 = vsel %vm892, %v2421, -inf
    %2446 = vmax.xlane.f32.xlu0 %v2445
    %v2447 = vpop.xlane.xlu0 %2446
    %v2448 = vsub.f32 %v2394, %v2426
    %v2449 = vsub.f32 %v2397, %v2429
    %v2450 = vsub.f32 %v2402, %v2432
    %v2451 = vsub.f32 %v2405, %v2435
    %v2452 = vsub.f32 %v2410, %v2438
    %v2453 = vsub.f32 %v2413, %v2441
    %v2454 = vsub.f32 %v2418, %v2444
    %v2455 = vsub.f32 %v2421, %v2447
    %v2456 = vmul.f32 %v2448, 1.442695
    %v2457 = vpow.pop %v2456
    %v2458 = vmul.f32 %v2449, 1.442695
    %v2459 = vpow.pop %v2458
    %v2460 = vmul.f32 %v2450, 1.442695
    %v2461 = vpow.pop %v2460
    %v2462 = vmul.f32 %v2451, 1.442695
    %v2463 = vpow.pop %v2462
    %v2464 = vmul.f32 %v2452, 1.442695
    %v2465 = vpow.pop %v2464
    %v2466 = vmul.f32 %v2453, 1.442695
    %v2467 = vpow.pop %v2466
    %v2468 = vmul.f32 %v2454, 1.442695
    %v2469 = vpow.pop %v2468
    %v2470 = vmul.f32 %v2455, 1.442695
    %v2471 = vpow.pop %v2470
    %v2472 = vsel %vm892, %v2457, 0.0
    %2473 = vadd.xlane.f32.xlu0 %v2472
    %v2474 = vpop.xlane.xlu0 %2473
    %v2475 = vsel %vm892, %v2459, 0.0
    %2476 = vadd.xlane.f32.xlu0 %v2475
    %v2477 = vpop.xlane.xlu0 %2476
    %v2478 = vsel %vm892, %v2461, 0.0
    %2479 = vadd.xlane.f32.xlu0 %v2478
    %v2480 = vpop.xlane.xlu0 %2479
    %v2481 = vsel %vm892, %v2463, 0.0
    %2482 = vadd.xlane.f32.xlu0 %v2481
    %v2483 = vpop.xlane.xlu0 %2482
    %v2484 = vsel %vm892, %v2465, 0.0
    %2485 = vadd.xlane.f32.xlu0 %v2484
    %v2486 = vpop.xlane.xlu0 %2485
    %v2487 = vsel %vm892, %v2467, 0.0
    %2488 = vadd.xlane.f32.xlu0 %v2487
    %v2489 = vpop.xlane.xlu0 %2488
    %v2490 = vsel %vm892, %v2469, 0.0
    %2491 = vadd.xlane.f32.xlu0 %v2490
    %v2492 = vpop.xlane.xlu0 %2491
    %v2493 = vsel %vm892, %v2471, 0.0
    %2494 = vadd.xlane.f32.xlu0 %v2493
    %v2495 = vpop.xlane.xlu0 %2494
    %v2496 = vrcp.pop %v2474
    %v2497 = vrcp.pop %v2477
    %v2498 = vrcp.pop %v2480
    %v2499 = vrcp.pop %v2483
    %v2500 = vrcp.pop %v2486
    %v2501 = vrcp.pop %v2489
    %v2502 = vrcp.pop %v2492
    %v2503 = vrcp.pop %v2495
    %v2504 = vmul.f32 %v2457, %v2496
    %v2505 = vmul.f32 %v2459, %v2497
    %v2506 = vmul.f32 %v2461, %v2498
    %v2507 = vmul.f32 %v2463, %v2499
    %v2508 = vmul.f32 %v2465, %v2500
    %v2509 = vmul.f32 %v2467, %v2501
    %v2510 = vmul.f32 %v2469, %v2502
    %v2511 = vmul.f32 %v2471, %v2503
    %v2512 = vpack.c.bf16 %v2505, %v2504
    %v2513 = vpack.c.bf16 %v2507, %v2506
    %v2514 = vpack.c.bf16 %v2509, %v2508
    %v2515 = vpack.c.bf16 %v2511, %v2510
    %2520 = vrot.lane.b32.xlu0 %v765, 96
    %v2521 = vpop.permute.xlu0 %2520
    %2522 = vrot.lane.b32.xlu0 %v768, 96
    %v2523 = vpop.permute.xlu0 %2522
    %2524 = vrot.lane.b32.xlu0 %v771, 96
    %v2525 = vpop.permute.xlu0 %2524
    %2526 = vrot.lane.b32.xlu0 %v774, 96
    %v2527 = vpop.permute.xlu0 %2526
    %v2533 = vsel %vm892, %v2512, 0
    %v2536 = vsel %vm892, %v2513, 0
    %v2539 = vsel %vm892, %v2514, 0
    %v2542 = vsel %vm892, %v2515, 0
    %2544 = vmatprep.subr.bf16.mxu0 0
    %2545 = vmatpush1.bf16.msra.mxu0 0
    %2546 = vmatprep.subr.bf16.mxu0 0
    %2547 = vmatpush1.bf16.msra.mxu0 0
    %2548 = vmatprep.subr.bf16.mxu0 0
    %2549 = vmatpush1.bf16.msra.mxu0 0
    %2550 = vmatprep.subr.bf16.mxu0 0
    %2551 = vmatpush1.bf16.msra.mxu0 0
    %2552 = vmatprep.subr.bf16.mxu0 0
    %2553 = vmatpush1.bf16.msra.mxu0 %v2527
    %2554 = vmatprep.subr.bf16.mxu0 0
    %2555 = vmatpush1.bf16.msra.mxu0 %v2525
    %2556 = vmatprep.subr.bf16.mxu0 0
    %2557 = vmatpush1.bf16.msra.mxu0 %v2523
    %2558 = vmatprep.subr.bf16.mxu0 0
    %2559 = vmatpush1.bf16.msra.mxu0 %v2521
    %2560 = vmatprep.subr.bf16.mxu0 0
    %2561 = vmatpush2.bf16.msra.mxu0 0
    %2562 = vmatprep.subr.bf16.mxu0 0
    %2563 = vmatpush2.bf16.msra.mxu0 0
    %2564 = vmatprep.subr.bf16.mxu0 0
    %2565 = vmatpush2.bf16.msra.mxu0 0
    %2566 = vmatprep.subr.bf16.mxu0 0
    %2567 = vmatpush2.bf16.msra.mxu0 0
    %2568 = vmatprep.subr.bf16.mxu0 0
    %2569 = vmatpush2.bf16.msra.mxu0 0
    %2570 = vmatprep.subr.bf16.mxu0 0
    %2571 = vmatpush2.bf16.msra.mxu0 0
    %2572 = vmatprep.subr.bf16.mxu0 0
    %2573 = vmatpush2.bf16.msra.mxu0 0
    %2574 = vmatprep.subr.bf16.mxu0 0
    %2575 = vmatpush2.bf16.msra.mxu0 0
    %2576 = vmatprep.mubr.bf16.mxu0 0
    %2577 = vmatmul.mubr.bf16.gmra.mxu0 %v2533
    %v2578 = vpop.f32.mrf.mxu0
    %v2579 = vadd.f32 0.0, %v2578
    %v2580 = vpop.f32.mrf.mxu0
    %v2581 = vpop.f32.mrf.mxu0
    %v2582 = vadd.f32 0.0, %v2581
    %v2583 = vpop.f32.mrf.mxu0
    %2584 = vmatprep.mubr.bf16.mxu0 0
    %2585 = vmatmul.mubr.bf16.gmra.mxu0 %v2536
    %v2586 = vpop.f32.mrf.mxu0
    %v2587 = vadd.f32 0.0, %v2586
    %v2588 = vpop.f32.mrf.mxu0
    %v2589 = vpop.f32.mrf.mxu0
    %v2590 = vadd.f32 0.0, %v2589
    %v2591 = vpop.f32.mrf.mxu0
    %2592 = vmatprep.mubr.bf16.mxu0 0
    %2593 = vmatmul.mubr.bf16.gmra.mxu0 %v2539
    %v2594 = vpop.f32.mrf.mxu0
    %v2595 = vadd.f32 0.0, %v2594
    %v2596 = vpop.f32.mrf.mxu0
    %v2597 = vpop.f32.mrf.mxu0
    %v2598 = vadd.f32 0.0, %v2597
    %v2599 = vpop.f32.mrf.mxu0
    %2600 = vmatprep.mubr.bf16.mxu0 0
    %2601 = vmatmul.mubr.bf16.gmra.mxu0 %v2542
    %v2602 = vpop.f32.mrf.mxu0
    %v2603 = vadd.f32 0.0, %v2602
    %v2604 = vpop.f32.mrf.mxu0
    %v2605 = vpop.f32.mrf.mxu0
    %v2606 = vadd.f32 0.0, %v2605
    %v2607 = vpop.f32.mrf.mxu0
    %2608 = vdwg.mxu0
    %2609 = vrot.lane.b32.xlu0 %v763, 64
    %v2610 = vpop.permute.xlu0 %2609
    %2611 = vrot.lane.b32.xlu0 %v766, 64
    %v2612 = vpop.permute.xlu0 %2611
    %2613 = vrot.lane.b32.xlu0 %v769, 64
    %v2614 = vpop.permute.xlu0 %2613
    %2615 = vrot.lane.b32.xlu0 %v772, 64
    %v2616 = vpop.permute.xlu0 %2615
    %2617 = vrot.lane.b32.xlu0 %v764, 64
    %v2618 = vpop.permute.xlu0 %2617
    %2619 = vrot.lane.b32.xlu0 %v767, 64
    %v2620 = vpop.permute.xlu0 %2619
    %2621 = vrot.lane.b32.xlu0 %v770, 64
    %v2622 = vpop.permute.xlu0 %2621
    %2623 = vrot.lane.b32.xlu0 %v773, 64
    %v2624 = vpop.permute.xlu0 %2623
    %v2626 = vsel %vm802, %v2610, 0
    %v2629 = vsel %vm802, %v2612, 0
    %v2632 = vsel %vm802, %v2614, 0
    %v2635 = vsel %vm802, %v2616, 0
    %v2638 = vsel %vm802, %v2618, 0
    %v2641 = vsel %vm802, %v2620, 0
    %v2644 = vsel %vm802, %v2622, 0
    %v2647 = vsel %vm802, %v2624, 0
    %2649 = vmatprep.subr.bf16.mxu0 0
    %2650 = vmatpush1.bf16.xpose.msra.mxu0 0
    %2651 = vmatprep.subr.bf16.mxu0 0
    %2652 = vmatpush1.bf16.xpose.msra.mxu0 0
    %2653 = vmatprep.subr.bf16.mxu0 0
    %2654 = vmatpush1.bf16.xpose.msra.mxu0 0
    %2655 = vmatprep.subr.bf16.mxu0 0
    %2656 = vmatpush1.bf16.xpose.msra.mxu0 0
    %2657 = vmatprep.subr.bf16.mxu0 0
    %2658 = vmatpush1.bf16.xpose.msra.mxu0 %v2647
    %2659 = vmatprep.subr.bf16.mxu0 0
    %2660 = vmatpush1.bf16.xpose.msra.mxu0 %v2644
    %2661 = vmatprep.subr.bf16.mxu0 0
    %2662 = vmatpush1.bf16.xpose.msra.mxu0 %v2641
    %2663 = vmatprep.subr.bf16.mxu0 0
    %2664 = vmatpush1.bf16.xpose.msra.mxu0 %v2638
    %2665 = vmatprep.subr.bf16.mxu0 0
    %2666 = vmatpush2.bf16.xpose.msra.mxu0 0
    %2667 = vmatprep.subr.bf16.mxu0 0
    %2668 = vmatpush2.bf16.xpose.msra.mxu0 0
    %2669 = vmatprep.subr.bf16.mxu0 0
    %2670 = vmatpush2.bf16.xpose.msra.mxu0 0
    %2671 = vmatprep.subr.bf16.mxu0 0
    %2672 = vmatpush2.bf16.xpose.msra.mxu0 0
    %2673 = vmatprep.subr.bf16.mxu0 0
    %2674 = vmatpush2.bf16.xpose.msra.mxu0 0
    %2675 = vmatprep.subr.bf16.mxu0 0
    %2676 = vmatpush2.bf16.xpose.msra.mxu0 0
    %2677 = vmatprep.subr.bf16.mxu0 0
    %2678 = vmatpush2.bf16.xpose.msra.mxu0 0
    %2679 = vmatprep.subr.bf16.mxu0 0
    %2680 = vmatpush2.bf16.xpose.msra.mxu0 0
    %2681 = vmatprep.mubr.bf16.mxu0 0
    %2682 = vmatmul.mubr.bf16.gmra.mxu0 %v2626
    %v2683 = vpop.f32.mrf.mxu0
    %v2684 = vadd.f32 %v794, %v2683
    %v2685 = vpop.f32.mrf.mxu0
    %v2686 = vpop.f32.mrf.mxu0
    %v2687 = vadd.f32 %v795, %v2686
    %v2688 = vpop.f32.mrf.mxu0
    %2689 = vmatprep.mubr.bf16.mxu0 0
    %2690 = vmatmul.mubr.bf16.gmra.mxu0 %v2629
    %v2691 = vpop.f32.mrf.mxu0
    %v2692 = vadd.f32 %v796, %v2691
    %v2693 = vpop.f32.mrf.mxu0
    %v2694 = vpop.f32.mrf.mxu0
    %v2695 = vadd.f32 %v797, %v2694
    %v2696 = vpop.f32.mrf.mxu0
    %2697 = vmatprep.mubr.bf16.mxu0 0
    %2698 = vmatmul.mubr.bf16.gmra.mxu0 %v2632
    %v2699 = vpop.f32.mrf.mxu0
    %v2700 = vadd.f32 %v798, %v2699
    %v2701 = vpop.f32.mrf.mxu0
    %v2702 = vpop.f32.mrf.mxu0
    %v2703 = vadd.f32 %v799, %v2702
    %v2704 = vpop.f32.mrf.mxu0
    %2705 = vmatprep.mubr.bf16.mxu0 0
    %2706 = vmatmul.mubr.bf16.gmra.mxu0 %v2635
    %v2707 = vpop.f32.mrf.mxu0
    %v2708 = vadd.f32 %v800, %v2707
    %v2709 = vpop.f32.mrf.mxu0
    %v2710 = vpop.f32.mrf.mxu0
    %v2711 = vadd.f32 %v801, %v2710
    %v2712 = vpop.f32.mrf.mxu0
    %2713 = vdwg.mxu0
    %v2714 = vsel %vm892, %v2684, -inf
    %2715 = vmax.xlane.f32.xlu0 %v2714
    %v2716 = vpop.xlane.xlu0 %2715
    %v2717 = vsel %vm892, %v2687, -inf
    %2718 = vmax.xlane.f32.xlu0 %v2717
    %v2719 = vpop.xlane.xlu0 %2718
    %v2720 = vsel %vm892, %v2692, -inf
    %2721 = vmax.xlane.f32.xlu0 %v2720
    %v2722 = vpop.xlane.xlu0 %2721
    %v2723 = vsel %vm892, %v2695, -inf
    %2724 = vmax.xlane.f32.xlu0 %v2723
    %v2725 = vpop.xlane.xlu0 %2724
    %v2726 = vsel %vm892, %v2700, -inf
    %2727 = vmax.xlane.f32.xlu0 %v2726
    %v2728 = vpop.xlane.xlu0 %2727
    %v2729 = vsel %vm892, %v2703, -inf
    %2730 = vmax.xlane.f32.xlu0 %v2729
    %v2731 = vpop.xlane.xlu0 %2730
    %v2732 = vsel %vm892, %v2708, -inf
    %2733 = vmax.xlane.f32.xlu0 %v2732
    %v2734 = vpop.xlane.xlu0 %2733
    %v2735 = vsel %vm892, %v2711, -inf
    %2736 = vmax.xlane.f32.xlu0 %v2735
    %v2737 = vpop.xlane.xlu0 %2736
    %v2738 = vsub.f32 %v2684, %v2716
    %v2739 = vsub.f32 %v2687, %v2719
    %v2740 = vsub.f32 %v2692, %v2722
    %v2741 = vsub.f32 %v2695, %v2725
    %v2742 = vsub.f32 %v2700, %v2728
    %v2743 = vsub.f32 %v2703, %v2731
    %v2744 = vsub.f32 %v2708, %v2734
    %v2745 = vsub.f32 %v2711, %v2737
    %v2746 = vmul.f32 %v2738, 1.442695
    %v2747 = vpow.pop %v2746
    %v2748 = vmul.f32 %v2739, 1.442695
    %v2749 = vpow.pop %v2748
    %v2750 = vmul.f32 %v2740, 1.442695
    %v2751 = vpow.pop %v2750
    %v2752 = vmul.f32 %v2741, 1.442695
    %v2753 = vpow.pop %v2752
    %v2754 = vmul.f32 %v2742, 1.442695
    %v2755 = vpow.pop %v2754
    %v2756 = vmul.f32 %v2743, 1.442695
    %v2757 = vpow.pop %v2756
    %v2758 = vmul.f32 %v2744, 1.442695
    %v2759 = vpow.pop %v2758
    %v2760 = vmul.f32 %v2745, 1.442695
    %v2761 = vpow.pop %v2760
    %v2762 = vsel %vm892, %v2747, 0.0
    %2763 = vadd.xlane.f32.xlu0 %v2762
    %v2764 = vpop.xlane.xlu0 %2763
    %v2765 = vsel %vm892, %v2749, 0.0
    %2766 = vadd.xlane.f32.xlu0 %v2765
    %v2767 = vpop.xlane.xlu0 %2766
    %v2768 = vsel %vm892, %v2751, 0.0
    %2769 = vadd.xlane.f32.xlu0 %v2768
    %v2770 = vpop.xlane.xlu0 %2769
    %v2771 = vsel %vm892, %v2753, 0.0
    %2772 = vadd.xlane.f32.xlu0 %v2771
    %v2773 = vpop.xlane.xlu0 %2772
    %v2774 = vsel %vm892, %v2755, 0.0
    %2775 = vadd.xlane.f32.xlu0 %v2774
    %v2776 = vpop.xlane.xlu0 %2775
    %v2777 = vsel %vm892, %v2757, 0.0
    %2778 = vadd.xlane.f32.xlu0 %v2777
    %v2779 = vpop.xlane.xlu0 %2778
    %v2780 = vsel %vm892, %v2759, 0.0
    %2781 = vadd.xlane.f32.xlu0 %v2780
    %v2782 = vpop.xlane.xlu0 %2781
    %v2783 = vsel %vm892, %v2761, 0.0
    %2784 = vadd.xlane.f32.xlu0 %v2783
    %v2785 = vpop.xlane.xlu0 %2784
    %v2786 = vrcp.pop %v2764
    %v2787 = vrcp.pop %v2767
    %v2788 = vrcp.pop %v2770
    %v2789 = vrcp.pop %v2773
    %v2790 = vrcp.pop %v2776
    %v2791 = vrcp.pop %v2779
    %v2792 = vrcp.pop %v2782
    %v2793 = vrcp.pop %v2785
    %v2794 = vmul.f32 %v2747, %v2786
    %v2795 = vmul.f32 %v2749, %v2787
    %v2796 = vmul.f32 %v2751, %v2788
    %v2797 = vmul.f32 %v2753, %v2789
    %v2798 = vmul.f32 %v2755, %v2790
    %v2799 = vmul.f32 %v2757, %v2791
    %v2800 = vmul.f32 %v2759, %v2792
    %v2801 = vmul.f32 %v2761, %v2793
    %v2802 = vpack.c.bf16 %v2795, %v2794
    %v2803 = vpack.c.bf16 %v2797, %v2796
    %v2804 = vpack.c.bf16 %v2799, %v2798
    %v2805 = vpack.c.bf16 %v2801, %v2800
    %2806 = vrot.lane.b32.xlu0 %v765, 64
    %v2807 = vpop.permute.xlu0 %2806
    %2808 = vrot.lane.b32.xlu0 %v768, 64
    %v2809 = vpop.permute.xlu0 %2808
    %2810 = vrot.lane.b32.xlu0 %v771, 64
    %v2811 = vpop.permute.xlu0 %2810
    %2812 = vrot.lane.b32.xlu0 %v774, 64
    %v2813 = vpop.permute.xlu0 %2812
    %v2819 = vsel %vm892, %v2802, 0
    %v2822 = vsel %vm892, %v2803, 0
    %v2825 = vsel %vm892, %v2804, 0
    %v2828 = vsel %vm892, %v2805, 0
    %2830 = vmatprep.subr.bf16.mxu0 0
    %2831 = vmatpush1.bf16.msra.mxu0 0
    %2832 = vmatprep.subr.bf16.mxu0 0
    %2833 = vmatpush1.bf16.msra.mxu0 0
    %2834 = vmatprep.subr.bf16.mxu0 0
    %2835 = vmatpush1.bf16.msra.mxu0 0
    %2836 = vmatprep.subr.bf16.mxu0 0
    %2837 = vmatpush1.bf16.msra.mxu0 0
    %2838 = vmatprep.subr.bf16.mxu0 0
    %2839 = vmatpush1.bf16.msra.mxu0 %v2813
    %2840 = vmatprep.subr.bf16.mxu0 0
    %2841 = vmatpush1.bf16.msra.mxu0 %v2811
    %2842 = vmatprep.subr.bf16.mxu0 0
    %2843 = vmatpush1.bf16.msra.mxu0 %v2809
    %2844 = vmatprep.subr.bf16.mxu0 0
    %2845 = vmatpush1.bf16.msra.mxu0 %v2807
    %2846 = vmatprep.subr.bf16.mxu0 0
    %2847 = vmatpush2.bf16.msra.mxu0 0
    %2848 = vmatprep.subr.bf16.mxu0 0
    %2849 = vmatpush2.bf16.msra.mxu0 0
    %2850 = vmatprep.subr.bf16.mxu0 0
    %2851 = vmatpush2.bf16.msra.mxu0 0
    %2852 = vmatprep.subr.bf16.mxu0 0
    %2853 = vmatpush2.bf16.msra.mxu0 0
    %2854 = vmatprep.subr.bf16.mxu0 0
    %2855 = vmatpush2.bf16.msra.mxu0 0
    %2856 = vmatprep.subr.bf16.mxu0 0
    %2857 = vmatpush2.bf16.msra.mxu0 0
    %2858 = vmatprep.subr.bf16.mxu0 0
    %2859 = vmatpush2.bf16.msra.mxu0 0
    %2860 = vmatprep.subr.bf16.mxu0 0
    %2861 = vmatpush2.bf16.msra.mxu0 0
    %2862 = vmatprep.mubr.bf16.mxu0 0
    %2863 = vmatmul.mubr.bf16.gmra.mxu0 %v2819
    %v2864 = vpop.f32.mrf.mxu0
    %v2865 = vadd.f32 0.0, %v2864
    %v2866 = vpop.f32.mrf.mxu0
    %v2867 = vpop.f32.mrf.mxu0
    %v2868 = vadd.f32 0.0, %v2867
    %v2869 = vpop.f32.mrf.mxu0
    %2870 = vmatprep.mubr.bf16.mxu0 0
    %2871 = vmatmul.mubr.bf16.gmra.mxu0 %v2822
    %v2872 = vpop.f32.mrf.mxu0
    %v2873 = vadd.f32 0.0, %v2872
    %v2874 = vpop.f32.mrf.mxu0
    %v2875 = vpop.f32.mrf.mxu0
    %v2876 = vadd.f32 0.0, %v2875
    %v2877 = vpop.f32.mrf.mxu0
    %2878 = vmatprep.mubr.bf16.mxu0 0
    %2879 = vmatmul.mubr.bf16.gmra.mxu0 %v2825
    %v2880 = vpop.f32.mrf.mxu0
    %v2881 = vadd.f32 0.0, %v2880
    %v2882 = vpop.f32.mrf.mxu0
    %v2883 = vpop.f32.mrf.mxu0
    %v2884 = vadd.f32 0.0, %v2883
    %v2885 = vpop.f32.mrf.mxu0
    %2886 = vmatprep.mubr.bf16.mxu0 0
    %2887 = vmatmul.mubr.bf16.gmra.mxu0 %v2828
    %v2888 = vpop.f32.mrf.mxu0
    %v2889 = vadd.f32 0.0, %v2888
    %v2890 = vpop.f32.mrf.mxu0
    %v2891 = vpop.f32.mrf.mxu0
    %v2892 = vadd.f32 0.0, %v2891
    %v2893 = vpop.f32.mrf.mxu0
    %2894 = vdwg.mxu0
    %2895 = vrot.lane.b32.xlu0 %v763, 32
    %v2896 = vpop.permute.xlu0 %2895
    %2897 = vrot.lane.b32.xlu0 %v766, 32
    %v2898 = vpop.permute.xlu0 %2897
    %2899 = vrot.lane.b32.xlu0 %v769, 32
    %v2900 = vpop.permute.xlu0 %2899
    %2901 = vrot.lane.b32.xlu0 %v772, 32
    %v2902 = vpop.permute.xlu0 %2901
    %2903 = vrot.lane.b32.xlu0 %v764, 32
    %v2904 = vpop.permute.xlu0 %2903
    %2905 = vrot.lane.b32.xlu0 %v767, 32
    %v2906 = vpop.permute.xlu0 %2905
    %2907 = vrot.lane.b32.xlu0 %v770, 32
    %v2908 = vpop.permute.xlu0 %2907
    %2909 = vrot.lane.b32.xlu0 %v773, 32
    %v2910 = vpop.permute.xlu0 %2909
    %v2912 = vsel %vm802, %v2896, 0
    %v2915 = vsel %vm802, %v2898, 0
    %v2918 = vsel %vm802, %v2900, 0
    %v2921 = vsel %vm802, %v2902, 0
    %v2924 = vsel %vm802, %v2904, 0
    %v2927 = vsel %vm802, %v2906, 0
    %v2930 = vsel %vm802, %v2908, 0
    %v2933 = vsel %vm802, %v2910, 0
    %2935 = vmatprep.subr.bf16.mxu0 0
    %2936 = vmatpush1.bf16.xpose.msra.mxu0 0
    %2937 = vmatprep.subr.bf16.mxu0 0
    %2938 = vmatpush1.bf16.xpose.msra.mxu0 0
    %2939 = vmatprep.subr.bf16.mxu0 0
    %2940 = vmatpush1.bf16.xpose.msra.mxu0 0
    %2941 = vmatprep.subr.bf16.mxu0 0
    %2942 = vmatpush1.bf16.xpose.msra.mxu0 0
    %2943 = vmatprep.subr.bf16.mxu0 0
    %2944 = vmatpush1.bf16.xpose.msra.mxu0 %v2933
    %2945 = vmatprep.subr.bf16.mxu0 0
    %2946 = vmatpush1.bf16.xpose.msra.mxu0 %v2930
    %2947 = vmatprep.subr.bf16.mxu0 0
    %2948 = vmatpush1.bf16.xpose.msra.mxu0 %v2927
    %2949 = vmatprep.subr.bf16.mxu0 0
    %2950 = vmatpush1.bf16.xpose.msra.mxu0 %v2924
    %2951 = vmatprep.subr.bf16.mxu0 0
    %2952 = vmatpush2.bf16.xpose.msra.mxu0 0
    %2953 = vmatprep.subr.bf16.mxu0 0
    %2954 = vmatpush2.bf16.xpose.msra.mxu0 0
    %2955 = vmatprep.subr.bf16.mxu0 0
    %2956 = vmatpush2.bf16.xpose.msra.mxu0 0
    %2957 = vmatprep.subr.bf16.mxu0 0
    %2958 = vmatpush2.bf16.xpose.msra.mxu0 0
    %2959 = vmatprep.subr.bf16.mxu0 0
    %2960 = vmatpush2.bf16.xpose.msra.mxu0 0
    %2961 = vmatprep.subr.bf16.mxu0 0
    %2962 = vmatpush2.bf16.xpose.msra.mxu0 0
    %2963 = vmatprep.subr.bf16.mxu0 0
    %2964 = vmatpush2.bf16.xpose.msra.mxu0 0
    %2965 = vmatprep.subr.bf16.mxu0 0
    %2966 = vmatpush2.bf16.xpose.msra.mxu0 0
    %2967 = vmatprep.mubr.bf16.mxu0 0
    %2968 = vmatmul.mubr.bf16.gmra.mxu0 %v2912
    %v2969 = vpop.f32.mrf.mxu0
    %v2970 = vadd.f32 %v794, %v2969
    %v2971 = vpop.f32.mrf.mxu0
    %v2972 = vpop.f32.mrf.mxu0
    %v2973 = vadd.f32 %v795, %v2972
    %v2974 = vpop.f32.mrf.mxu0
    %2975 = vmatprep.mubr.bf16.mxu0 0
    %2976 = vmatmul.mubr.bf16.gmra.mxu0 %v2915
    %v2977 = vpop.f32.mrf.mxu0
    %v2978 = vadd.f32 %v796, %v2977
    %v2979 = vpop.f32.mrf.mxu0
    %v2980 = vpop.f32.mrf.mxu0
    %v2981 = vadd.f32 %v797, %v2980
    %v2982 = vpop.f32.mrf.mxu0
    %2983 = vmatprep.mubr.bf16.mxu0 0
    %2984 = vmatmul.mubr.bf16.gmra.mxu0 %v2918
    %v2985 = vpop.f32.mrf.mxu0
    %v2986 = vadd.f32 %v798, %v2985
    %v2987 = vpop.f32.mrf.mxu0
    %v2988 = vpop.f32.mrf.mxu0
    %v2989 = vadd.f32 %v799, %v2988
    %v2990 = vpop.f32.mrf.mxu0
    %2991 = vmatprep.mubr.bf16.mxu0 0
    %2992 = vmatmul.mubr.bf16.gmra.mxu0 %v2921
    %v2993 = vpop.f32.mrf.mxu0
    %v2994 = vadd.f32 %v800, %v2993
    %v2995 = vpop.f32.mrf.mxu0
    %v2996 = vpop.f32.mrf.mxu0
    %v2997 = vadd.f32 %v801, %v2996
    %v2998 = vpop.f32.mrf.mxu0
    %2999 = vdwg.mxu0
    %v3000 = vsel %vm892, %v2970, -inf
    %3001 = vmax.xlane.f32.xlu0 %v3000
    %v3002 = vpop.xlane.xlu0 %3001
    %v3003 = vsel %vm892, %v2973, -inf
    %3004 = vmax.xlane.f32.xlu0 %v3003
    %v3005 = vpop.xlane.xlu0 %3004
    %v3006 = vsel %vm892, %v2978, -inf
    %3007 = vmax.xlane.f32.xlu0 %v3006
    %v3008 = vpop.xlane.xlu0 %3007
    %v3009 = vsel %vm892, %v2981, -inf
    %3010 = vmax.xlane.f32.xlu0 %v3009
    %v3011 = vpop.xlane.xlu0 %3010
    %v3012 = vsel %vm892, %v2986, -inf
    %3013 = vmax.xlane.f32.xlu0 %v3012
    %v3014 = vpop.xlane.xlu0 %3013
    %v3015 = vsel %vm892, %v2989, -inf
    %3016 = vmax.xlane.f32.xlu0 %v3015
    %v3017 = vpop.xlane.xlu0 %3016
    %v3018 = vsel %vm892, %v2994, -inf
    %3019 = vmax.xlane.f32.xlu0 %v3018
    %v3020 = vpop.xlane.xlu0 %3019
    %v3021 = vsel %vm892, %v2997, -inf
    %3022 = vmax.xlane.f32.xlu0 %v3021
    %v3023 = vpop.xlane.xlu0 %3022
    %v3024 = vsub.f32 %v2970, %v3002
    %v3025 = vsub.f32 %v2973, %v3005
    %v3026 = vsub.f32 %v2978, %v3008
    %v3027 = vsub.f32 %v2981, %v3011
    %v3028 = vsub.f32 %v2986, %v3014
    %v3029 = vsub.f32 %v2989, %v3017
    %v3030 = vsub.f32 %v2994, %v3020
    %v3031 = vsub.f32 %v2997, %v3023
    %v3032 = vmul.f32 %v3024, 1.442695
    %v3033 = vpow.pop %v3032
    %v3034 = vmul.f32 %v3025, 1.442695
    %v3035 = vpow.pop %v3034
    %v3036 = vmul.f32 %v3026, 1.442695
    %v3037 = vpow.pop %v3036
    %v3038 = vmul.f32 %v3027, 1.442695
    %v3039 = vpow.pop %v3038
    %v3040 = vmul.f32 %v3028, 1.442695
    %v3041 = vpow.pop %v3040
    %v3042 = vmul.f32 %v3029, 1.442695
    %v3043 = vpow.pop %v3042
    %v3044 = vmul.f32 %v3030, 1.442695
    %v3045 = vpow.pop %v3044
    %v3046 = vmul.f32 %v3031, 1.442695
    %v3047 = vpow.pop %v3046
    %v3048 = vsel %vm892, %v3033, 0.0
    %3049 = vadd.xlane.f32.xlu0 %v3048
    %v3050 = vpop.xlane.xlu0 %3049
    %v3051 = vsel %vm892, %v3035, 0.0
    %3052 = vadd.xlane.f32.xlu0 %v3051
    %v3053 = vpop.xlane.xlu0 %3052
    %v3054 = vsel %vm892, %v3037, 0.0
    %3055 = vadd.xlane.f32.xlu0 %v3054
    %v3056 = vpop.xlane.xlu0 %3055
    %v3057 = vsel %vm892, %v3039, 0.0
    %3058 = vadd.xlane.f32.xlu0 %v3057
    %v3059 = vpop.xlane.xlu0 %3058
    %v3060 = vsel %vm892, %v3041, 0.0
    %3061 = vadd.xlane.f32.xlu0 %v3060
    %v3062 = vpop.xlane.xlu0 %3061
    %v3063 = vsel %vm892, %v3043, 0.0
    %3064 = vadd.xlane.f32.xlu0 %v3063
    %v3065 = vpop.xlane.xlu0 %3064
    %v3066 = vsel %vm892, %v3045, 0.0
    %3067 = vadd.xlane.f32.xlu0 %v3066
    %v3068 = vpop.xlane.xlu0 %3067
    %v3069 = vsel %vm892, %v3047, 0.0
    %3070 = vadd.xlane.f32.xlu0 %v3069
    %v3071 = vpop.xlane.xlu0 %3070
    %v3072 = vrcp.pop %v3050
    %v3073 = vrcp.pop %v3053
    %v3074 = vrcp.pop %v3056
    %v3075 = vrcp.pop %v3059
    %v3076 = vrcp.pop %v3062
    %v3077 = vrcp.pop %v3065
    %v3078 = vrcp.pop %v3068
    %v3079 = vrcp.pop %v3071
    %v3080 = vmul.f32 %v3033, %v3072
    %v3081 = vmul.f32 %v3035, %v3073
    %v3082 = vmul.f32 %v3037, %v3074
    %v3083 = vmul.f32 %v3039, %v3075
    %v3084 = vmul.f32 %v3041, %v3076
    %v3085 = vmul.f32 %v3043, %v3077
    %v3086 = vmul.f32 %v3045, %v3078
    %v3087 = vmul.f32 %v3047, %v3079
    %v3088 = vpack.c.bf16 %v3081, %v3080
    %v3089 = vpack.c.bf16 %v3083, %v3082
    %v3090 = vpack.c.bf16 %v3085, %v3084
    %v3091 = vpack.c.bf16 %v3087, %v3086
    %3092 = vrot.lane.b32.xlu0 %v765, 32
    %v3093 = vpop.permute.xlu0 %3092
    %3094 = vrot.lane.b32.xlu0 %v768, 32
    %v3095 = vpop.permute.xlu0 %3094
    %3096 = vrot.lane.b32.xlu0 %v771, 32
    %v3097 = vpop.permute.xlu0 %3096
    %3098 = vrot.lane.b32.xlu0 %v774, 32
    %v3099 = vpop.permute.xlu0 %3098
    %v3105 = vsel %vm892, %v3088, 0
    %v3108 = vsel %vm892, %v3089, 0
    %v3111 = vsel %vm892, %v3090, 0
    %v3114 = vsel %vm892, %v3091, 0
    %3116 = vmatprep.subr.bf16.mxu0 0
    %3117 = vmatpush1.bf16.msra.mxu0 0
    %3118 = vmatprep.subr.bf16.mxu0 0
    %3119 = vmatpush1.bf16.msra.mxu0 0
    %3120 = vmatprep.subr.bf16.mxu0 0
    %3121 = vmatpush1.bf16.msra.mxu0 0
    %3122 = vmatprep.subr.bf16.mxu0 0
    %3123 = vmatpush1.bf16.msra.mxu0 0
    %3124 = vmatprep.subr.bf16.mxu0 0
    %3125 = vmatpush1.bf16.msra.mxu0 %v3099
    %3126 = vmatprep.subr.bf16.mxu0 0
    %3127 = vmatpush1.bf16.msra.mxu0 %v3097
    %3128 = vmatprep.subr.bf16.mxu0 0
    %3129 = vmatpush1.bf16.msra.mxu0 %v3095
    %3130 = vmatprep.subr.bf16.mxu0 0
    %3131 = vmatpush1.bf16.msra.mxu0 %v3093
    %3132 = vmatprep.subr.bf16.mxu0 0
    %3133 = vmatpush2.bf16.msra.mxu0 0
    %3134 = vmatprep.subr.bf16.mxu0 0
    %3135 = vmatpush2.bf16.msra.mxu0 0
    %3136 = vmatprep.subr.bf16.mxu0 0
    %3137 = vmatpush2.bf16.msra.mxu0 0
    %3138 = vmatprep.subr.bf16.mxu0 0
    %3139 = vmatpush2.bf16.msra.mxu0 0
    %3140 = vmatprep.subr.bf16.mxu0 0
    %3141 = vmatpush2.bf16.msra.mxu0 0
    %3142 = vmatprep.subr.bf16.mxu0 0
    %3143 = vmatpush2.bf16.msra.mxu0 0
    %3144 = vmatprep.subr.bf16.mxu0 0
    %3145 = vmatpush2.bf16.msra.mxu0 0
    %3146 = vmatprep.subr.bf16.mxu0 0
    %3147 = vmatpush2.bf16.msra.mxu0 0
    %3148 = vmatprep.mubr.bf16.mxu0 0
    %3149 = vmatmul.mubr.bf16.gmra.mxu0 %v3105
    %v3150 = vpop.f32.mrf.mxu0
    %v3151 = vadd.f32 0.0, %v3150
    %v3152 = vpop.f32.mrf.mxu0
    %v3153 = vpop.f32.mrf.mxu0
    %v3154 = vadd.f32 0.0, %v3153
    %v3155 = vpop.f32.mrf.mxu0
    %3156 = vmatprep.mubr.bf16.mxu0 0
    %3157 = vmatmul.mubr.bf16.gmra.mxu0 %v3108
    %v3158 = vpop.f32.mrf.mxu0
    %v3159 = vadd.f32 0.0, %v3158
    %v3160 = vpop.f32.mrf.mxu0
    %v3161 = vpop.f32.mrf.mxu0
    %v3162 = vadd.f32 0.0, %v3161
    %v3163 = vpop.f32.mrf.mxu0
    %3164 = vmatprep.mubr.bf16.mxu0 0
    %3165 = vmatmul.mubr.bf16.gmra.mxu0 %v3111
    %v3166 = vpop.f32.mrf.mxu0
    %v3167 = vadd.f32 0.0, %v3166
    %v3168 = vpop.f32.mrf.mxu0
    %v3169 = vpop.f32.mrf.mxu0
    %v3170 = vadd.f32 0.0, %v3169
    %v3171 = vpop.f32.mrf.mxu0
    %3172 = vmatprep.mubr.bf16.mxu0 0
    %3173 = vmatmul.mubr.bf16.gmra.mxu0 %v3114
    %v3174 = vpop.f32.mrf.mxu0
    %v3175 = vadd.f32 0.0, %v3174
    %v3176 = vpop.f32.mrf.mxu0
    %v3177 = vpop.f32.mrf.mxu0
    %v3178 = vadd.f32 0.0, %v3177
    %v3179 = vpop.f32.mrf.mxu0
    %3180 = vdwg.mxu0
    %3189 = vrot.lane.b32.xlu0 %v2579, 32
    %v3190 = vpop.permute.xlu0 %3189
    %3191 = vrot.lane.b32.xlu0 %v2582, 32
    %v3192 = vpop.permute.xlu0 %3191
    %3193 = vrot.lane.b32.xlu0 %v2587, 32
    %v3194 = vpop.permute.xlu0 %3193
    %3195 = vrot.lane.b32.xlu0 %v2590, 32
    %v3196 = vpop.permute.xlu0 %3195
    %3197 = vrot.lane.b32.xlu0 %v2595, 32
    %v3198 = vpop.permute.xlu0 %3197
    %3199 = vrot.lane.b32.xlu0 %v2598, 32
    %v3200 = vpop.permute.xlu0 %3199
    %3201 = vrot.lane.b32.xlu0 %v2603, 32
    %v3202 = vpop.permute.xlu0 %3201
    %3203 = vrot.lane.b32.xlu0 %v2606, 32
    %v3204 = vpop.permute.xlu0 %3203
    %3221 = vrot.lane.b32.xlu0 %v2865, 64
    %v3222 = vpop.permute.xlu0 %3221
    %3223 = vrot.lane.b32.xlu0 %v2868, 64
    %v3224 = vpop.permute.xlu0 %3223
    %3225 = vrot.lane.b32.xlu0 %v2873, 64
    %v3226 = vpop.permute.xlu0 %3225
    %3227 = vrot.lane.b32.xlu0 %v2876, 64
    %v3228 = vpop.permute.xlu0 %3227
    %3229 = vrot.lane.b32.xlu0 %v2881, 64
    %v3230 = vpop.permute.xlu0 %3229
    %3231 = vrot.lane.b32.xlu0 %v2884, 64
    %v3232 = vpop.permute.xlu0 %3231
    %3233 = vrot.lane.b32.xlu0 %v2889, 64
    %v3234 = vpop.permute.xlu0 %3233
    %3235 = vrot.lane.b32.xlu0 %v2892, 64
    %v3236 = vpop.permute.xlu0 %3235
    %3253 = vrot.lane.b32.xlu0 %v3151, 96
    %v3254 = vpop.permute.xlu0 %3253
    %3255 = vrot.lane.b32.xlu0 %v3154, 96
    %v3256 = vpop.permute.xlu0 %3255
    %3257 = vrot.lane.b32.xlu0 %v3159, 96
    %v3258 = vpop.permute.xlu0 %3257
    %3259 = vrot.lane.b32.xlu0 %v3162, 96
    %v3260 = vpop.permute.xlu0 %3259
    %3261 = vrot.lane.b32.xlu0 %v3167, 96
    %v3262 = vpop.permute.xlu0 %3261
    %3263 = vrot.lane.b32.xlu0 %v3170, 96
    %v3264 = vpop.permute.xlu0 %3263
    %3265 = vrot.lane.b32.xlu0 %v3175, 96
    %v3266 = vpop.permute.xlu0 %3265
    %3267 = vrot.lane.b32.xlu0 %v3178, 96
    %v3268 = vpop.permute.xlu0 %3267
    %v3277 = vsel %vm802, %v2281, %v3190
    %v3278 = vsel %vm802, %v2284, %v3192
    %v3279 = vsel %vm802, %v2289, %v3194
    %v3280 = vsel %vm802, %v2292, %v3196
    %v3281 = vsel %vm802, %v2297, %v3198
    %v3282 = vsel %vm802, %v2300, %v3200
    %v3283 = vsel %vm802, %v2305, %v3202
    %v3284 = vsel %vm802, %v2308, %v3204
    %v3285 = vsel %vm892, %v3277, %v3222
    %v3286 = vsel %vm892, %v3278, %v3224
    %v3287 = vsel %vm892, %v3279, %v3226
    %v3288 = vsel %vm892, %v3280, %v3228
    %v3289 = vsel %vm892, %v3281, %v3230
    %v3290 = vsel %vm892, %v3282, %v3232
    %v3291 = vsel %vm892, %v3283, %v3234
    %v3292 = vsel %vm892, %v3284, %v3236
    %v3293 = vsel %vm2044, %v3285, %v3254
    %v3294 = vsel %vm2044, %v3286, %v3256
    %v3295 = vsel %vm2044, %v3287, %v3258
    %v3296 = vsel %vm2044, %v3288, %v3260
    %v3297 = vsel %vm2044, %v3289, %v3262
    %v3298 = vsel %vm2044, %v3290, %v3264
    %v3299 = vsel %vm2044, %v3291, %v3266
    %v3300 = vsel %vm2044, %v3292, %v3268
    %v3301 = vpack.c.bf16 %v2046, %v2045
    %v3302 = vpack.c.bf16 %v2048, %v2047
    %v3303 = vpack.c.bf16 %v2050, %v2049
    %v3304 = vpack.c.bf16 %v2052, %v2051
    %v3305 = vpack.c.bf16 %v3294, %v3293
    %v3306 = vpack.c.bf16 %v3296, %v3295
    %v3307 = vpack.c.bf16 %v3298, %v3297
    %v3308 = vpack.c.bf16 %v3300, %v3299
    %v3309 = vld [vmem:[#allocation7] sm:$0xf]
    %v3310 = vld [vmem:[#allocation7 + $0x4] sm:$0xf]
    %v3311 = vld [vmem:[#allocation7 + $0x8] sm:$0xf]
    %v3312 = vld [vmem:[#allocation7 + $0xc] sm:$0xf]
    %v3313 = vld [vmem:[#allocation7 + $0x10] sm:$0xf]
    %v3314 = vld [vmem:[#allocation7 + $0x14] sm:$0xf]
    %v3315 = vld [vmem:[#allocation7 + $0x18] sm:$0xf]
    %v3316 = vld [vmem:[#allocation7 + $0x1c] sm:$0xf]
    %v3317 = vld [vmem:[#allocation7 + $0x20] sm:$0xf]
    %v3318 = vld [vmem:[#allocation7 + $0x24] sm:$0xf]
    %v3319 = vld [vmem:[#allocation7 + $0x28] sm:$0xf]
    %v3320 = vld [vmem:[#allocation7 + $0x2c] sm:$0xf]
    %v3321 = vld [vmem:[#allocation7 + $0x30] sm:$0xf]
    %v3322 = vld [vmem:[#allocation7 + $0x34] sm:$0xf]
    %v3323 = vld [vmem:[#allocation7 + $0x38] sm:$0xf]
    %v3324 = vld [vmem:[#allocation7 + $0x3c] sm:$0xf]
    %v3325 = vld [vmem:[%s5] sm:$0x1]
    %v3327 = vlaneseq
    %v3328 = vshrl.u32 %v3327, 7
    %v3329 = vsub.s32 0, %v3328
    %v3330 = vrot.slane %v3325, %v3329
    %v3348 = vunpack.c.l.b16 %v3309
    %v3349 = vunpack.c.l.b16 %v3310
    %v3350 = vunpack.c.l.b16 %v3311
    %v3351 = vunpack.c.l.b16 %v3312
    %v3352 = vunpack.c.l.b16 %v3313
    %v3353 = vunpack.c.l.b16 %v3314
    %v3354 = vunpack.c.l.b16 %v3315
    %v3355 = vunpack.c.l.b16 %v3316
    %v3356 = vunpack.c.l.b16 %v3317
    %v3357 = vunpack.c.l.b16 %v3318
    %v3358 = vunpack.c.l.b16 %v3319
    %v3359 = vunpack.c.l.b16 %v3320
    %v3360 = vunpack.c.l.b16 %v3321
    %v3361 = vunpack.c.l.b16 %v3322
    %v3362 = vunpack.c.l.b16 %v3323
    %v3363 = vunpack.c.l.b16 %v3324
    %v3364 = vpack.c.b16 %v3349, %v3348
    %v3365 = vpack.c.b16 %v3351, %v3350
    %v3366 = vpack.c.b16 %v3353, %v3352
    %v3367 = vpack.c.b16 %v3355, %v3354
    %v3368 = vpack.c.b16 %v3357, %v3356
    %v3369 = vpack.c.b16 %v3359, %v3358
    %v3370 = vpack.c.b16 %v3361, %v3360
    %v3371 = vpack.c.b16 %v3363, %v3362
    %3380 = vmatprep.subr.bf16.mxu0 0
    %3381 = vmatpush1.bf16.msra.mxu0 %v3371
    %3382 = vmatprep.subr.bf16.mxu0 0
    %3383 = vmatpush1.bf16.msra.mxu0 %v3370
    %3384 = vmatprep.subr.bf16.mxu0 0
    %3385 = vmatpush1.bf16.msra.mxu0 %v3369
    %3386 = vmatprep.subr.bf16.mxu0 0
    %3387 = vmatpush1.bf16.msra.mxu0 %v3368
    %3388 = vmatprep.subr.bf16.mxu0 0
    %3389 = vmatpush1.bf16.msra.mxu0 %v3367
    %3390 = vmatprep.subr.bf16.mxu0 0
    %3391 = vmatpush1.bf16.msra.mxu0 %v3366
    %3392 = vmatprep.subr.bf16.mxu0 0
    %3393 = vmatpush1.bf16.msra.mxu0 %v3365
    %3394 = vmatprep.subr.bf16.mxu0 0
    %3395 = vmatpush1.bf16.msra.mxu0 %v3364
    %3396 = vmatprep.subr.bf16.mxu0 0
    %3397 = vmatpush2.bf16.msra.mxu0 0
    %3398 = vmatprep.subr.bf16.mxu0 0
    %3399 = vmatpush2.bf16.msra.mxu0 0
    %3400 = vmatprep.subr.bf16.mxu0 0
    %3401 = vmatpush2.bf16.msra.mxu0 0
    %3402 = vmatprep.subr.bf16.mxu0 0
    %3403 = vmatpush2.bf16.msra.mxu0 0
    %3404 = vmatprep.subr.bf16.mxu0 0
    %3405 = vmatpush2.bf16.msra.mxu0 0
    %3406 = vmatprep.subr.bf16.mxu0 0
    %3407 = vmatpush2.bf16.msra.mxu0 0
    %3408 = vmatprep.subr.bf16.mxu0 0
    %3409 = vmatpush2.bf16.msra.mxu0 0
    %3410 = vmatprep.subr.bf16.mxu0 0
    %3411 = vmatpush2.bf16.msra.mxu0 0
    %3412 = vmatprep.mubr.bf16.mxu0 0
    %3413 = vmatmul.mubr.bf16.gmra.mxu0 %v3301
    %v3414 = vpop.f32.mrf.mxu0
    %v3415 = vadd.f32 %v3330, %v3414
    %v3416 = vpop.f32.mrf.mxu0
    %v3417 = vpop.f32.mrf.mxu0
    %v3418 = vadd.f32 %v3330, %v3417
    %v3419 = vpop.f32.mrf.mxu0
    %3420 = vmatprep.mubr.bf16.mxu0 0
    %3421 = vmatmul.mubr.bf16.gmra.mxu0 %v3302
    %v3422 = vpop.f32.mrf.mxu0
    %v3423 = vadd.f32 %v3330, %v3422
    %v3424 = vpop.f32.mrf.mxu0
    %v3425 = vpop.f32.mrf.mxu0
    %v3426 = vadd.f32 %v3330, %v3425
    %v3427 = vpop.f32.mrf.mxu0
    %3428 = vmatprep.mubr.bf16.mxu0 0
    %3429 = vmatmul.mubr.bf16.gmra.mxu0 %v3303
    %v3430 = vpop.f32.mrf.mxu0
    %v3431 = vadd.f32 %v3330, %v3430
    %v3432 = vpop.f32.mrf.mxu0
    %v3433 = vpop.f32.mrf.mxu0
    %v3434 = vadd.f32 %v3330, %v3433
    %v3435 = vpop.f32.mrf.mxu0
    %3436 = vmatprep.mubr.bf16.mxu0 0
    %3437 = vmatmul.mubr.bf16.gmra.mxu0 %v3304
    %v3438 = vpop.f32.mrf.mxu0
    %v3439 = vadd.f32 %v3330, %v3438
    %v3440 = vpop.f32.mrf.mxu0
    %v3441 = vpop.f32.mrf.mxu0
    %v3442 = vadd.f32 %v3330, %v3441
    %v3443 = vpop.f32.mrf.mxu0
    %3444 = vmatprep.mubr.bf16.mxu0 0
    %3445 = vmatmul.mubr.bf16.gmra.mxu0 %v3305
    %v3446 = vpop.f32.mrf.mxu0
    %v3447 = vadd.f32 %v3330, %v3446
    %v3448 = vpop.f32.mrf.mxu0
    %v3449 = vpop.f32.mrf.mxu0
    %v3450 = vadd.f32 %v3330, %v3449
    %v3451 = vpop.f32.mrf.mxu0
    %3452 = vmatprep.mubr.bf16.mxu0 0
    %3453 = vmatmul.mubr.bf16.gmra.mxu0 %v3306
    %v3454 = vpop.f32.mrf.mxu0
    %v3455 = vadd.f32 %v3330, %v3454
    %v3456 = vpop.f32.mrf.mxu0
    %v3457 = vpop.f32.mrf.mxu0
    %v3458 = vadd.f32 %v3330, %v3457
    %v3459 = vpop.f32.mrf.mxu0
    %3460 = vmatprep.mubr.bf16.mxu0 0
    %3461 = vmatmul.mubr.bf16.gmra.mxu0 %v3307
    %v3462 = vpop.f32.mrf.mxu0
    %v3463 = vadd.f32 %v3330, %v3462
    %v3464 = vpop.f32.mrf.mxu0
    %v3465 = vpop.f32.mrf.mxu0
    %v3466 = vadd.f32 %v3330, %v3465
    %v3467 = vpop.f32.mrf.mxu0
    %3468 = vmatprep.mubr.bf16.mxu0 0
    %3469 = vmatmul.mubr.bf16.gmra.mxu0 %v3308
    %v3470 = vpop.f32.mrf.mxu0
    %v3471 = vadd.f32 %v3330, %v3470
    %v3472 = vpop.f32.mrf.mxu0
    %v3473 = vpop.f32.mrf.mxu0
    %v3474 = vadd.f32 %v3330, %v3473
    %v3475 = vpop.f32.mrf.mxu0
    %3476 = vdwg.mxu0
    %v3477 = vadd.f32 %v134, %v3415
    %v3478 = vadd.f32 %v135, %v3418
    %v3479 = vadd.f32 %v136, %v3423
    %v3480 = vadd.f32 %v137, %v3426
    %v3481 = vadd.f32 %v138, %v3431
    %v3482 = vadd.f32 %v139, %v3434
    %v3483 = vadd.f32 %v140, %v3439
    %v3484 = vadd.f32 %v141, %v3442
    %v3485 = vadd.f32 %v142, %v3447
    %v3486 = vadd.f32 %v143, %v3450
    %v3487 = vadd.f32 %v144, %v3455
    %v3488 = vadd.f32 %v145, %v3458
    %v3489 = vadd.f32 %v146, %v3463
    %v3490 = vadd.f32 %v147, %v3466
    %v3491 = vadd.f32 %v148, %v3471
    %v3492 = vadd.f32 %v149, %v3474
    %v3493 = vld [vmem:[%s6] sm:$0x1]
    %v3494 = vld [vmem:[%s7] sm:$0x1]
    %3495 = vadd.xlane.f32.xlu0 %v3477
    %v3496 = vpop.xlane.xlu0 %3495
    %3497 = vadd.xlane.f32.xlu0 %v3478
    %v3498 = vpop.xlane.xlu0 %3497
    %3499 = vadd.xlane.f32.xlu0 %v3479
    %v3500 = vpop.xlane.xlu0 %3499
    %3501 = vadd.xlane.f32.xlu0 %v3480
    %v3502 = vpop.xlane.xlu0 %3501
    %3503 = vadd.xlane.f32.xlu0 %v3481
    %v3504 = vpop.xlane.xlu0 %3503
    %3505 = vadd.xlane.f32.xlu0 %v3482
    %v3506 = vpop.xlane.xlu0 %3505
    %3507 = vadd.xlane.f32.xlu0 %v3483
    %v3508 = vpop.xlane.xlu0 %3507
    %3509 = vadd.xlane.f32.xlu0 %v3484
    %v3510 = vpop.xlane.xlu0 %3509
    %3511 = vadd.xlane.f32.xlu0 %v3485
    %v3512 = vpop.xlane.xlu0 %3511
    %3513 = vadd.xlane.f32.xlu0 %v3486
    %v3514 = vpop.xlane.xlu0 %3513
    %3515 = vadd.xlane.f32.xlu0 %v3487
    %v3516 = vpop.xlane.xlu0 %3515
    %3517 = vadd.xlane.f32.xlu0 %v3488
    %v3518 = vpop.xlane.xlu0 %3517
    %3519 = vadd.xlane.f32.xlu0 %v3489
    %v3520 = vpop.xlane.xlu0 %3519
    %3521 = vadd.xlane.f32.xlu0 %v3490
    %v3522 = vpop.xlane.xlu0 %3521
    %3523 = vadd.xlane.f32.xlu0 %v3491
    %v3524 = vpop.xlane.xlu0 %3523
    %3525 = vadd.xlane.f32.xlu0 %v3492
    %v3526 = vpop.xlane.xlu0 %3525
    %v3527 = vmul.f32 %v3496, %v184
    %v3528 = vmul.f32 %v3498, %v184
    %v3529 = vmul.f32 %v3500, %v184
    %v3530 = vmul.f32 %v3502, %v184
    %v3531 = vmul.f32 %v3504, %v184
    %v3532 = vmul.f32 %v3506, %v184
    %v3533 = vmul.f32 %v3508, %v184
    %v3534 = vmul.f32 %v3510, %v184
    %v3535 = vmul.f32 %v3512, %v184
    %v3536 = vmul.f32 %v3514, %v184
    %v3537 = vmul.f32 %v3516, %v184
    %v3538 = vmul.f32 %v3518, %v184
    %v3539 = vmul.f32 %v3520, %v184
    %v3540 = vmul.f32 %v3522, %v184
    %v3541 = vmul.f32 %v3524, %v184
    %v3542 = vmul.f32 %v3526, %v184
    %v3543 = vsub.f32 %v3477, %v3527
    %v3544 = vsub.f32 %v3478, %v3528
    %v3545 = vsub.f32 %v3479, %v3529
    %v3546 = vsub.f32 %v3480, %v3530
    %v3547 = vsub.f32 %v3481, %v3531
    %v3548 = vsub.f32 %v3482, %v3532
    %v3549 = vsub.f32 %v3483, %v3533
    %v3550 = vsub.f32 %v3484, %v3534
    %v3551 = vsub.f32 %v3485, %v3535
    %v3552 = vsub.f32 %v3486, %v3536
    %v3553 = vsub.f32 %v3487, %v3537
    %v3554 = vsub.f32 %v3488, %v3538
    %v3555 = vsub.f32 %v3489, %v3539
    %v3556 = vsub.f32 %v3490, %v3540
    %v3557 = vsub.f32 %v3491, %v3541
    %v3558 = vsub.f32 %v3492, %v3542
    %v3559 = vmul.f32 %v3543, %v3543
    %v3560 = vmul.f32 %v3544, %v3544
    %v3561 = vmul.f32 %v3545, %v3545
    %v3562 = vmul.f32 %v3546, %v3546
    %v3563 = vmul.f32 %v3547, %v3547
    %v3564 = vmul.f32 %v3548, %v3548
    %v3565 = vmul.f32 %v3549, %v3549
    %v3566 = vmul.f32 %v3550, %v3550
    %v3567 = vmul.f32 %v3551, %v3551
    %v3568 = vmul.f32 %v3552, %v3552
    %v3569 = vmul.f32 %v3553, %v3553
    %v3570 = vmul.f32 %v3554, %v3554
    %v3571 = vmul.f32 %v3555, %v3555
    %v3572 = vmul.f32 %v3556, %v3556
    %v3573 = vmul.f32 %v3557, %v3557
    %v3574 = vmul.f32 %v3558, %v3558
    %3575 = vadd.xlane.f32.xlu0 %v3559
    %v3576 = vpop.xlane.xlu0 %3575
    %3577 = vadd.xlane.f32.xlu0 %v3560
    %v3578 = vpop.xlane.xlu0 %3577
    %3579 = vadd.xlane.f32.xlu0 %v3561
    %v3580 = vpop.xlane.xlu0 %3579
    %3581 = vadd.xlane.f32.xlu0 %v3562
    %v3582 = vpop.xlane.xlu0 %3581
    %3583 = vadd.xlane.f32.xlu0 %v3563
    %v3584 = vpop.xlane.xlu0 %3583
    %3585 = vadd.xlane.f32.xlu0 %v3564
    %v3586 = vpop.xlane.xlu0 %3585
    %3587 = vadd.xlane.f32.xlu0 %v3565
    %v3588 = vpop.xlane.xlu0 %3587
    %3589 = vadd.xlane.f32.xlu0 %v3566
    %v3590 = vpop.xlane.xlu0 %3589
    %3591 = vadd.xlane.f32.xlu0 %v3567
    %v3592 = vpop.xlane.xlu0 %3591
    %3593 = vadd.xlane.f32.xlu0 %v3568
    %v3594 = vpop.xlane.xlu0 %3593
    %3595 = vadd.xlane.f32.xlu0 %v3569
    %v3596 = vpop.xlane.xlu0 %3595
    %3597 = vadd.xlane.f32.xlu0 %v3570
    %v3598 = vpop.xlane.xlu0 %3597
    %3599 = vadd.xlane.f32.xlu0 %v3571
    %v3600 = vpop.xlane.xlu0 %3599
    %3601 = vadd.xlane.f32.xlu0 %v3572
    %v3602 = vpop.xlane.xlu0 %3601
    %3603 = vadd.xlane.f32.xlu0 %v3573
    %v3604 = vpop.xlane.xlu0 %3603
    %3605 = vadd.xlane.f32.xlu0 %v3574
    %v3606 = vpop.xlane.xlu0 %3605
    %v3607 = vmul.f32 %v3576, %v184
    %v3608 = vmul.f32 %v3578, %v184
    %v3609 = vmul.f32 %v3580, %v184
    %v3610 = vmul.f32 %v3582, %v184
    %v3611 = vmul.f32 %v3584, %v184
    %v3612 = vmul.f32 %v3586, %v184
    %v3613 = vmul.f32 %v3588, %v184
    %v3614 = vmul.f32 %v3590, %v184
    %v3615 = vmul.f32 %v3592, %v184
    %v3616 = vmul.f32 %v3594, %v184
    %v3617 = vmul.f32 %v3596, %v184
    %v3618 = vmul.f32 %v3598, %v184
    %v3619 = vmul.f32 %v3600, %v184
    %v3620 = vmul.f32 %v3602, %v184
    %v3621 = vmul.f32 %v3604, %v184
    %v3622 = vmul.f32 %v3606, %v184
    %v3623 = vadd.f32 %v3607, 1e-05
    %v3624 = vadd.f32 %v3608, 1e-05
    %v3625 = vadd.f32 %v3609, 1e-05
    %v3626 = vadd.f32 %v3610, 1e-05
    %v3627 = vadd.f32 %v3611, 1e-05
    %v3628 = vadd.f32 %v3612, 1e-05
    %v3629 = vadd.f32 %v3613, 1e-05
    %v3630 = vadd.f32 %v3614, 1e-05
    %v3631 = vadd.f32 %v3615, 1e-05
    %v3632 = vadd.f32 %v3616, 1e-05
    %v3633 = vadd.f32 %v3617, 1e-05
    %v3634 = vadd.f32 %v3618, 1e-05
    %v3635 = vadd.f32 %v3619, 1e-05
    %v3636 = vadd.f32 %v3620, 1e-05
    %v3637 = vadd.f32 %v3621, 1e-05
    %v3638 = vadd.f32 %v3622, 1e-05
    %v3639 = vrsqrt.pop %v3623
    %v3640 = vrsqrt.pop %v3624
    %v3641 = vrsqrt.pop %v3625
    %v3642 = vrsqrt.pop %v3626
    %v3643 = vrsqrt.pop %v3627
    %v3644 = vrsqrt.pop %v3628
    %v3645 = vrsqrt.pop %v3629
    %v3646 = vrsqrt.pop %v3630
    %v3647 = vrsqrt.pop %v3631
    %v3648 = vrsqrt.pop %v3632
    %v3649 = vrsqrt.pop %v3633
    %v3650 = vrsqrt.pop %v3634
    %v3651 = vrsqrt.pop %v3635
    %v3652 = vrsqrt.pop %v3636
    %v3653 = vrsqrt.pop %v3637
    %v3654 = vrsqrt.pop %v3638
    %v3655 = vmul.f32 %v3543, %v3639
    %v3656 = vmul.f32 %v3544, %v3640
    %v3657 = vmul.f32 %v3545, %v3641
    %v3658 = vmul.f32 %v3546, %v3642
    %v3659 = vmul.f32 %v3547, %v3643
    %v3660 = vmul.f32 %v3548, %v3644
    %v3661 = vmul.f32 %v3549, %v3645
    %v3662 = vmul.f32 %v3550, %v3646
    %v3663 = vmul.f32 %v3551, %v3647
    %v3664 = vmul.f32 %v3552, %v3648
    %v3665 = vmul.f32 %v3553, %v3649
    %v3666 = vmul.f32 %v3554, %v3650
    %v3667 = vmul.f32 %v3555, %v3651
    %v3668 = vmul.f32 %v3556, %v3652
    %v3669 = vmul.f32 %v3557, %v3653
    %v3670 = vmul.f32 %v3558, %v3654
    %v3672 = vlaneseq
    %v3673 = vshrl.u32 %v3672, 7
    %v3674 = vsub.s32 0, %v3673
    %v3675 = vrot.slane %v3493, %v3674
    %v3677 = vmul.f32 %v3655, %v3675
    %v3678 = vmul.f32 %v3656, %v3675
    %v3679 = vmul.f32 %v3657, %v3675
    %v3680 = vmul.f32 %v3658, %v3675
    %v3681 = vmul.f32 %v3659, %v3675
    %v3682 = vmul.f32 %v3660, %v3675
    %v3683 = vmul.f32 %v3661, %v3675
    %v3684 = vmul.f32 %v3662, %v3675
    %v3685 = vmul.f32 %v3663, %v3675
    %v3686 = vmul.f32 %v3664, %v3675
    %v3687 = vmul.f32 %v3665, %v3675
    %v3688 = vmul.f32 %v3666, %v3675
    %v3689 = vmul.f32 %v3667, %v3675
    %v3690 = vmul.f32 %v3668, %v3675
    %v3691 = vmul.f32 %v3669, %v3675
    %v3692 = vmul.f32 %v3670, %v3675
    %v3694 = vlaneseq
    %v3695 = vshrl.u32 %v3694, 7
    %v3696 = vsub.s32 0, %v3695
    %v3697 = vrot.slane %v3494, %v3696
    %v3699 = vadd.f32 %v3677, %v3697
    %v3700 = vadd.f32 %v3678, %v3697
    %v3701 = vadd.f32 %v3679, %v3697
    %v3702 = vadd.f32 %v3680, %v3697
    %v3703 = vadd.f32 %v3681, %v3697
    %v3704 = vadd.f32 %v3682, %v3697
    %v3705 = vadd.f32 %v3683, %v3697
    %v3706 = vadd.f32 %v3684, %v3697
    %v3707 = vadd.f32 %v3685, %v3697
    %v3708 = vadd.f32 %v3686, %v3697
    %v3709 = vadd.f32 %v3687, %v3697
    %v3710 = vadd.f32 %v3688, %v3697
    %v3711 = vadd.f32 %v3689, %v3697
    %v3712 = vadd.f32 %v3690, %v3697
    %v3713 = vadd.f32 %v3691, %v3697
    %v3714 = vadd.f32 %v3692, %v3697
    %v3715 = vpack.c.bf16 %v3700, %v3699
    %v3716 = vpack.c.bf16 %v3702, %v3701
    %v3717 = vpack.c.bf16 %v3704, %v3703
    %v3718 = vpack.c.bf16 %v3706, %v3705
    %v3719 = vpack.c.bf16 %v3708, %v3707
    %v3720 = vpack.c.bf16 %v3710, %v3709
    %v3721 = vpack.c.bf16 %v3712, %v3711
    %v3722 = vpack.c.bf16 %v3714, %v3713
    %v3723 = vld [vmem:[#allocation8] sm:$0xff]
    %v3724 = vld [vmem:[#allocation8 + $0x8] sm:$0xff]
    %v3725 = vld [vmem:[#allocation8 + $0x10] sm:$0xff]
    %v3726 = vld [vmem:[#allocation8 + $0x18] sm:$0xff]
    %v3727 = vld [vmem:[#allocation8 + $0x20] sm:$0xff]
    %v3728 = vld [vmem:[#allocation8 + $0x28] sm:$0xff]
    %v3729 = vld [vmem:[#allocation8 + $0x30] sm:$0xff]
    %v3730 = vld [vmem:[#allocation8 + $0x38] sm:$0xff]
    %v3731 = vld [vmem:[#allocation8 + $0x40] sm:$0xff]
    %v3732 = vld [vmem:[#allocation8 + $0x48] sm:$0xff]
    %v3733 = vld [vmem:[#allocation8 + $0x50] sm:$0xff]
    %v3734 = vld [vmem:[#allocation8 + $0x58] sm:$0xff]
    %v3735 = vld [vmem:[#allocation8 + $0x60] sm:$0xff]
    %v3736 = vld [vmem:[#allocation8 + $0x68] sm:$0xff]
    %v3737 = vld [vmem:[#allocation8 + $0x70] sm:$0xff]
    %v3738 = vld [vmem:[#allocation8 + $0x78] sm:$0xff]
    %v3739 = vld [vmem:[#allocation8 + $0x80] sm:$0xff]
    %v3740 = vld [vmem:[#allocation8 + $0x88] sm:$0xff]
    %v3741 = vld [vmem:[#allocation8 + $0x90] sm:$0xff]
    %v3742 = vld [vmem:[#allocation8 + $0x98] sm:$0xff]
    %v3743 = vld [vmem:[#allocation8 + $0xa0] sm:$0xff]
    %v3744 = vld [vmem:[#allocation8 + $0xa8] sm:$0xff]
    %v3745 = vld [vmem:[#allocation8 + $0xb0] sm:$0xff]
    %v3746 = vld [vmem:[#allocation8 + $0xb8] sm:$0xff]
    %v3747 = vld [vmem:[#allocation8 + $0xc0] sm:$0xff]
    %v3748 = vld [vmem:[#allocation8 + $0xc8] sm:$0xff]
    %v3749 = vld [vmem:[#allocation8 + $0xd0] sm:$0xff]
    %v3750 = vld [vmem:[#allocation8 + $0xd8] sm:$0xff]
    %v3751 = vld [vmem:[#allocation8 + $0xe0] sm:$0xff]
    %v3752 = vld [vmem:[#allocation8 + $0xe8] sm:$0xff]
    %v3753 = vld [vmem:[#allocation8 + $0xf0] sm:$0xff]
    %v3754 = vld [vmem:[#allocation8 + $0xf8] sm:$0xff]
    %v3755 = vld [vmem:[#allocation10] sm:$0xf]
    %v3757 = vlaneseq
    %v3758 = vshrl.u32 %v3757, 7
    %v3759 = vsub.s32 0, %v3758
    %v3760 = vrot.slane %v3755, %v3759
    %v3761 = vlaneseq
    %v3762 = vshrl.u32 %v3761, 7
    %v3763 = vsub.s32 1, %v3762
    %v3764 = vrot.slane %v3755, %v3763
    %v3765 = vlaneseq
    %v3766 = vshrl.u32 %v3765, 7
    %v3767 = vsub.s32 2, %v3766
    %v3768 = vrot.slane %v3755, %v3767
    %v3769 = vlaneseq
    %v3770 = vshrl.u32 %v3769, 7
    %v3771 = vsub.s32 3, %v3770
    %v3772 = vrot.slane %v3755, %v3771
    %v3809 = vunpack.c.l.b16 %v3723
    %v3810 = vunpack.c.h.b16 %v3723
    %v3811 = vunpack.c.l.b16 %v3724
    %v3812 = vunpack.c.h.b16 %v3724
    %v3813 = vunpack.c.l.b16 %v3725
    %v3814 = vunpack.c.h.b16 %v3725
    %v3815 = vunpack.c.l.b16 %v3726
    %v3816 = vunpack.c.h.b16 %v3726
    %v3817 = vunpack.c.l.b16 %v3727
    %v3818 = vunpack.c.h.b16 %v3727
    %v3819 = vunpack.c.l.b16 %v3728
    %v3820 = vunpack.c.h.b16 %v3728
    %v3821 = vunpack.c.l.b16 %v3729
    %v3822 = vunpack.c.h.b16 %v3729
    %v3823 = vunpack.c.l.b16 %v3730
    %v3824 = vunpack.c.h.b16 %v3730
    %v3825 = vunpack.c.l.b16 %v3731
    %v3826 = vunpack.c.h.b16 %v3731
    %v3827 = vunpack.c.l.b16 %v3732
    %v3828 = vunpack.c.h.b16 %v3732
    %v3829 = vunpack.c.l.b16 %v3733
    %v3830 = vunpack.c.h.b16 %v3733
    %v3831 = vunpack.c.l.b16 %v3734
    %v3832 = vunpack.c.h.b16 %v3734
    %v3833 = vunpack.c.l.b16 %v3735
    %v3834 = vunpack.c.h.b16 %v3735
    %v3835 = vunpack.c.l.b16 %v3736
    %v3836 = vunpack.c.h.b16 %v3736
    %v3837 = vunpack.c.l.b16 %v3737
    %v3838 = vunpack.c.h.b16 %v3737
    %v3839 = vunpack.c.l.b16 %v3738
    %v3840 = vunpack.c.h.b16 %v3738
    %v3841 = vunpack.c.l.b16 %v3739
    %v3842 = vunpack.c.h.b16 %v3739
    %v3843 = vunpack.c.l.b16 %v3740
    %v3844 = vunpack.c.h.b16 %v3740
    %v3845 = vunpack.c.l.b16 %v3741
    %v3846 = vunpack.c.h.b16 %v3741
    %v3847 = vunpack.c.l.b16 %v3742
    %v3848 = vunpack.c.h.b16 %v3742
    %v3849 = vunpack.c.l.b16 %v3743
    %v3850 = vunpack.c.h.b16 %v3743
    %v3851 = vunpack.c.l.b16 %v3744
    %v3852 = vunpack.c.h.b16 %v3744
    %v3853 = vunpack.c.l.b16 %v3745
    %v3854 = vunpack.c.h.b16 %v3745
    %v3855 = vunpack.c.l.b16 %v3746
    %v3856 = vunpack.c.h.b16 %v3746
    %v3857 = vunpack.c.l.b16 %v3747
    %v3858 = vunpack.c.h.b16 %v3747
    %v3859 = vunpack.c.l.b16 %v3748
    %v3860 = vunpack.c.h.b16 %v3748
    %v3861 = vunpack.c.l.b16 %v3749
    %v3862 = vunpack.c.h.b16 %v3749
    %v3863 = vunpack.c.l.b16 %v3750
    %v3864 = vunpack.c.h.b16 %v3750
    %v3865 = vunpack.c.l.b16 %v3751
    %v3866 = vunpack.c.h.b16 %v3751
    %v3867 = vunpack.c.l.b16 %v3752
    %v3868 = vunpack.c.h.b16 %v3752
    %v3869 = vunpack.c.l.b16 %v3753
    %v3870 = vunpack.c.h.b16 %v3753
    %v3871 = vunpack.c.l.b16 %v3754
    %v3872 = vunpack.c.h.b16 %v3754
    %v3873 = vpack.c.b16 %v3813, %v3809
    %v3874 = vpack.c.b16 %v3814, %v3810
    %v3875 = vpack.c.b16 %v3815, %v3811
    %v3876 = vpack.c.b16 %v3816, %v3812
    %v3877 = vpack.c.b16 %v3821, %v3817
    %v3878 = vpack.c.b16 %v3822, %v3818
    %v3879 = vpack.c.b16 %v3823, %v3819
    %v3880 = vpack.c.b16 %v3824, %v3820
    %v3881 = vpack.c.b16 %v3829, %v3825
    %v3882 = vpack.c.b16 %v3830, %v3826
    %v3883 = vpack.c.b16 %v3831, %v3827
    %v3884 = vpack.c.b16 %v3832, %v3828
    %v3885 = vpack.c.b16 %v3837, %v3833
    %v3886 = vpack.c.b16 %v3838, %v3834
    %v3887 = vpack.c.b16 %v3839, %v3835
    %v3888 = vpack.c.b16 %v3840, %v3836
    %v3889 = vpack.c.b16 %v3845, %v3841
    %v3890 = vpack.c.b16 %v3846, %v3842
    %v3891 = vpack.c.b16 %v3847, %v3843
    %v3892 = vpack.c.b16 %v3848, %v3844
    %v3893 = vpack.c.b16 %v3853, %v3849
    %v3894 = vpack.c.b16 %v3854, %v3850
    %v3895 = vpack.c.b16 %v3855, %v3851
    %v3896 = vpack.c.b16 %v3856, %v3852
    %v3897 = vpack.c.b16 %v3861, %v3857
    %v3898 = vpack.c.b16 %v3862, %v3858
    %v3899 = vpack.c.b16 %v3863, %v3859
    %v3900 = vpack.c.b16 %v3864, %v3860
    %v3901 = vpack.c.b16 %v3869, %v3865
    %v3902 = vpack.c.b16 %v3870, %v3866
    %v3903 = vpack.c.b16 %v3871, %v3867
    %v3904 = vpack.c.b16 %v3872, %v3868
    %3937 = vmatprep.subr.bf16.mxu0 %v3902
    %3938 = vmatpush1.bf16.msra.mxu0 %v3901
    %3939 = vmatprep.subr.bf16.mxu0 %v3898
    %3940 = vmatpush1.bf16.msra.mxu0 %v3897
    %3941 = vmatprep.subr.bf16.mxu0 %v3894
    %3942 = vmatpush1.bf16.msra.mxu0 %v3893
    %3943 = vmatprep.subr.bf16.mxu0 %v3890
    %3944 = vmatpush1.bf16.msra.mxu0 %v3889
    %3945 = vmatprep.subr.bf16.mxu0 %v3886
    %3946 = vmatpush1.bf16.msra.mxu0 %v3885
    %3947 = vmatprep.subr.bf16.mxu0 %v3882
    %3948 = vmatpush1.bf16.msra.mxu0 %v3881
    %3949 = vmatprep.subr.bf16.mxu0 %v3878
    %3950 = vmatpush1.bf16.msra.mxu0 %v3877
    %3951 = vmatprep.subr.bf16.mxu0 %v3874
    %3952 = vmatpush1.bf16.msra.mxu0 %v3873
    %3953 = vmatprep.subr.bf16.mxu0 0
    %3954 = vmatpush2.bf16.msra.mxu0 0
    %3955 = vmatprep.subr.bf16.mxu0 0
    %3956 = vmatpush2.bf16.msra.mxu0 0
    %3957 = vmatprep.subr.bf16.mxu0 0
    %3958 = vmatpush2.bf16.msra.mxu0 0
    %3959 = vmatprep.subr.bf16.mxu0 0
    %3960 = vmatpush2.bf16.msra.mxu0 0
    %3961 = vmatprep.subr.bf16.mxu0 0
    %3962 = vmatpush2.bf16.msra.mxu0 0
    %3963 = vmatprep.subr.bf16.mxu0 0
    %3964 = vmatpush2.bf16.msra.mxu0 0
    %3965 = vmatprep.subr.bf16.mxu0 0
    %3966 = vmatpush2.bf16.msra.mxu0 0
    %3967 = vmatprep.subr.bf16.mxu0 0
    %3968 = vmatpush2.bf16.msra.mxu0 0
    %3969 = vmatprep.mubr.bf16.mxu0 0
    %3970 = vmatmul.mubr.bf16.gmra.mxu0 %v3715
    %v3971 = vpop.f32.mrf.mxu0
    %v3972 = vadd.f32 %v3760, %v3971
    %v3973 = vpop.f32.mrf.mxu0
    %v3974 = vadd.f32 %v3764, %v3973
    %v3975 = vpop.f32.mrf.mxu0
    %v3976 = vadd.f32 %v3760, %v3975
    %v3977 = vpop.f32.mrf.mxu0
    %v3978 = vadd.f32 %v3764, %v3977
    %3979 = vmatprep.mubr.bf16.mxu0 0
    %3980 = vmatmul.mubr.bf16.gmra.mxu0 %v3716
    %v3981 = vpop.f32.mrf.mxu0
    %v3982 = vadd.f32 %v3760, %v3981
    %v3983 = vpop.f32.mrf.mxu0
    %v3984 = vadd.f32 %v3764, %v3983
    %v3985 = vpop.f32.mrf.mxu0
    %v3986 = vadd.f32 %v3760, %v3985
    %v3987 = vpop.f32.mrf.mxu0
    %v3988 = vadd.f32 %v3764, %v3987
    %3989 = vmatprep.mubr.bf16.mxu0 0
    %3990 = vmatmul.mubr.bf16.gmra.mxu0 %v3717
    %v3991 = vpop.f32.mrf.mxu0
    %v3992 = vadd.f32 %v3760, %v3991
    %v3993 = vpop.f32.mrf.mxu0
    %v3994 = vadd.f32 %v3764, %v3993
    %v3995 = vpop.f32.mrf.mxu0
    %v3996 = vadd.f32 %v3760, %v3995
    %v3997 = vpop.f32.mrf.mxu0
    %v3998 = vadd.f32 %v3764, %v3997
    %3999 = vmatprep.mubr.bf16.mxu0 0
    %4000 = vmatmul.mubr.bf16.gmra.mxu0 %v3718
    %v4001 = vpop.f32.mrf.mxu0
    %v4002 = vadd.f32 %v3760, %v4001
    %v4003 = vpop.f32.mrf.mxu0
    %v4004 = vadd.f32 %v3764, %v4003
    %v4005 = vpop.f32.mrf.mxu0
    %v4006 = vadd.f32 %v3760, %v4005
    %v4007 = vpop.f32.mrf.mxu0
    %v4008 = vadd.f32 %v3764, %v4007
    %4009 = vmatprep.mubr.bf16.mxu0 0
    %4010 = vmatmul.mubr.bf16.gmra.mxu0 %v3719
    %v4011 = vpop.f32.mrf.mxu0
    %v4012 = vadd.f32 %v3760, %v4011
    %v4013 = vpop.f32.mrf.mxu0
    %v4014 = vadd.f32 %v3764, %v4013
    %v4015 = vpop.f32.mrf.mxu0
    %v4016 = vadd.f32 %v3760, %v4015
    %v4017 = vpop.f32.mrf.mxu0
    %v4018 = vadd.f32 %v3764, %v4017
    %4019 = vmatprep.mubr.bf16.mxu0 0
    %4020 = vmatmul.mubr.bf16.gmra.mxu0 %v3720
    %v4021 = vpop.f32.mrf.mxu0
    %v4022 = vadd.f32 %v3760, %v4021
    %v4023 = vpop.f32.mrf.mxu0
    %v4024 = vadd.f32 %v3764, %v4023
    %v4025 = vpop.f32.mrf.mxu0
    %v4026 = vadd.f32 %v3760, %v4025
    %v4027 = vpop.f32.mrf.mxu0
    %v4028 = vadd.f32 %v3764, %v4027
    %4029 = vmatprep.mubr.bf16.mxu0 0
    %4030 = vmatmul.mubr.bf16.gmra.mxu0 %v3721
    %v4031 = vpop.f32.mrf.mxu0
    %v4032 = vadd.f32 %v3760, %v4031
    %v4033 = vpop.f32.mrf.mxu0
    %v4034 = vadd.f32 %v3764, %v4033
    %v4035 = vpop.f32.mrf.mxu0
    %v4036 = vadd.f32 %v3760, %v4035
    %v4037 = vpop.f32.mrf.mxu0
    %v4038 = vadd.f32 %v3764, %v4037
    %4039 = vmatprep.mubr.bf16.mxu0 0
    %4040 = vmatmul.mubr.bf16.gmra.mxu0 %v3722
    %v4041 = vpop.f32.mrf.mxu0
    %v4042 = vadd.f32 %v3760, %v4041
    %v4043 = vpop.f32.mrf.mxu0
    %v4044 = vadd.f32 %v3764, %v4043
    %v4045 = vpop.f32.mrf.mxu0
    %v4046 = vadd.f32 %v3760, %v4045
    %v4047 = vpop.f32.mrf.mxu0
    %v4048 = vadd.f32 %v3764, %v4047
    %4049 = vdwg.mxu0
    %4050 = vmatprep.subr.bf16.mxu0 %v3904
    %4051 = vmatpush1.bf16.msra.mxu0 %v3903
    %4052 = vmatprep.subr.bf16.mxu0 %v3900
    %4053 = vmatpush1.bf16.msra.mxu0 %v3899
    %4054 = vmatprep.subr.bf16.mxu0 %v3896
    %4055 = vmatpush1.bf16.msra.mxu0 %v3895
    %4056 = vmatprep.subr.bf16.mxu0 %v3892
    %4057 = vmatpush1.bf16.msra.mxu0 %v3891
    %4058 = vmatprep.subr.bf16.mxu0 %v3888
    %4059 = vmatpush1.bf16.msra.mxu0 %v3887
    %4060 = vmatprep.subr.bf16.mxu0 %v3884
    %4061 = vmatpush1.bf16.msra.mxu0 %v3883
    %4062 = vmatprep.subr.bf16.mxu0 %v3880
    %4063 = vmatpush1.bf16.msra.mxu0 %v3879
    %4064 = vmatprep.subr.bf16.mxu0 %v3876
    %4065 = vmatpush1.bf16.msra.mxu0 %v3875
    %4066 = vmatprep.subr.bf16.mxu0 0
    %4067 = vmatpush2.bf16.msra.mxu0 0
    %4068 = vmatprep.subr.bf16.mxu0 0
    %4069 = vmatpush2.bf16.msra.mxu0 0
    %4070 = vmatprep.subr.bf16.mxu0 0
    %4071 = vmatpush2.bf16.msra.mxu0 0
    %4072 = vmatprep.subr.bf16.mxu0 0
    %4073 = vmatpush2.bf16.msra.mxu0 0
    %4074 = vmatprep.subr.bf16.mxu0 0
    %4075 = vmatpush2.bf16.msra.mxu0 0
    %4076 = vmatprep.subr.bf16.mxu0 0
    %4077 = vmatpush2.bf16.msra.mxu0 0
    %4078 = vmatprep.subr.bf16.mxu0 0
    %4079 = vmatpush2.bf16.msra.mxu0 0
    %4080 = vmatprep.subr.bf16.mxu0 0
    %4081 = vmatpush2.bf16.msra.mxu0 0
    %4082 = vmatprep.mubr.bf16.mxu0 0
    %4083 = vmatmul.mubr.bf16.gmra.mxu0 %v3715
    %v4084 = vpop.f32.mrf.mxu0
    %v4085 = vadd.f32 %v3768, %v4084
    %v4086 = vpop.f32.mrf.mxu0
    %v4087 = vadd.f32 %v3772, %v4086
    %v4088 = vpop.f32.mrf.mxu0
    %v4089 = vadd.f32 %v3768, %v4088
    %v4090 = vpop.f32.mrf.mxu0
    %v4091 = vadd.f32 %v3772, %v4090
    %4092 = vmatprep.mubr.bf16.mxu0 0
    %4093 = vmatmul.mubr.bf16.gmra.mxu0 %v3716
    %v4094 = vpop.f32.mrf.mxu0
    %v4095 = vadd.f32 %v3768, %v4094
    %v4096 = vpop.f32.mrf.mxu0
    %v4097 = vadd.f32 %v3772, %v4096
    %v4098 = vpop.f32.mrf.mxu0
    %v4099 = vadd.f32 %v3768, %v4098
    %v4100 = vpop.f32.mrf.mxu0
    %v4101 = vadd.f32 %v3772, %v4100
    %4102 = vmatprep.mubr.bf16.mxu0 0
    %4103 = vmatmul.mubr.bf16.gmra.mxu0 %v3717
    %v4104 = vpop.f32.mrf.mxu0
    %v4105 = vadd.f32 %v3768, %v4104
    %v4106 = vpop.f32.mrf.mxu0
    %v4107 = vadd.f32 %v3772, %v4106
    %v4108 = vpop.f32.mrf.mxu0
    %v4109 = vadd.f32 %v3768, %v4108
    %v4110 = vpop.f32.mrf.mxu0
    %v4111 = vadd.f32 %v3772, %v4110
    %4112 = vmatprep.mubr.bf16.mxu0 0
    %4113 = vmatmul.mubr.bf16.gmra.mxu0 %v3718
    %v4114 = vpop.f32.mrf.mxu0
    %v4115 = vadd.f32 %v3768, %v4114
    %v4116 = vpop.f32.mrf.mxu0
    %v4117 = vadd.f32 %v3772, %v4116
    %v4118 = vpop.f32.mrf.mxu0
    %v4119 = vadd.f32 %v3768, %v4118
    %v4120 = vpop.f32.mrf.mxu0
    %v4121 = vadd.f32 %v3772, %v4120
    %4122 = vmatprep.mubr.bf16.mxu0 0
    %4123 = vmatmul.mubr.bf16.gmra.mxu0 %v3719
    %v4124 = vpop.f32.mrf.mxu0
    %v4125 = vadd.f32 %v3768, %v4124
    %v4126 = vpop.f32.mrf.mxu0
    %v4127 = vadd.f32 %v3772, %v4126
    %v4128 = vpop.f32.mrf.mxu0
    %v4129 = vadd.f32 %v3768, %v4128
    %v4130 = vpop.f32.mrf.mxu0
    %v4131 = vadd.f32 %v3772, %v4130
    %4132 = vmatprep.mubr.bf16.mxu0 0
    %4133 = vmatmul.mubr.bf16.gmra.mxu0 %v3720
    %v4134 = vpop.f32.mrf.mxu0
    %v4135 = vadd.f32 %v3768, %v4134
    %v4136 = vpop.f32.mrf.mxu0
    %v4137 = vadd.f32 %v3772, %v4136
    %v4138 = vpop.f32.mrf.mxu0
    %v4139 = vadd.f32 %v3768, %v4138
    %v4140 = vpop.f32.mrf.mxu0
    %v4141 = vadd.f32 %v3772, %v4140
    %4142 = vmatprep.mubr.bf16.mxu0 0
    %4143 = vmatmul.mubr.bf16.gmra.mxu0 %v3721
    %v4144 = vpop.f32.mrf.mxu0
    %v4145 = vadd.f32 %v3768, %v4144
    %v4146 = vpop.f32.mrf.mxu0
    %v4147 = vadd.f32 %v3772, %v4146
    %v4148 = vpop.f32.mrf.mxu0
    %v4149 = vadd.f32 %v3768, %v4148
    %v4150 = vpop.f32.mrf.mxu0
    %v4151 = vadd.f32 %v3772, %v4150
    %4152 = vmatprep.mubr.bf16.mxu0 0
    %4153 = vmatmul.mubr.bf16.gmra.mxu0 %v3722
    %v4154 = vpop.f32.mrf.mxu0
    %v4155 = vadd.f32 %v3768, %v4154
    %v4156 = vpop.f32.mrf.mxu0
    %v4157 = vadd.f32 %v3772, %v4156
    %v4158 = vpop.f32.mrf.mxu0
    %v4159 = vadd.f32 %v3768, %v4158
    %v4160 = vpop.f32.mrf.mxu0
    %v4161 = vadd.f32 %v3772, %v4160
    %4162 = vdwg.mxu0
    %v4163 = vmax.f32 %v3972, 0.0
    %v4164 = vmax.f32 %v3974, 0.0
    %v4165 = vmax.f32 %v4085, 0.0
    %v4166 = vmax.f32 %v4087, 0.0
    %v4167 = vmax.f32 %v3976, 0.0
    %v4168 = vmax.f32 %v3978, 0.0
    %v4169 = vmax.f32 %v4089, 0.0
    %v4170 = vmax.f32 %v4091, 0.0
    %v4171 = vmax.f32 %v3982, 0.0
    %v4172 = vmax.f32 %v3984, 0.0
    %v4173 = vmax.f32 %v4095, 0.0
    %v4174 = vmax.f32 %v4097, 0.0
    %v4175 = vmax.f32 %v3986, 0.0
    %v4176 = vmax.f32 %v3988, 0.0
    %v4177 = vmax.f32 %v4099, 0.0
    %v4178 = vmax.f32 %v4101, 0.0
    %v4179 = vmax.f32 %v3992, 0.0
    %v4180 = vmax.f32 %v3994, 0.0
    %v4181 = vmax.f32 %v4105, 0.0
    %v4182 = vmax.f32 %v4107, 0.0
    %v4183 = vmax.f32 %v3996, 0.0
    %v4184 = vmax.f32 %v3998, 0.0
    %v4185 = vmax.f32 %v4109, 0.0
    %v4186 = vmax.f32 %v4111, 0.0
    %v4187 = vmax.f32 %v4002, 0.0
    %v4188 = vmax.f32 %v4004, 0.0
    %v4189 = vmax.f32 %v4115, 0.0
    %v4190 = vmax.f32 %v4117, 0.0
    %v4191 = vmax.f32 %v4006, 0.0
    %v4192 = vmax.f32 %v4008, 0.0
    %v4193 = vmax.f32 %v4119, 0.0
    %v4194 = vmax.f32 %v4121, 0.0
    %v4195 = vmax.f32 %v4012, 0.0
    %v4196 = vmax.f32 %v4014, 0.0
    %v4197 = vmax.f32 %v4125, 0.0
    %v4198 = vmax.f32 %v4127, 0.0
    %v4199 = vmax.f32 %v4016, 0.0
    %v4200 = vmax.f32 %v4018, 0.0
    %v4201 = vmax.f32 %v4129, 0.0
    %v4202 = vmax.f32 %v4131, 0.0
    %v4203 = vmax.f32 %v4022, 0.0
    %v4204 = vmax.f32 %v4024, 0.0
    %v4205 = vmax.f32 %v4135, 0.0
    %v4206 = vmax.f32 %v4137, 0.0
    %v4207 = vmax.f32 %v4026, 0.0
    %v4208 = vmax.f32 %v4028, 0.0
    %v4209 = vmax.f32 %v4139, 0.0
    %v4210 = vmax.f32 %v4141, 0.0
    %v4211 = vmax.f32 %v4032, 0.0
    %v4212 = vmax.f32 %v4034, 0.0
    %v4213 = vmax.f32 %v4145, 0.0
    %v4214 = vmax.f32 %v4147, 0.0
    %v4215 = vmax.f32 %v4036, 0.0
    %v4216 = vmax.f32 %v4038, 0.0
    %v4217 = vmax.f32 %v4149, 0.0
    %v4218 = vmax.f32 %v4151, 0.0
    %v4219 = vmax.f32 %v4042, 0.0
    %v4220 = vmax.f32 %v4044, 0.0
    %v4221 = vmax.f32 %v4155, 0.0
    %v4222 = vmax.f32 %v4157, 0.0
    %v4223 = vmax.f32 %v4046, 0.0
    %v4224 = vmax.f32 %v4048, 0.0
    %v4225 = vmax.f32 %v4159, 0.0
    %v4226 = vmax.f32 %v4161, 0.0
    %v4227 = vpack.c.bf16 %v4167, %v4163
    %v4228 = vpack.c.bf16 %v4168, %v4164
    %v4229 = vpack.c.bf16 %v4169, %v4165
    %v4230 = vpack.c.bf16 %v4170, %v4166
    %v4231 = vpack.c.bf16 %v4175, %v4171
    %v4232 = vpack.c.bf16 %v4176, %v4172
    %v4233 = vpack.c.bf16 %v4177, %v4173
    %v4234 = vpack.c.bf16 %v4178, %v4174
    %v4235 = vpack.c.bf16 %v4183, %v4179
    %v4236 = vpack.c.bf16 %v4184, %v4180
    %v4237 = vpack.c.bf16 %v4185, %v4181
    %v4238 = vpack.c.bf16 %v4186, %v4182
    %v4239 = vpack.c.bf16 %v4191, %v4187
    %v4240 = vpack.c.bf16 %v4192, %v4188
    %v4241 = vpack.c.bf16 %v4193, %v4189
    %v4242 = vpack.c.bf16 %v4194, %v4190
    %v4243 = vpack.c.bf16 %v4199, %v4195
    %v4244 = vpack.c.bf16 %v4200, %v4196
    %v4245 = vpack.c.bf16 %v4201, %v4197
    %v4246 = vpack.c.bf16 %v4202, %v4198
    %v4247 = vpack.c.bf16 %v4207, %v4203
    %v4248 = vpack.c.bf16 %v4208, %v4204
    %v4249 = vpack.c.bf16 %v4209, %v4205
    %v4250 = vpack.c.bf16 %v4210, %v4206
    %v4251 = vpack.c.bf16 %v4215, %v4211
    %v4252 = vpack.c.bf16 %v4216, %v4212
    %v4253 = vpack.c.bf16 %v4217, %v4213
    %v4254 = vpack.c.bf16 %v4218, %v4214
    %v4255 = vpack.c.bf16 %v4223, %v4219
    %v4256 = vpack.c.bf16 %v4224, %v4220
    %v4257 = vpack.c.bf16 %v4225, %v4221
    %v4258 = vpack.c.bf16 %v4226, %v4222
    %v4259 = vld [vmem:[#allocation11] sm:$0xf]
    %v4260 = vld [vmem:[#allocation11 + $0x4] sm:$0xf]
    %v4261 = vld [vmem:[#allocation11 + $0x8] sm:$0xf]
    %v4262 = vld [vmem:[#allocation11 + $0xc] sm:$0xf]
    %v4263 = vld [vmem:[#allocation11 + $0x10] sm:$0xf]
    %v4264 = vld [vmem:[#allocation11 + $0x14] sm:$0xf]
    %v4265 = vld [vmem:[#allocation11 + $0x18] sm:$0xf]
    %v4266 = vld [vmem:[#allocation11 + $0x1c] sm:$0xf]
    %v4267 = vld [vmem:[#allocation11 + $0x20] sm:$0xf]
    %v4268 = vld [vmem:[#allocation11 + $0x24] sm:$0xf]
    %v4269 = vld [vmem:[#allocation11 + $0x28] sm:$0xf]
    %v4270 = vld [vmem:[#allocation11 + $0x2c] sm:$0xf]
    %v4271 = vld [vmem:[#allocation11 + $0x30] sm:$0xf]
    %v4272 = vld [vmem:[#allocation11 + $0x34] sm:$0xf]
    %v4273 = vld [vmem:[#allocation11 + $0x38] sm:$0xf]
    %v4274 = vld [vmem:[#allocation11 + $0x3c] sm:$0xf]
    %v4275 = vld [vmem:[#allocation11 + $0x40] sm:$0xf]
    %v4276 = vld [vmem:[#allocation11 + $0x44] sm:$0xf]
    %v4277 = vld [vmem:[#allocation11 + $0x48] sm:$0xf]
    %v4278 = vld [vmem:[#allocation11 + $0x4c] sm:$0xf]
    %v4279 = vld [vmem:[#allocation11 + $0x50] sm:$0xf]
    %v4280 = vld [vmem:[#allocation11 + $0x54] sm:$0xf]
    %v4281 = vld [vmem:[#allocation11 + $0x58] sm:$0xf]
    %v4282 = vld [vmem:[#allocation11 + $0x5c] sm:$0xf]
    %v4283 = vld [vmem:[#allocation11 + $0x60] sm:$0xf]
    %v4284 = vld [vmem:[#allocation11 + $0x64] sm:$0xf]
    %v4285 = vld [vmem:[#allocation11 + $0x68] sm:$0xf]
    %v4286 = vld [vmem:[#allocation11 + $0x6c] sm:$0xf]
    %v4287 = vld [vmem:[#allocation11 + $0x70] sm:$0xf]
    %v4288 = vld [vmem:[#allocation11 + $0x74] sm:$0xf]
    %v4289 = vld [vmem:[#allocation11 + $0x78] sm:$0xf]
    %v4290 = vld [vmem:[#allocation11 + $0x7c] sm:$0xf]
    %v4291 = vld [vmem:[#allocation11 + $0x80] sm:$0xf]
    %v4292 = vld [vmem:[#allocation11 + $0x84] sm:$0xf]
    %v4293 = vld [vmem:[#allocation11 + $0x88] sm:$0xf]
    %v4294 = vld [vmem:[#allocation11 + $0x8c] sm:$0xf]
    %v4295 = vld [vmem:[#allocation11 + $0x90] sm:$0xf]
    %v4296 = vld [vmem:[#allocation11 + $0x94] sm:$0xf]
    %v4297 = vld [vmem:[#allocation11 + $0x98] sm:$0xf]
    %v4298 = vld [vmem:[#allocation11 + $0x9c] sm:$0xf]
    %v4299 = vld [vmem:[#allocation11 + $0xa0] sm:$0xf]
    %v4300 = vld [vmem:[#allocation11 + $0xa4] sm:$0xf]
    %v4301 = vld [vmem:[#allocation11 + $0xa8] sm:$0xf]
    %v4302 = vld [vmem:[#allocation11 + $0xac] sm:$0xf]
    %v4303 = vld [vmem:[#allocation11 + $0xb0] sm:$0xf]
    %v4304 = vld [vmem:[#allocation11 + $0xb4] sm:$0xf]
    %v4305 = vld [vmem:[#allocation11 + $0xb8] sm:$0xf]
    %v4306 = vld [vmem:[#allocation11 + $0xbc] sm:$0xf]
    %v4307 = vld [vmem:[#allocation11 + $0xc0] sm:$0xf]
    %v4308 = vld [vmem:[#allocation11 + $0xc4] sm:$0xf]
    %v4309 = vld [vmem:[#allocation11 + $0xc8] sm:$0xf]
    %v4310 = vld [vmem:[#allocation11 + $0xcc] sm:$0xf]
    %v4311 = vld [vmem:[#allocation11 + $0xd0] sm:$0xf]
    %v4312 = vld [vmem:[#allocation11 + $0xd4] sm:$0xf]
    %v4313 = vld [vmem:[#allocation11 + $0xd8] sm:$0xf]
    %v4314 = vld [vmem:[#allocation11 + $0xdc] sm:$0xf]
    %v4315 = vld [vmem:[#allocation11 + $0xe0] sm:$0xf]
    %v4316 = vld [vmem:[#allocation11 + $0xe4] sm:$0xf]
    %v4317 = vld [vmem:[#allocation11 + $0xe8] sm:$0xf]
    %v4318 = vld [vmem:[#allocation11 + $0xec] sm:$0xf]
    %v4319 = vld [vmem:[#allocation11 + $0xf0] sm:$0xf]
    %v4320 = vld [vmem:[#allocation11 + $0xf4] sm:$0xf]
    %v4321 = vld [vmem:[#allocation11 + $0xf8] sm:$0xf]
    %v4322 = vld [vmem:[#allocation11 + $0xfc] sm:$0xf]
    %v4323 = vld [vmem:[#allocation13] sm:$0x1]
    %v4325 = vlaneseq
    %v4326 = vshrl.u32 %v4325, 7
    %v4327 = vsub.s32 0, %v4326
    %v4328 = vrot.slane %v4323, %v4327
    %v4394 = vunpack.c.l.b16 %v4259
    %v4395 = vunpack.c.l.b16 %v4260
    %v4396 = vunpack.c.l.b16 %v4261
    %v4397 = vunpack.c.l.b16 %v4262
    %v4398 = vunpack.c.l.b16 %v4263
    %v4399 = vunpack.c.l.b16 %v4264
    %v4400 = vunpack.c.l.b16 %v4265
    %v4401 = vunpack.c.l.b16 %v4266
    %v4402 = vunpack.c.l.b16 %v4267
    %v4403 = vunpack.c.l.b16 %v4268
    %v4404 = vunpack.c.l.b16 %v4269
    %v4405 = vunpack.c.l.b16 %v4270
    %v4406 = vunpack.c.l.b16 %v4271
    %v4407 = vunpack.c.l.b16 %v4272
    %v4408 = vunpack.c.l.b16 %v4273
    %v4409 = vunpack.c.l.b16 %v4274
    %v4410 = vunpack.c.l.b16 %v4275
    %v4411 = vunpack.c.l.b16 %v4276
    %v4412 = vunpack.c.l.b16 %v4277
    %v4413 = vunpack.c.l.b16 %v4278
    %v4414 = vunpack.c.l.b16 %v4279
    %v4415 = vunpack.c.l.b16 %v4280
    %v4416 = vunpack.c.l.b16 %v4281
    %v4417 = vunpack.c.l.b16 %v4282
    %v4418 = vunpack.c.l.b16 %v4283
    %v4419 = vunpack.c.l.b16 %v4284
    %v4420 = vunpack.c.l.b16 %v4285
    %v4421 = vunpack.c.l.b16 %v4286
    %v4422 = vunpack.c.l.b16 %v4287
    %v4423 = vunpack.c.l.b16 %v4288
    %v4424 = vunpack.c.l.b16 %v4289
    %v4425 = vunpack.c.l.b16 %v4290
    %v4426 = vunpack.c.l.b16 %v4291
    %v4427 = vunpack.c.l.b16 %v4292
    %v4428 = vunpack.c.l.b16 %v4293
    %v4429 = vunpack.c.l.b16 %v4294
    %v4430 = vunpack.c.l.b16 %v4295
    %v4431 = vunpack.c.l.b16 %v4296
    %v4432 = vunpack.c.l.b16 %v4297
    %v4433 = vunpack.c.l.b16 %v4298
    %v4434 = vunpack.c.l.b16 %v4299
    %v4435 = vunpack.c.l.b16 %v4300
    %v4436 = vunpack.c.l.b16 %v4301
    %v4437 = vunpack.c.l.b16 %v4302
    %v4438 = vunpack.c.l.b16 %v4303
    %v4439 = vunpack.c.l.b16 %v4304
    %v4440 = vunpack.c.l.b16 %v4305
    %v4441 = vunpack.c.l.b16 %v4306
    %v4442 = vunpack.c.l.b16 %v4307
    %v4443 = vunpack.c.l.b16 %v4308
    %v4444 = vunpack.c.l.b16 %v4309
    %v4445 = vunpack.c.l.b16 %v4310
    %v4446 = vunpack.c.l.b16 %v4311
    %v4447 = vunpack.c.l.b16 %v4312
    %v4448 = vunpack.c.l.b16 %v4313
    %v4449 = vunpack.c.l.b16 %v4314
    %v4450 = vunpack.c.l.b16 %v4315
    %v4451 = vunpack.c.l.b16 %v4316
    %v4452 = vunpack.c.l.b16 %v4317
    %v4453 = vunpack.c.l.b16 %v4318
    %v4454 = vunpack.c.l.b16 %v4319
    %v4455 = vunpack.c.l.b16 %v4320
    %v4456 = vunpack.c.l.b16 %v4321
    %v4457 = vunpack.c.l.b16 %v4322
    %v4458 = vpack.c.b16 %v4395, %v4394
    %v4459 = vpack.c.b16 %v4397, %v4396
    %v4460 = vpack.c.b16 %v4399, %v4398
    %v4461 = vpack.c.b16 %v4401, %v4400
    %v4462 = vpack.c.b16 %v4403, %v4402
    %v4463 = vpack.c.b16 %v4405, %v4404
    %v4464 = vpack.c.b16 %v4407, %v4406
    %v4465 = vpack.c.b16 %v4409, %v4408
    %v4466 = vpack.c.b16 %v4411, %v4410
    %v4467 = vpack.c.b16 %v4413, %v4412
    %v4468 = vpack.c.b16 %v4415, %v4414
    %v4469 = vpack.c.b16 %v4417, %v4416
    %v4470 = vpack.c.b16 %v4419, %v4418
    %v4471 = vpack.c.b16 %v4421, %v4420
    %v4472 = vpack.c.b16 %v4423, %v4422
    %v4473 = vpack.c.b16 %v4425, %v4424
    %v4474 = vpack.c.b16 %v4427, %v4426
    %v4475 = vpack.c.b16 %v4429, %v4428
    %v4476 = vpack.c.b16 %v4431, %v4430
    %v4477 = vpack.c.b16 %v4433, %v4432
    %v4478 = vpack.c.b16 %v4435, %v4434
    %v4479 = vpack.c.b16 %v4437, %v4436
    %v4480 = vpack.c.b16 %v4439, %v4438
    %v4481 = vpack.c.b16 %v4441, %v4440
    %v4482 = vpack.c.b16 %v4443, %v4442
    %v4483 = vpack.c.b16 %v4445, %v4444
    %v4484 = vpack.c.b16 %v4447, %v4446
    %v4485 = vpack.c.b16 %v4449, %v4448
    %v4486 = vpack.c.b16 %v4451, %v4450
    %v4487 = vpack.c.b16 %v4453, %v4452
    %v4488 = vpack.c.b16 %v4455, %v4454
    %v4489 = vpack.c.b16 %v4457, %v4456
    %4522 = vmatprep.subr.bf16.mxu0 0
    %4523 = vmatpush1.bf16.msra.mxu0 %v4465
    %4524 = vmatprep.subr.bf16.mxu0 0
    %4525 = vmatpush1.bf16.msra.mxu0 %v4464
    %4526 = vmatprep.subr.bf16.mxu0 0
    %4527 = vmatpush1.bf16.msra.mxu0 %v4463
    %4528 = vmatprep.subr.bf16.mxu0 0
    %4529 = vmatpush1.bf16.msra.mxu0 %v4462
    %4530 = vmatprep.subr.bf16.mxu0 0
    %4531 = vmatpush1.bf16.msra.mxu0 %v4461
    %4532 = vmatprep.subr.bf16.mxu0 0
    %4533 = vmatpush1.bf16.msra.mxu0 %v4460
    %4534 = vmatprep.subr.bf16.mxu0 0
    %4535 = vmatpush1.bf16.msra.mxu0 %v4459
    %4536 = vmatprep.subr.bf16.mxu0 0
    %4537 = vmatpush1.bf16.msra.mxu0 %v4458
    %4538 = vmatprep.subr.bf16.mxu0 0
    %4539 = vmatpush2.bf16.msra.mxu0 %v4473
    %4540 = vmatprep.subr.bf16.mxu0 0
    %4541 = vmatpush2.bf16.msra.mxu0 %v4472
    %4542 = vmatprep.subr.bf16.mxu0 0
    %4543 = vmatpush2.bf16.msra.mxu0 %v4471
    %4544 = vmatprep.subr.bf16.mxu0 0
    %4545 = vmatpush2.bf16.msra.mxu0 %v4470
    %4546 = vmatprep.subr.bf16.mxu0 0
    %4547 = vmatpush2.bf16.msra.mxu0 %v4469
    %4548 = vmatprep.subr.bf16.mxu0 0
    %4549 = vmatpush2.bf16.msra.mxu0 %v4468
    %4550 = vmatprep.subr.bf16.mxu0 0
    %4551 = vmatpush2.bf16.msra.mxu0 %v4467
    %4552 = vmatprep.subr.bf16.mxu0 0
    %4553 = vmatpush2.bf16.msra.mxu0 %v4466
    %4554 = vmatprep.mubr.bf16.mxu0 %v4228
    %4555 = vmatmul.mubr.bf16.gmra.mxu0 %v4227
    %v4556 = vpop.f32.mrf.mxu0
    %v4557 = vadd.f32 %v4328, %v4556
    %v4558 = vpop.f32.mrf.mxu0
    %v4559 = vpop.f32.mrf.mxu0
    %v4560 = vadd.f32 %v4328, %v4559
    %v4561 = vpop.f32.mrf.mxu0
    %4562 = vmatprep.mubr.bf16.mxu0 %v4232
    %4563 = vmatmul.mubr.bf16.gmra.mxu0 %v4231
    %v4564 = vpop.f32.mrf.mxu0
    %v4565 = vadd.f32 %v4328, %v4564
    %v4566 = vpop.f32.mrf.mxu0
    %v4567 = vpop.f32.mrf.mxu0
    %v4568 = vadd.f32 %v4328, %v4567
    %v4569 = vpop.f32.mrf.mxu0
    %4570 = vmatprep.mubr.bf16.mxu0 %v4236
    %4571 = vmatmul.mubr.bf16.gmra.mxu0 %v4235
    %v4572 = vpop.f32.mrf.mxu0
    %v4573 = vadd.f32 %v4328, %v4572
    %v4574 = vpop.f32.mrf.mxu0
    %v4575 = vpop.f32.mrf.mxu0
    %v4576 = vadd.f32 %v4328, %v4575
    %v4577 = vpop.f32.mrf.mxu0
    %4578 = vmatprep.mubr.bf16.mxu0 %v4240
    %4579 = vmatmul.mubr.bf16.gmra.mxu0 %v4239
    %v4580 = vpop.f32.mrf.mxu0
    %v4581 = vadd.f32 %v4328, %v4580
    %v4582 = vpop.f32.mrf.mxu0
    %v4583 = vpop.f32.mrf.mxu0
    %v4584 = vadd.f32 %v4328, %v4583
    %v4585 = vpop.f32.mrf.mxu0
    %4586 = vmatprep.mubr.bf16.mxu0 %v4244
    %4587 = vmatmul.mubr.bf16.gmra.mxu0 %v4243
    %v4588 = vpop.f32.mrf.mxu0
    %v4589 = vadd.f32 %v4328, %v4588
    %v4590 = vpop.f32.mrf.mxu0
    %v4591 = vpop.f32.mrf.mxu0
    %v4592 = vadd.f32 %v4328, %v4591
    %v4593 = vpop.f32.mrf.mxu0
    %4594 = vmatprep.mubr.bf16.mxu0 %v4248
    %4595 = vmatmul.mubr.bf16.gmra.mxu0 %v4247
    %v4596 = vpop.f32.mrf.mxu0
    %v4597 = vadd.f32 %v4328, %v4596
    %v4598 = vpop.f32.mrf.mxu0
    %v4599 = vpop.f32.mrf.mxu0
    %v4600 = vadd.f32 %v4328, %v4599
    %v4601 = vpop.f32.mrf.mxu0
    %4602 = vmatprep.mubr.bf16.mxu0 %v4252
    %4603 = vmatmul.mubr.bf16.gmra.mxu0 %v4251
    %v4604 = vpop.f32.mrf.mxu0
    %v4605 = vadd.f32 %v4328, %v4604
    %v4606 = vpop.f32.mrf.mxu0
    %v4607 = vpop.f32.mrf.mxu0
    %v4608 = vadd.f32 %v4328, %v4607
    %v4609 = vpop.f32.mrf.mxu0
    %4610 = vmatprep.mubr.bf16.mxu0 %v4256
    %4611 = vmatmul.mubr.bf16.gmra.mxu0 %v4255
    %v4612 = vpop.f32.mrf.mxu0
    %v4613 = vadd.f32 %v4328, %v4612
    %v4614 = vpop.f32.mrf.mxu0
    %v4615 = vpop.f32.mrf.mxu0
    %v4616 = vadd.f32 %v4328, %v4615
    %v4617 = vpop.f32.mrf.mxu0
    %4618 = vdwg.mxu0
    %4619 = vmatprep.subr.bf16.mxu0 0
    %4620 = vmatpush1.bf16.msra.mxu0 %v4481
    %4621 = vmatprep.subr.bf16.mxu0 0
    %4622 = vmatpush1.bf16.msra.mxu0 %v4480
    %4623 = vmatprep.subr.bf16.mxu0 0
    %4624 = vmatpush1.bf16.msra.mxu0 %v4479
    %4625 = vmatprep.subr.bf16.mxu0 0
    %4626 = vmatpush1.bf16.msra.mxu0 %v4478
    %4627 = vmatprep.subr.bf16.mxu0 0
    %4628 = vmatpush1.bf16.msra.mxu0 %v4477
    %4629 = vmatprep.subr.bf16.mxu0 0
    %4630 = vmatpush1.bf16.msra.mxu0 %v4476
    %4631 = vmatprep.subr.bf16.mxu0 0
    %4632 = vmatpush1.bf16.msra.mxu0 %v4475
    %4633 = vmatprep.subr.bf16.mxu0 0
    %4634 = vmatpush1.bf16.msra.mxu0 %v4474
    %4635 = vmatprep.subr.bf16.mxu0 0
    %4636 = vmatpush2.bf16.msra.mxu0 %v4489
    %4637 = vmatprep.subr.bf16.mxu0 0
    %4638 = vmatpush2.bf16.msra.mxu0 %v4488
    %4639 = vmatprep.subr.bf16.mxu0 0
    %4640 = vmatpush2.bf16.msra.mxu0 %v4487
    %4641 = vmatprep.subr.bf16.mxu0 0
    %4642 = vmatpush2.bf16.msra.mxu0 %v4486
    %4643 = vmatprep.subr.bf16.mxu0 0
    %4644 = vmatpush2.bf16.msra.mxu0 %v4485
    %4645 = vmatprep.subr.bf16.mxu0 0
    %4646 = vmatpush2.bf16.msra.mxu0 %v4484
    %4647 = vmatprep.subr.bf16.mxu0 0
    %4648 = vmatpush2.bf16.msra.mxu0 %v4483
    %4649 = vmatprep.subr.bf16.mxu0 0
    %4650 = vmatpush2.bf16.msra.mxu0 %v4482
    %4651 = vmatprep.mubr.bf16.mxu0 %v4230
    %4652 = vmatmul.mubr.bf16.gmra.mxu0 %v4229
    %v4653 = vpop.f32.mrf.mxu0
    %v4654 = vadd.f32 %v4557, %v4653
    %v4655 = vpop.f32.mrf.mxu0
    %v4656 = vpop.f32.mrf.mxu0
    %v4657 = vadd.f32 %v4560, %v4656
    %v4658 = vpop.f32.mrf.mxu0
    %4659 = vmatprep.mubr.bf16.mxu0 %v4234
    %4660 = vmatmul.mubr.bf16.gmra.mxu0 %v4233
    %v4661 = vpop.f32.mrf.mxu0
    %v4662 = vadd.f32 %v4565, %v4661
    %v4663 = vpop.f32.mrf.mxu0
    %v4664 = vpop.f32.mrf.mxu0
    %v4665 = vadd.f32 %v4568, %v4664
    %v4666 = vpop.f32.mrf.mxu0
    %4667 = vmatprep.mubr.bf16.mxu0 %v4238
    %4668 = vmatmul.mubr.bf16.gmra.mxu0 %v4237
    %v4669 = vpop.f32.mrf.mxu0
    %v4670 = vadd.f32 %v4573, %v4669
    %v4671 = vpop.f32.mrf.mxu0
    %v4672 = vpop.f32.mrf.mxu0
    %v4673 = vadd.f32 %v4576, %v4672
    %v4674 = vpop.f32.mrf.mxu0
    %4675 = vmatprep.mubr.bf16.mxu0 %v4242
    %4676 = vmatmul.mubr.bf16.gmra.mxu0 %v4241
    %v4677 = vpop.f32.mrf.mxu0
    %v4678 = vadd.f32 %v4581, %v4677
    %v4679 = vpop.f32.mrf.mxu0
    %v4680 = vpop.f32.mrf.mxu0
    %v4681 = vadd.f32 %v4584, %v4680
    %v4682 = vpop.f32.mrf.mxu0
    %4683 = vmatprep.mubr.bf16.mxu0 %v4246
    %4684 = vmatmul.mubr.bf16.gmra.mxu0 %v4245
    %v4685 = vpop.f32.mrf.mxu0
    %v4686 = vadd.f32 %v4589, %v4685
    %v4687 = vpop.f32.mrf.mxu0
    %v4688 = vpop.f32.mrf.mxu0
    %v4689 = vadd.f32 %v4592, %v4688
    %v4690 = vpop.f32.mrf.mxu0
    %4691 = vmatprep.mubr.bf16.mxu0 %v4250
    %4692 = vmatmul.mubr.bf16.gmra.mxu0 %v4249
    %v4693 = vpop.f32.mrf.mxu0
    %v4694 = vadd.f32 %v4597, %v4693
    %v4695 = vpop.f32.mrf.mxu0
    %v4696 = vpop.f32.mrf.mxu0
    %v4697 = vadd.f32 %v4600, %v4696
    %v4698 = vpop.f32.mrf.mxu0
    %4699 = vmatprep.mubr.bf16.mxu0 %v4254
    %4700 = vmatmul.mubr.bf16.gmra.mxu0 %v4253
    %v4701 = vpop.f32.mrf.mxu0
    %v4702 = vadd.f32 %v4605, %v4701
    %v4703 = vpop.f32.mrf.mxu0
    %v4704 = vpop.f32.mrf.mxu0
    %v4705 = vadd.f32 %v4608, %v4704
    %v4706 = vpop.f32.mrf.mxu0
    %4707 = vmatprep.mubr.bf16.mxu0 %v4258
    %4708 = vmatmul.mubr.bf16.gmra.mxu0 %v4257
    %v4709 = vpop.f32.mrf.mxu0
    %v4710 = vadd.f32 %v4613, %v4709
    %v4711 = vpop.f32.mrf.mxu0
    %v4712 = vpop.f32.mrf.mxu0
    %v4713 = vadd.f32 %v4616, %v4712
    %v4714 = vpop.f32.mrf.mxu0
    %4715 = vdwg.mxu0
    %v4716 = vadd.f32 %v3477, %v4654
    %v4717 = vadd.f32 %v3478, %v4657
    %v4718 = vadd.f32 %v3479, %v4662
    %v4719 = vadd.f32 %v3480, %v4665
    %v4720 = vadd.f32 %v3481, %v4670
    %v4721 = vadd.f32 %v3482, %v4673
    %v4722 = vadd.f32 %v3483, %v4678
    %v4723 = vadd.f32 %v3484, %v4681
    %v4724 = vadd.f32 %v3485, %v4686
    %v4725 = vadd.f32 %v3486, %v4689
    %v4726 = vadd.f32 %v3487, %v4694
    %v4727 = vadd.f32 %v3488, %v4697
    %v4728 = vadd.f32 %v3489, %v4702
    %v4729 = vadd.f32 %v3490, %v4705
    %v4730 = vadd.f32 %v3491, %v4710
    %v4731 = vadd.f32 %v3492, %v4713
    %4732 = vst [vmem:[#allocation14] sm:$0xff] %v4716
    %4733 = vst [vmem:[#allocation14 + $0x8] sm:$0xff] %v4717
    %4734 = vst [vmem:[#allocation14 + $0x10] sm:$0xff] %v4718
    %4735 = vst [vmem:[#allocation14 + $0x18] sm:$0xff] %v4719
    %4736 = vst [vmem:[#allocation14 + $0x20] sm:$0xff] %v4720
    %4737 = vst [vmem:[#allocation14 + $0x28] sm:$0xff] %v4721
    %4738 = vst [vmem:[#allocation14 + $0x30] sm:$0xff] %v4722
    %4739 = vst [vmem:[#allocation14 + $0x38] sm:$0xff] %v4723
    %4740 = vst [vmem:[#allocation14 + $0x40] sm:$0xff] %v4724
    %4741 = vst [vmem:[#allocation14 + $0x48] sm:$0xff] %v4725
    %4742 = vst [vmem:[#allocation14 + $0x50] sm:$0xff] %v4726
    %4743 = vst [vmem:[#allocation14 + $0x58] sm:$0xff] %v4727
    %4744 = vst [vmem:[#allocation14 + $0x60] sm:$0xff] %v4728
    %4745 = vst [vmem:[#allocation14 + $0x68] sm:$0xff] %v4729
    %4746 = vst [vmem:[#allocation14 + $0x70] sm:$0xff] %v4730
    %4747 = vst [vmem:[#allocation14 + $0x78] sm:$0xff] %v4731
    // Predicated region
    $region78: #{transformer_block.1} parent=1 // pred_check
      _
    $region79: #{transformer_block.1} parent=1 // pred_check_branch
      %4749 = sbr.rel (0) target = $region81
    $region80: #{transformer_block.1} parent=1 // pred_region
      %s4751 = ssub.s32 2048, 2048
      %4752 = vsyncadd [#allocation4], %s4751
      %s4753 = sshll.u32 [#allocation14], 4
      %s4754 = int_to_ptr.vmem [resolvable:$true] %s4753
      %4759 = dma.vmem_to_hbm [thread:$0]  %s4754, 2048, %s12, [#allocation4], 128, 128, 8
    $region81: #{transformer_block.1} parent=1 // pred_fallthru
      _
    // Predicated region
    $region82: #{transformer_block.1} parent=1 // pred_check
      _
    $region83: #{transformer_block.1} parent=1 // pred_check_branch
      %4761 = sbr.rel (0) target = $region85
    $region84: #{transformer_block.1} parent=1 // pred_region
      %4762 = dma.done [#allocation4], 2048
    $region85: #{transformer_block.1} parent=1 // pred_fallthru
      _
    %4763 = vsyncpa [#allocation3], 1
    %4764 = vsyncpa [#allocation6], 1
    %4765 = vsyncpa [#allocation9], 1
    %4766 = vsyncpa [#allocation12], 1
    %4767 = vsyncpa [#allocation4], 1

</llo_original>
